<compile_context>
chip_gen: v7x
topology: tpu7x:2x2x1
jax: 0.10.0
libtpu: 0.0.40
codegen_flags: <defaults>
</compile_context>

<pallas_src>
import math
import numpy as np
import jax
import jax.numpy as jnp
from jax.experimental import pallas as pl
from jax.experimental.pallas import tpu as pltpu  # noqa: F401  (TPU backend)

# ------------------------- small config (synthetic) -------------------------
B = 2          # batch
T = 16         # sequence length (multiple of required_seq_len_multiple=2)
E = 32         # encoder_embed_dim
FFN = 64       # encoder_ffn_embed_dim
H = 4          # encoder_attention_heads
DH = E // H    # head dim
L = 2          # encoder_layers
K = 4          # conv_pos (positional conv kernel size; even -> SamePad trims)
G = 2          # conv_pos_groups
PAD = K // 2
LN_EPS = 1e-5  # torch nn.LayerNorm default
BT = B * T
SCALE = 1.0 / math.sqrt(DH)

LANES = 128
NGRP = LANES // E          # 4 column groups of width E in the dense output
ROWS = BT // NGRP          # 8 sublane rows of the lane-dense output slab

# vector-slab layout (one row per bias / LN vector, zero-padded to 128 lanes)
NV_GLOBAL = 3              # b_conv, ln_g, ln_b
NV_PER_LAYER = 8           # bqkv, bo, g1, be1, b1, b2, g2, be2
NV = NV_GLOBAL + NV_PER_LAYER * L


# ------------------------------ in-kernel math -------------------------------
def _ln(x, g, b):
    mu = jnp.mean(x, axis=-1, keepdims=True)
    var = jnp.mean((x - mu) ** 2, axis=-1, keepdims=True)
    return (x - mu) * jax.lax.rsqrt(var + LN_EPS) * g + b


def _erf(x):
    # Abramowitz & Stegun 7.1.26 (max abs err 1.5e-7); exp + VPU ops only.
    a1, a2, a3, a4, a5 = 0.254829592, -0.284496736, 1.421413741, -1.453152027, 1.061405429
    pp = 0.3275911
    ax = jnp.abs(x)
    t = 1.0 / (1.0 + pp * ax)
    poly = ((((a5 * t + a4) * t + a3) * t + a2) * t + a1) * t
    y = 1.0 - poly * jnp.exp(-ax * ax)
    return jnp.where(x >= 0.0, y, -y)


def _gelu_exact(x):
    return 0.5 * x * (1.0 + _erf(x * (1.0 / math.sqrt(2.0))))


def _lane_dense(x):
    # (BT, E)=(32,32) -> (ROWS, 128)=(8,128): column block j holds rows [8j,8j+8).
    # 3 lane concats (XLU slot) -> full un-masked 128-lane output store.
    return jnp.concatenate([x[j * ROWS:(j + 1) * ROWS, :] for j in range(NGRP)],
                           axis=1)


# ------------------------------ fused Pallas kernel --------------------------
def wav2vec2_fused_kernel(xwin_ref, vec_ref, wconv_ref, wa_ref, wb_ref, out_ref):
    xwin = xwin_ref[...]                                  # (BT, K*E) f32
    vecs = vec_ref[...]                                   # (NV, 128) f32
    # x is the j==PAD im2col window (the un-shifted input itself)
    x = xwin[:, PAD * E:(PAD + 1) * E]                    # (BT, E) f32

    bconv = vecs[0:1, :E]
    lng = vecs[1:2, :E]
    lnb = vecs[2:3, :E]

    # --- positional grouped conv as one im2col matmul + bias + exact GELU ---
    conv = jnp.dot(xwin.astype(jnp.bfloat16), wconv_ref[...],
                   preferred_element_type=jnp.float32) + bconv
    # residual add + encoder-level LayerNorm (layer_norm_first=False path)
    x = _ln(x + _gelu_exact(conv), lng, lnb)

    for l in range(L):                                    # static layer loop
        base = NV_GLOBAL + l * NV_PER_LAYER
        bqkv = vecs[base + 0:base + 1, :3 * E]            # q bias already scaled
        bo = vecs[base + 1:base + 2, :E]
        g1 = vecs[base + 2:base + 3, :E]
        be1 = vecs[base + 3:base + 4, :E]
        b1 = vecs[base + 4:base + 5, :FFN]
        b2 = vecs[base + 5:base + 6, :E]
        g2 = vecs[base + 6:base + 7, :E]
        be2 = vecs[base + 7:base + 8, :E]

        wa = wa_ref[l]                                    # (E, 3E+E+FFN) bf16
        wb = wb_ref[l]                                    # (FFN, E) bf16

        # fused QKV projection; 1/sqrt(DH) folded into q columns/bias on host
        qkv = jnp.dot(x.astype(jnp.bfloat16), wa[:, :3 * E],
                      preferred_element_type=jnp.float32) + bqkv     # (BT, 3E)
        q = qkv[:, :E].reshape(B, T, E)
        k = qkv[:, E:2 * E].reshape(B, T, E)
        v = qkv[:, 2 * E:].reshape(B, T, E)

        # multi-head attention; per-head ctx lane-concatenated, ONE Wo matmul
        ctx_heads = []
        for h in range(H):                                # static head loop
            sl = slice(h * DH, (h + 1) * DH)
            s = jnp.einsum('btd,bsd->bts', q[:, :, sl], k[:, :, sl],
                           preferred_element_type=jnp.float32)       # (B,T,T)
            s = s - jnp.max(s, axis=-1, keepdims=True)
            p = jnp.exp(s)
            p = p * pl.reciprocal(jnp.sum(p, axis=-1, keepdims=True),
                                  approx=True)
            ctx = jnp.einsum('bts,bsd->btd', p, v[:, :, sl],
                             preferred_element_type=jnp.float32)     # (B,T,DH)
            ctx_heads.append(ctx.reshape(BT, DH))
        ctx_all = jnp.concatenate(ctx_heads, axis=-1)     # (BT, E)

        attn = jnp.dot(ctx_all.astype(jnp.bfloat16), wa[:, 3 * E:4 * E],
                       preferred_element_type=jnp.float32) + bo

        # post-norm: residual + self_attn_layer_norm
        x = _ln(x + attn, g1, be1)

        # ReLU FFN
        h1 = jnp.maximum(
            jnp.dot(x.astype(jnp.bfloat16), wa[:, 4 * E:],
                    preferred_element_type=jnp.float32) + b1, 0.0)
        h2 = jnp.dot(h1.astype(jnp.bfloat16), wb,
                     preferred_element_type=jnp.float32) + b2

        out_ref[L + l] = _lane_dense(h2)        # fairseq layer_result (fc2 out)
        x = _ln(x + h2, g2, be2)                # residual + final_layer_norm
        out_ref[l] = _lane_dense(x)             # per-layer output


# ------------------------------ wrapper ---------------------------------------
def wav2vec2_encoder_forward(x, kp):
    """x: (B, T, E); kp: packed kernel params.  Returns (x_out, layer_results)."""
    xpad = jnp.pad(x, ((0, 0), (PAD, PAD), (0, 0)))
    # host-side im2col (layout plumbing): (B, T, K*E) windows -> (BT, K*E)
    xwin = jnp.concatenate([xpad[:, j:j + T, :] for j in range(K)],
                           axis=-1).reshape(BT, K * E)

    out = pl.pallas_call(
        wav2vec2_fused_kernel,
        out_shape=jax.ShapeDtypeStruct((2 * L, ROWS, LANES), jnp.float32),
    )(xwin, kp["vecs"], kp["wconv"], kp["wa"], kp["wb"])

    # undo lane-dense packing: (2L, 8, 128) -> (2L, BT, E) -> (2L, B, T, E)
    slab = out.reshape(2 * L, ROWS, NGRP, E).transpose(0, 2, 1, 3)
    slab = slab.reshape(2 * L, B, T, E)
    xs, lrs = slab[:L], slab[L:]
    # (x, z, layer_result) per layer; z (attn weights) is None (the layer calls
    # self_attn with need_weights=False).
    layer_results = [(xs[l], None, lrs[l]) for l in range(L)]
    return xs[L - 1], layer_results


# ------------------------- parameter init (synthetic) ------------------------
def init_params(key):
    keys = jax.random.split(key, 64)
    it = iter(keys)

    def nrm(shape, std=0.02):
        return (std * jax.random.normal(next(it), shape)).astype(jnp.float32)

    # pos_conv: Conv1d(E, E, K, padding=K//2, groups=G); weight_norm(dim=2) is
    # identity at init (g = ||v||), so the effective weight == sampled weight.
    conv_std = math.sqrt(4.0 / (K * E))
    w_conv = nrm((E, E // G, K), conv_std)            # torch layout (O, I/G, K)
    b_conv = jnp.zeros((1, E), jnp.float32)           # nn.init.constant_(bias, 0)

    ln_g = (1.0 + nrm((1, E))).astype(jnp.float32)
    ln_b = nrm((1, E))

    layers = []
    for _ in range(L):
        layers.append(dict(
            wq=nrm((E, E)), bq=nrm((1, E)),           # stored (in,out): y = x@W+b
            wk=nrm((E, E)), bk=nrm((1, E)),
            wv=nrm((E, E)), bv=nrm((1, E)),
            wo=nrm((E, E)), bo=nrm((1, E)),
            g1=1.0 + nrm((1, E)), be1=nrm((1, E)),    # self_attn_layer_norm
            w1=nrm((E, FFN)), b1=nrm((1, FFN)),       # fc1
            w2=nrm((FFN, E)), b2=nrm((1, E)),         # fc2
            g2=1.0 + nrm((1, E)), be2=nrm((1, E)),    # final_layer_norm
        ))
    return dict(w_conv=w_conv, b_conv=b_conv, ln_g=ln_g, ln_b=ln_b, layers=layers)


def pack_kernel_params(p):
    """Pack raw params into the fused/stacked slabs the kernel consumes."""
    # dense block-diagonal per-offset conv weights, flattened for im2col:
    # out[t,co] = sum_{j,ci} xpad[t+j,ci] * Wd[j,ci,co]
    cpg = E // G
    wd = np.zeros((K, E, E), np.float32)
    w_np = np.asarray(p["w_conv"])
    for co in range(E):
        g = co // cpg
        wd[:, g * cpg:(g + 1) * cpg, co] = w_np[co].T            # (K, cpg)
    wconv = jnp.asarray(wd.reshape(K * E, E), dtype=jnp.bfloat16)

    def row(vec, width):
        r = np.zeros((1, LANES), np.float32)
        r[0, :width] = np.asarray(vec, dtype=np.float32).reshape(-1)[:width]
        return r

    # one f32 slab for every bias / LayerNorm vector (one padded 128-lane row each)
    rows = [row(p["b_conv"], E), row(p["ln_g"], E), row(p["ln_b"], E)]
    wa_list, wb_list = [], []
    for lp in p["layers"]:
        # QKV fusion with the attention scale folded into q weight AND q bias
        # (fairseq scales q = q_proj(x) * scaling, bias included).
        bqkv = np.concatenate([np.asarray(lp["bq"]) * SCALE, np.asarray(lp["bk"]),
                               np.asarray(lp["bv"])], axis=1)
        rows += [row(bqkv, 3 * E), row(lp["bo"], E), row(lp["g1"], E),
                 row(lp["be1"], E), row(lp["b1"], FFN), row(lp["b2"], E),
                 row(lp["g2"], E), row(lp["be2"], E)]
        # all in-dim-E matrices of the layer in one slab: [wqkv | wo | w1]
        wa_list.append(np.concatenate(
            [np.asarray(lp["wq"]) * SCALE, np.asarray(lp["wk"]),
             np.asarray(lp["wv"]), np.asarray(lp["wo"]), np.asarray(lp["w1"])],
            axis=1))
        wb_list.append(np.asarray(lp["w2"]))

    vecs = jnp.asarray(np.concatenate(rows, axis=0))             # (NV, 128) f32
    wa = jnp.asarray(np.stack(wa_list), dtype=jnp.bfloat16)      # (L, E, 3E+E+FFN)
    wb = jnp.asarray(np.stack(wb_list), dtype=jnp.bfloat16)      # (L, FFN, E)
    assert vecs.shape == (NV, LANES)
    return dict(vecs=vecs, wconv=wconv, wa=wa, wb=wb)


# --------------------------- pure-JAX reference ------------------------------
def _ref_ln(x, g, b):
    mu = jnp.mean(x, -1, keepdims=True)
    var = jnp.mean((x - mu) ** 2, -1, keepdims=True)
    return (x - mu) / jnp.sqrt(var + LN_EPS) * g + b


def reference_forward(x, p):
    x_nct = jnp.transpose(x, (0, 2, 1))               # (B, E, T)
    conv = jax.lax.conv_general_dilated(
        x_nct, p["w_conv"], window_strides=(1,), padding=((PAD, PAD),),
        dimension_numbers=("NCH", "OIH", "NCH"), feature_group_count=G)
    conv = conv[..., :T] + p["b_conv"][0][None, :, None]   # SamePad trim (K even)
    x_conv = jax.nn.gelu(jnp.transpose(conv, (0, 2, 1)), approximate=False)
    x = _ref_ln(x + x_conv, p["ln_g"], p["ln_b"])
    layer_results = []
    for lp in p["layers"]:
        q = (x @ lp["wq"] + lp["bq"]) * SCALE
        k = x @ lp["wk"] + lp["bk"]
        v = x @ lp["wv"] + lp["bv"]
        qh = q.reshape(B, T, H, DH).transpose(0, 2, 1, 3)
        kh = k.reshape(B, T, H, DH).transpose(0, 2, 1, 3)
        vh = v.reshape(B, T, H, DH).transpose(0, 2, 1, 3)
        s = jnp.einsum("bhtd,bhsd->bhts", qh, kh)
        pm = jax.nn.softmax(s, axis=-1)
        o = jnp.einsum("bhts,bhsd->bhtd", pm, vh).transpose(0, 2, 1, 3).reshape(B, T, E)
        attn = o @ lp["wo"] + lp["bo"]
        x = _ref_ln(x + attn, lp["g1"], lp["be1"])
        hfc = jnp.maximum(x @ lp["w1"] + lp["b1"], 0.0)
        lr = hfc @ lp["w2"] + lp["b2"]                 # fairseq layer_result
        x = _ref_ln(x + lr, lp["g2"], lp["be2"])
        layer_results.append((x, None, lr))
    return x, layer_results


# ------------------------------------ main -----------------------------------
if __name__ == "__main__":
    key = jax.random.PRNGKey(0)
    kx, kp_key = jax.random.split(key)
    x = jax.random.normal(kx, (B, T, E), dtype=jnp.float32)
    params = init_params(kp_key)
    kparams = pack_kernel_params(params)

    out, layer_results = wav2vec2_encoder_forward(x, kparams)
    out = jax.block_until_ready(out)

    ref_out, ref_lrs = reference_forward(x, params)
    # Tolerance accounts for bf16 MXU operands + approx erf / approx reciprocal;
    # real math bugs produce O(0.1..1) errors and are still caught.
    TOL = 1e-2
    assert out.shape == (B, T, E) and out.dtype == jnp.float32
    assert jnp.allclose(out, ref_out, atol=TOL, rtol=TOL), \
        float(jnp.max(jnp.abs(out - ref_out)))
    # also validate per-layer outputs and layer_result (fc2 pre-residual output)
    for (x_l, _, lr_l), (rx_l, _, rlr_l) in zip(layer_results, ref_lrs):
        assert jnp.allclose(x_l, rx_l, atol=TOL, rtol=TOL), \
            float(jnp.max(jnp.abs(x_l - rx_l)))
        assert jnp.allclose(lr_l, rlr_l, atol=TOL, rtol=TOL), \
            float(jnp.max(jnp.abs(lr_l - rlr_l)))
    print("KERNEL_OK")
</pallas_src>

<mosaic_0001>
module attributes {stable_mosaic.version = 11 : i64} {
  func.func @wav2vec2_fused_kernel(%arg0: memref<32x128xf32, #tpu.memory_space<vmem>>, %arg1: memref<19x128xf32, #tpu.memory_space<vmem>>, %arg2: memref<128x32xbf16, #tpu.memory_space<vmem>>, %arg3: memref<2x32x192xbf16, #tpu.memory_space<vmem>>, %arg4: memref<2x64x32xbf16, #tpu.memory_space<vmem>>, %arg5: memref<4x8x128xf32, #tpu.memory_space<vmem>>) attributes {dimension_semantics = [], scalar_prefetch = 0 : i64, scratch_operands = 0 : i64, tpu.core_type = #tpu.core_type<tc>} {
    %c0 = arith.constant 0 : index
    %c0_0 = arith.constant 0 : index
    %0 = vector.load %arg0[%c0, %c0_0] : memref<32x128xf32, #tpu.memory_space<vmem>>, vector<32x128xf32>
    %c0_1 = arith.constant 0 : index
    %c0_2 = arith.constant 0 : index
    %1 = vector.load %arg1[%c0_1, %c0_2] : memref<19x128xf32, #tpu.memory_space<vmem>>, vector<19x128xf32>
    %2 = vector.extract_strided_slice %0 {offsets = [0, 64], sizes = [32, 32], strides = [1, 1]} : vector<32x128xf32> to vector<32x32xf32>
    %3 = vector.extract_strided_slice %1 {offsets = [0, 0], sizes = [1, 32], strides = [1, 1]} : vector<19x128xf32> to vector<1x32xf32>
    %4 = vector.extract_strided_slice %1 {offsets = [1, 0], sizes = [1, 32], strides = [1, 1]} : vector<19x128xf32> to vector<1x32xf32>
    %5 = vector.extract_strided_slice %1 {offsets = [2, 0], sizes = [1, 32], strides = [1, 1]} : vector<19x128xf32> to vector<1x32xf32>
    %6 = arith.truncf %0 : vector<32x128xf32> to vector<32x128xbf16>
    %c0_3 = arith.constant 0 : index
    %c0_4 = arith.constant 0 : index
    %7 = vector.load %arg2[%c0_3, %c0_4] : memref<128x32xbf16, #tpu.memory_space<vmem>>, vector<128x32xbf16>
    %cst = arith.constant dense<0.000000e+00> : vector<32x32xf32>
    %8 = tpu.matmul %6, %7, %cst {dimension_numbers = #tpu.dot_dimension_numbers<[1], [0], [0], [1], [0, 0, 1, 1], [], []>} : vector<32x128xbf16>, vector<128x32xbf16>, vector<32x32xf32> -> vector<32x32xf32>
    %9 = vector.broadcast %3 : vector<1x32xf32> to vector<32x32xf32>
    %10 = arith.addf %8, %9 : vector<32x32xf32>
    %cst_5 = arith.constant 5.000000e-01 : f32
    %11 = vector.broadcast %cst_5 : f32 to vector<32x32xf32>
    %12 = arith.mulf %11, %10 : vector<32x32xf32>
    %cst_6 = arith.constant 0.707106769 : f32
    %13 = vector.broadcast %cst_6 : f32 to vector<32x32xf32>
    %14 = arith.mulf %10, %13 : vector<32x32xf32>
    %15 = math.absf %14 : vector<32x32xf32>
    %cst_7 = arith.constant 0.327591091 : f32
    %16 = vector.broadcast %cst_7 : f32 to vector<32x32xf32>
    %17 = arith.mulf %16, %15 : vector<32x32xf32>
    %cst_8 = arith.constant 1.000000e+00 : f32
    %18 = vector.broadcast %cst_8 : f32 to vector<32x32xf32>
    %19 = arith.addf %18, %17 : vector<32x32xf32>
    %cst_9 = arith.constant 1.000000e+00 : f32
    %20 = vector.broadcast %cst_9 : f32 to vector<32x32xf32>
    %21 = arith.divf %20, %19 : vector<32x32xf32>
    %cst_10 = arith.constant 1.06140542 : f32
    %22 = vector.broadcast %cst_10 : f32 to vector<32x32xf32>
    %23 = arith.mulf %22, %21 : vector<32x32xf32>
    %cst_11 = arith.constant -1.45315206 : f32
    %24 = vector.broadcast %cst_11 : f32 to vector<32x32xf32>
    %25 = arith.addf %23, %24 : vector<32x32xf32>
    %26 = arith.mulf %25, %21 : vector<32x32xf32>
    %cst_12 = arith.constant 1.42141378 : f32
    %27 = vector.broadcast %cst_12 : f32 to vector<32x32xf32>
    %28 = arith.addf %26, %27 : vector<32x32xf32>
    %29 = arith.mulf %28, %21 : vector<32x32xf32>
    %cst_13 = arith.constant -0.284496725 : f32
    %30 = vector.broadcast %cst_13 : f32 to vector<32x32xf32>
    %31 = arith.addf %29, %30 : vector<32x32xf32>
    %32 = arith.mulf %31, %21 : vector<32x32xf32>
    %cst_14 = arith.constant 0.254829586 : f32
    %33 = vector.broadcast %cst_14 : f32 to vector<32x32xf32>
    %34 = arith.addf %32, %33 : vector<32x32xf32>
    %35 = arith.mulf %34, %21 : vector<32x32xf32>
    %cst_15 = arith.constant 0.000000e+00 : f32
    %36 = vector.broadcast %cst_15 : f32 to vector<32x32xf32>
    %37 = arith.subf %36, %15 : vector<32x32xf32>
    %38 = arith.mulf %37, %15 : vector<32x32xf32>
    %39 = math.exp %38 : vector<32x32xf32>
    %40 = arith.mulf %35, %39 : vector<32x32xf32>
    %cst_16 = arith.constant 1.000000e+00 : f32
    %41 = vector.broadcast %cst_16 : f32 to vector<32x32xf32>
    %42 = arith.subf %41, %40 : vector<32x32xf32>
    %cst_17 = arith.constant 0.000000e+00 : f32
    %43 = vector.broadcast %cst_17 : f32 to vector<32x32xf32>
    %44 = arith.cmpf oge, %14, %43 : vector<32x32xf32>
    %cst_18 = arith.constant 0.000000e+00 : f32
    %45 = vector.broadcast %cst_18 : f32 to vector<32x32xf32>
    %46 = arith.subf %45, %42 : vector<32x32xf32>
    %47 = arith.select %44, %42, %46 : vector<32x32xi1>, vector<32x32xf32>
    %cst_19 = arith.constant 1.000000e+00 : f32
    %48 = vector.broadcast %cst_19 : f32 to vector<32x32xf32>
    %49 = arith.addf %48, %47 : vector<32x32xf32>
    %50 = arith.mulf %12, %49 : vector<32x32xf32>
    %51 = arith.addf %2, %50 : vector<32x32xf32>
    %cst_20 = arith.constant dense<0.000000e+00> : vector<32xf32>
    %52 = vector.multi_reduction <add>, %51, %cst_20 [1] : vector<32x32xf32> to vector<32xf32>
    %53 = vector.shape_cast %52 : vector<32xf32> to vector<32x1xf32>
    %cst_21 = arith.constant 3.200000e+01 : f32
    %54 = vector.broadcast %cst_21 : f32 to vector<32x1xf32>
    %55 = arith.divf %53, %54 : vector<32x1xf32>
    %56 = vector.broadcast %55 : vector<32x1xf32> to vector<32x32xf32>
    %57 = arith.subf %51, %56 : vector<32x32xf32>
    %58 = arith.mulf %57, %57 : vector<32x32xf32>
    %cst_22 = arith.constant dense<0.000000e+00> : vector<32xf32>
    %59 = vector.multi_reduction <add>, %58, %cst_22 [1] : vector<32x32xf32> to vector<32xf32>
    %60 = vector.shape_cast %59 : vector<32xf32> to vector<32x1xf32>
    %cst_23 = arith.constant 3.200000e+01 : f32
    %61 = vector.broadcast %cst_23 : f32 to vector<32x1xf32>
    %62 = arith.divf %60, %61 : vector<32x1xf32>
    %63 = vector.broadcast %55 : vector<32x1xf32> to vector<32x32xf32>
    %64 = arith.subf %51, %63 : vector<32x32xf32>
    %cst_24 = arith.constant 9.99999974E-6 : f32
    %65 = vector.broadcast %cst_24 : f32 to vector<32x1xf32>
    %66 = arith.addf %62, %65 : vector<32x1xf32>
    %67 = math.rsqrt %66 : vector<32x1xf32>
    %68 = vector.broadcast %67 : vector<32x1xf32> to vector<32x32xf32>
    %69 = arith.mulf %64, %68 : vector<32x32xf32>
    %70 = vector.broadcast %4 : vector<1x32xf32> to vector<32x32xf32>
    %71 = arith.mulf %69, %70 : vector<32x32xf32>
    %72 = vector.broadcast %5 : vector<1x32xf32> to vector<32x32xf32>
    %73 = arith.addf %71, %72 : vector<32x32xf32>
    %74 = vector.extract_strided_slice %1 {offsets = [3, 0], sizes = [1, 96], strides = [1, 1]} : vector<19x128xf32> to vector<1x96xf32>
    %75 = vector.extract_strided_slice %1 {offsets = [4, 0], sizes = [1, 32], strides = [1, 1]} : vector<19x128xf32> to vector<1x32xf32>
    %76 = vector.extract_strided_slice %1 {offsets = [5, 0], sizes = [1, 32], strides = [1, 1]} : vector<19x128xf32> to vector<1x32xf32>
    %77 = vector.extract_strided_slice %1 {offsets = [6, 0], sizes = [1, 32], strides = [1, 1]} : vector<19x128xf32> to vector<1x32xf32>
    %78 = vector.extract_strided_slice %1 {offsets = [7, 0], sizes = [1, 64], strides = [1, 1]} : vector<19x128xf32> to vector<1x64xf32>
    %79 = vector.extract_strided_slice %1 {offsets = [8, 0], sizes = [1, 32], strides = [1, 1]} : vector<19x128xf32> to vector<1x32xf32>
    %80 = vector.extract_strided_slice %1 {offsets = [9, 0], sizes = [1, 32], strides = [1, 1]} : vector<19x128xf32> to vector<1x32xf32>
    %81 = vector.extract_strided_slice %1 {offsets = [10, 0], sizes = [1, 32], strides = [1, 1]} : vector<19x128xf32> to vector<1x32xf32>
    %c0_25 = arith.constant 0 : index
    %c0_26 = arith.constant 0 : index
    %c0_27 = arith.constant 0 : index
    %82 = vector.load %arg3[%c0_25, %c0_26, %c0_27] : memref<2x32x192xbf16, #tpu.memory_space<vmem>>, vector<1x32x192xbf16>
    %83 = vector.shape_cast %82 : vector<1x32x192xbf16> to vector<32x192xbf16>
    %c0_28 = arith.constant 0 : index
    %c0_29 = arith.constant 0 : index
    %c0_30 = arith.constant 0 : index
    %84 = vector.load %arg4[%c0_28, %c0_29, %c0_30] : memref<2x64x32xbf16, #tpu.memory_space<vmem>>, vector<1x64x32xbf16>
    %85 = vector.shape_cast %84 : vector<1x64x32xbf16> to vector<64x32xbf16>
    %86 = arith.truncf %73 : vector<32x32xf32> to vector<32x32xbf16>
    %87 = vector.extract_strided_slice %83 {offsets = [0, 0], sizes = [32, 96], strides = [1, 1]} : vector<32x192xbf16> to vector<32x96xbf16>
    %cst_31 = arith.constant dense<0.000000e+00> : vector<32x96xf32>
    %88 = tpu.matmul %86, %87, %cst_31 {dimension_numbers = #tpu.dot_dimension_numbers<[1], [0], [0], [1], [0, 0, 1, 1], [], []>} : vector<32x32xbf16>, vector<32x96xbf16>, vector<32x96xf32> -> vector<32x96xf32>
    %89 = vector.broadcast %74 : vector<1x96xf32> to vector<32x96xf32>
    %90 = arith.addf %88, %89 : vector<32x96xf32>
    %91 = vector.extract_strided_slice %90 {offsets = [0, 0], sizes = [32, 32], strides = [1, 1]} : vector<32x96xf32> to vector<32x32xf32>
    %92 = vector.shape_cast %91 : vector<32x32xf32> to vector<2x16x32xf32>
    %93 = vector.extract_strided_slice %90 {offsets = [0, 32], sizes = [32, 32], strides = [1, 1]} : vector<32x96xf32> to vector<32x32xf32>
    %94 = vector.shape_cast %93 : vector<32x32xf32> to vector<2x16x32xf32>
    %95 = vector.extract_strided_slice %90 {offsets = [0, 64], sizes = [32, 32], strides = [1, 1]} : vector<32x96xf32> to vector<32x32xf32>
    %96 = vector.shape_cast %95 : vector<32x32xf32> to vector<2x16x32xf32>
    %97 = vector.extract_strided_slice %92 {offsets = [0, 0, 0], sizes = [2, 16, 8], strides = [1, 1, 1]} : vector<2x16x32xf32> to vector<2x16x8xf32>
    %98 = vector.extract_strided_slice %94 {offsets = [0, 0, 0], sizes = [2, 16, 8], strides = [1, 1, 1]} : vector<2x16x32xf32> to vector<2x16x8xf32>
    "tpu.trace_start"() <{level = 10 : i32, message = "btd,bsd->bts"}> : () -> ()
    %cst_32 = arith.constant dense<0.000000e+00> : vector<2x16x16xf32>
    %99 = tpu.matmul %97, %98, %cst_32 {dimension_numbers = #tpu.dot_dimension_numbers<[2], [2], [1], [1], [0, 0, 0, 1, 1, 1], [0], [0]>} : vector<2x16x8xf32>, vector<2x16x8xf32>, vector<2x16x16xf32> -> vector<2x16x16xf32>
    "tpu.trace_stop"() : () -> ()
    %cst_33 = arith.constant dense<0xFF800000> : vector<2x16xf32>
    %100 = vector.multi_reduction <maximumf>, %99, %cst_33 [2] : vector<2x16x16xf32> to vector<2x16xf32>
    %101 = vector.shape_cast %100 : vector<2x16xf32> to vector<2x16x1xf32>
    %102 = vector.broadcast %101 : vector<2x16x1xf32> to vector<2x16x16xf32>
    %103 = arith.subf %99, %102 : vector<2x16x16xf32>
    %104 = math.exp %103 : vector<2x16x16xf32>
    %cst_34 = arith.constant dense<0.000000e+00> : vector<2x16xf32>
    %105 = vector.multi_reduction <add>, %104, %cst_34 [2] : vector<2x16x16xf32> to vector<2x16xf32>
    %106 = vector.shape_cast %105 : vector<2x16xf32> to vector<2x16x1xf32>
    %107 = tpu.reciprocal %106 {approx = true} : vector<2x16x1xf32> -> vector<2x16x1xf32>
    %108 = vector.broadcast %107 : vector<2x16x1xf32> to vector<2x16x16xf32>
    %109 = arith.mulf %104, %108 : vector<2x16x16xf32>
    %110 = vector.extract_strided_slice %96 {offsets = [0, 0, 0], sizes = [2, 16, 8], strides = [1, 1, 1]} : vector<2x16x32xf32> to vector<2x16x8xf32>
    "tpu.trace_start"() <{level = 10 : i32, message = "bts,bsd->btd"}> : () -> ()
    %cst_35 = arith.constant dense<0.000000e+00> : vector<2x16x8xf32>
    %111 = tpu.matmul %109, %110, %cst_35 {dimension_numbers = #tpu.dot_dimension_numbers<[2], [1], [1], [2], [0, 0, 0, 1, 1, 2], [0], [0]>} : vector<2x16x16xf32>, vector<2x16x8xf32>, vector<2x16x8xf32> -> vector<2x16x8xf32>
    "tpu.trace_stop"() : () -> ()
    %112 = vector.shape_cast %111 : vector<2x16x8xf32> to vector<32x8xf32>
    %113 = vector.extract_strided_slice %92 {offsets = [0, 0, 8], sizes = [2, 16, 8], strides = [1, 1, 1]} : vector<2x16x32xf32> to vector<2x16x8xf32>
    %114 = vector.extract_strided_slice %94 {offsets = [0, 0, 8], sizes = [2, 16, 8], strides = [1, 1, 1]} : vector<2x16x32xf32> to vector<2x16x8xf32>
    "tpu.trace_start"() <{level = 10 : i32, message = "btd,bsd->bts"}> : () -> ()
    %cst_36 = arith.constant dense<0.000000e+00> : vector<2x16x16xf32>
    %115 = tpu.matmul %113, %114, %cst_36 {dimension_numbers = #tpu.dot_dimension_numbers<[2], [2], [1], [1], [0, 0, 0, 1, 1, 1], [0], [0]>} : vector<2x16x8xf32>, vector<2x16x8xf32>, vector<2x16x16xf32> -> vector<2x16x16xf32>
    "tpu.trace_stop"() : () -> ()
    %cst_37 = arith.constant dense<0xFF800000> : vector<2x16xf32>
    %116 = vector.multi_reduction <maximumf>, %115, %cst_37 [2] : vector<2x16x16xf32> to vector<2x16xf32>
    %117 = vector.shape_cast %116 : vector<2x16xf32> to vector<2x16x1xf32>
    %118 = vector.broadcast %117 : vector<2x16x1xf32> to vector<2x16x16xf32>
    %119 = arith.subf %115, %118 : vector<2x16x16xf32>
    %120 = math.exp %119 : vector<2x16x16xf32>
    %cst_38 = arith.constant dense<0.000000e+00> : vector<2x16xf32>
    %121 = vector.multi_reduction <add>, %120, %cst_38 [2] : vector<2x16x16xf32> to vector<2x16xf32>
    %122 = vector.shape_cast %121 : vector<2x16xf32> to vector<2x16x1xf32>
    %123 = tpu.reciprocal %122 {approx = true} : vector<2x16x1xf32> -> vector<2x16x1xf32>
    %124 = vector.broadcast %123 : vector<2x16x1xf32> to vector<2x16x16xf32>
    %125 = arith.mulf %120, %124 : vector<2x16x16xf32>
    %126 = vector.extract_strided_slice %96 {offsets = [0, 0, 8], sizes = [2, 16, 8], strides = [1, 1, 1]} : vector<2x16x32xf32> to vector<2x16x8xf32>
    "tpu.trace_start"() <{level = 10 : i32, message = "bts,bsd->btd"}> : () -> ()
    %cst_39 = arith.constant dense<0.000000e+00> : vector<2x16x8xf32>
    %127 = tpu.matmul %125, %126, %cst_39 {dimension_numbers = #tpu.dot_dimension_numbers<[2], [1], [1], [2], [0, 0, 0, 1, 1, 2], [0], [0]>} : vector<2x16x16xf32>, vector<2x16x8xf32>, vector<2x16x8xf32> -> vector<2x16x8xf32>
    "tpu.trace_stop"() : () -> ()
    %128 = vector.shape_cast %127 : vector<2x16x8xf32> to vector<32x8xf32>
    %129 = vector.extract_strided_slice %92 {offsets = [0, 0, 16], sizes = [2, 16, 8], strides = [1, 1, 1]} : vector<2x16x32xf32> to vector<2x16x8xf32>
    %130 = vector.extract_strided_slice %94 {offsets = [0, 0, 16], sizes = [2, 16, 8], strides = [1, 1, 1]} : vector<2x16x32xf32> to vector<2x16x8xf32>
    "tpu.trace_start"() <{level = 10 : i32, message = "btd,bsd->bts"}> : () -> ()
    %cst_40 = arith.constant dense<0.000000e+00> : vector<2x16x16xf32>
    %131 = tpu.matmul %129, %130, %cst_40 {dimension_numbers = #tpu.dot_dimension_numbers<[2], [2], [1], [1], [0, 0, 0, 1, 1, 1], [0], [0]>} : vector<2x16x8xf32>, vector<2x16x8xf32>, vector<2x16x16xf32> -> vector<2x16x16xf32>
    "tpu.trace_stop"() : () -> ()
    %cst_41 = arith.constant dense<0xFF800000> : vector<2x16xf32>
    %132 = vector.multi_reduction <maximumf>, %131, %cst_41 [2] : vector<2x16x16xf32> to vector<2x16xf32>
    %133 = vector.shape_cast %132 : vector<2x16xf32> to vector<2x16x1xf32>
    %134 = vector.broadcast %133 : vector<2x16x1xf32> to vector<2x16x16xf32>
    %135 = arith.subf %131, %134 : vector<2x16x16xf32>
    %136 = math.exp %135 : vector<2x16x16xf32>
    %cst_42 = arith.constant dense<0.000000e+00> : vector<2x16xf32>
    %137 = vector.multi_reduction <add>, %136, %cst_42 [2] : vector<2x16x16xf32> to vector<2x16xf32>
    %138 = vector.shape_cast %137 : vector<2x16xf32> to vector<2x16x1xf32>
    %139 = tpu.reciprocal %138 {approx = true} : vector<2x16x1xf32> -> vector<2x16x1xf32>
    %140 = vector.broadcast %139 : vector<2x16x1xf32> to vector<2x16x16xf32>
    %141 = arith.mulf %136, %140 : vector<2x16x16xf32>
    %142 = vector.extract_strided_slice %96 {offsets = [0, 0, 16], sizes = [2, 16, 8], strides = [1, 1, 1]} : vector<2x16x32xf32> to vector<2x16x8xf32>
    "tpu.trace_start"() <{level = 10 : i32, message = "bts,bsd->btd"}> : () -> ()
    %cst_43 = arith.constant dense<0.000000e+00> : vector<2x16x8xf32>
    %143 = tpu.matmul %141, %142, %cst_43 {dimension_numbers = #tpu.dot_dimension_numbers<[2], [1], [1], [2], [0, 0, 0, 1, 1, 2], [0], [0]>} : vector<2x16x16xf32>, vector<2x16x8xf32>, vector<2x16x8xf32> -> vector<2x16x8xf32>
    "tpu.trace_stop"() : () -> ()
    %144 = vector.shape_cast %143 : vector<2x16x8xf32> to vector<32x8xf32>
    %145 = vector.extract_strided_slice %92 {offsets = [0, 0, 24], sizes = [2, 16, 8], strides = [1, 1, 1]} : vector<2x16x32xf32> to vector<2x16x8xf32>
    %146 = vector.extract_strided_slice %94 {offsets = [0, 0, 24], sizes = [2, 16, 8], strides = [1, 1, 1]} : vector<2x16x32xf32> to vector<2x16x8xf32>
    "tpu.trace_start"() <{level = 10 : i32, message = "btd,bsd->bts"}> : () -> ()
    %cst_44 = arith.constant dense<0.000000e+00> : vector<2x16x16xf32>
    %147 = tpu.matmul %145, %146, %cst_44 {dimension_numbers = #tpu.dot_dimension_numbers<[2], [2], [1], [1], [0, 0, 0, 1, 1, 1], [0], [0]>} : vector<2x16x8xf32>, vector<2x16x8xf32>, vector<2x16x16xf32> -> vector<2x16x16xf32>
    "tpu.trace_stop"() : () -> ()
    %cst_45 = arith.constant dense<0xFF800000> : vector<2x16xf32>
    %148 = vector.multi_reduction <maximumf>, %147, %cst_45 [2] : vector<2x16x16xf32> to vector<2x16xf32>
    %149 = vector.shape_cast %148 : vector<2x16xf32> to vector<2x16x1xf32>
    %150 = vector.broadcast %149 : vector<2x16x1xf32> to vector<2x16x16xf32>
    %151 = arith.subf %147, %150 : vector<2x16x16xf32>
    %152 = math.exp %151 : vector<2x16x16xf32>
    %cst_46 = arith.constant dense<0.000000e+00> : vector<2x16xf32>
    %153 = vector.multi_reduction <add>, %152, %cst_46 [2] : vector<2x16x16xf32> to vector<2x16xf32>
    %154 = vector.shape_cast %153 : vector<2x16xf32> to vector<2x16x1xf32>
    %155 = tpu.reciprocal %154 {approx = true} : vector<2x16x1xf32> -> vector<2x16x1xf32>
    %156 = vector.broadcast %155 : vector<2x16x1xf32> to vector<2x16x16xf32>
    %157 = arith.mulf %152, %156 : vector<2x16x16xf32>
    %158 = vector.extract_strided_slice %96 {offsets = [0, 0, 24], sizes = [2, 16, 8], strides = [1, 1, 1]} : vector<2x16x32xf32> to vector<2x16x8xf32>
    "tpu.trace_start"() <{level = 10 : i32, message = "bts,bsd->btd"}> : () -> ()
    %cst_47 = arith.constant dense<0.000000e+00> : vector<2x16x8xf32>
    %159 = tpu.matmul %157, %158, %cst_47 {dimension_numbers = #tpu.dot_dimension_numbers<[2], [1], [1], [2], [0, 0, 0, 1, 1, 2], [0], [0]>} : vector<2x16x16xf32>, vector<2x16x8xf32>, vector<2x16x8xf32> -> vector<2x16x8xf32>
    "tpu.trace_stop"() : () -> ()
    %160 = vector.shape_cast %159 : vector<2x16x8xf32> to vector<32x8xf32>
    %161 = tpu.concatenate %112, %128, %144, %160 in 1 : vector<32x8xf32>, vector<32x8xf32>, vector<32x8xf32>, vector<32x8xf32> -> vector<32x32xf32>
    %162 = arith.truncf %161 : vector<32x32xf32> to vector<32x32xbf16>
    %163 = vector.extract_strided_slice %83 {offsets = [0, 96], sizes = [32, 32], strides = [1, 1]} : vector<32x192xbf16> to vector<32x32xbf16>
    %cst_48 = arith.constant dense<0.000000e+00> : vector<32x32xf32>
    %164 = tpu.matmul %162, %163, %cst_48 {dimension_numbers = #tpu.dot_dimension_numbers<[1], [0], [0], [1], [0, 0, 1, 1], [], []>} : vector<32x32xbf16>, vector<32x32xbf16>, vector<32x32xf32> -> vector<32x32xf32>
    %165 = vector.broadcast %75 : vector<1x32xf32> to vector<32x32xf32>
    %166 = arith.addf %164, %165 : vector<32x32xf32>
    %167 = arith.addf %73, %166 : vector<32x32xf32>
    %cst_49 = arith.constant dense<0.000000e+00> : vector<32xf32>
    %168 = vector.multi_reduction <add>, %167, %cst_49 [1] : vector<32x32xf32> to vector<32xf32>
    %169 = vector.shape_cast %168 : vector<32xf32> to vector<32x1xf32>
    %cst_50 = arith.constant 3.200000e+01 : f32
    %170 = vector.broadcast %cst_50 : f32 to vector<32x1xf32>
    %171 = arith.divf %169, %170 : vector<32x1xf32>
    %172 = vector.broadcast %171 : vector<32x1xf32> to vector<32x32xf32>
    %173 = arith.subf %167, %172 : vector<32x32xf32>
    %174 = arith.mulf %173, %173 : vector<32x32xf32>
    %cst_51 = arith.constant dense<0.000000e+00> : vector<32xf32>
    %175 = vector.multi_reduction <add>, %174, %cst_51 [1] : vector<32x32xf32> to vector<32xf32>
    %176 = vector.shape_cast %175 : vector<32xf32> to vector<32x1xf32>
    %cst_52 = arith.constant 3.200000e+01 : f32
    %177 = vector.broadcast %cst_52 : f32 to vector<32x1xf32>
    %178 = arith.divf %176, %177 : vector<32x1xf32>
    %179 = vector.broadcast %171 : vector<32x1xf32> to vector<32x32xf32>
    %180 = arith.subf %167, %179 : vector<32x32xf32>
    %cst_53 = arith.constant 9.99999974E-6 : f32
    %181 = vector.broadcast %cst_53 : f32 to vector<32x1xf32>
    %182 = arith.addf %178, %181 : vector<32x1xf32>
    %183 = math.rsqrt %182 : vector<32x1xf32>
    %184 = vector.broadcast %183 : vector<32x1xf32> to vector<32x32xf32>
    %185 = arith.mulf %180, %184 : vector<32x32xf32>
    %186 = vector.broadcast %76 : vector<1x32xf32> to vector<32x32xf32>
    %187 = arith.mulf %185, %186 : vector<32x32xf32>
    %188 = vector.broadcast %77 : vector<1x32xf32> to vector<32x32xf32>
    %189 = arith.addf %187, %188 : vector<32x32xf32>
    %190 = arith.truncf %189 : vector<32x32xf32> to vector<32x32xbf16>
    %191 = vector.extract_strided_slice %83 {offsets = [0, 128], sizes = [32, 64], strides = [1, 1]} : vector<32x192xbf16> to vector<32x64xbf16>
    %cst_54 = arith.constant dense<0.000000e+00> : vector<32x64xf32>
    %192 = tpu.matmul %190, %191, %cst_54 {dimension_numbers = #tpu.dot_dimension_numbers<[1], [0], [0], [1], [0, 0, 1, 1], [], []>} : vector<32x32xbf16>, vector<32x64xbf16>, vector<32x64xf32> -> vector<32x64xf32>
    %193 = vector.broadcast %78 : vector<1x64xf32> to vector<32x64xf32>
    %194 = arith.addf %192, %193 : vector<32x64xf32>
    %cst_55 = arith.constant 0.000000e+00 : f32
    %195 = vector.broadcast %cst_55 : f32 to vector<32x64xf32>
    %196 = arith.maximumf %194, %195 : vector<32x64xf32>
    %197 = arith.truncf %196 : vector<32x64xf32> to vector<32x64xbf16>
    %cst_56 = arith.constant dense<0.000000e+00> : vector<32x32xf32>
    %198 = tpu.matmul %197, %85, %cst_56 {dimension_numbers = #tpu.dot_dimension_numbers<[1], [0], [0], [1], [0, 0, 1, 1], [], []>} : vector<32x64xbf16>, vector<64x32xbf16>, vector<32x32xf32> -> vector<32x32xf32>
    %199 = vector.broadcast %79 : vector<1x32xf32> to vector<32x32xf32>
    %200 = arith.addf %198, %199 : vector<32x32xf32>
    %201 = vector.extract_strided_slice %200 {offsets = [0, 0], sizes = [8, 32], strides = [1, 1]} : vector<32x32xf32> to vector<8x32xf32>
    %202 = vector.extract_strided_slice %200 {offsets = [8, 0], sizes = [8, 32], strides = [1, 1]} : vector<32x32xf32> to vector<8x32xf32>
    %203 = vector.extract_strided_slice %200 {offsets = [16, 0], sizes = [8, 32], strides = [1, 1]} : vector<32x32xf32> to vector<8x32xf32>
    %204 = vector.extract_strided_slice %200 {offsets = [24, 0], sizes = [8, 32], strides = [1, 1]} : vector<32x32xf32> to vector<8x32xf32>
    %205 = tpu.concatenate %201, %202, %203, %204 in 1 : vector<8x32xf32>, vector<8x32xf32>, vector<8x32xf32>, vector<8x32xf32> -> vector<8x128xf32>
    %c2 = arith.constant 2 : index
    %c0_57 = arith.constant 0 : index
    %c0_58 = arith.constant 0 : index
    %206 = vector.load %arg5[%c2, %c0_57, %c0_58] : memref<4x8x128xf32, #tpu.memory_space<vmem>>, vector<1x8x128xf32>
    %207 = vector.shape_cast %206 : vector<1x8x128xf32> to vector<8x128xf32>
    %208 = vector.shape_cast %205 : vector<8x128xf32> to vector<1x8x128xf32>
    tpu.vector_store %arg5[%c2, %c0_57, %c0_58], %208 {strides = array<i32>} : memref<4x8x128xf32, #tpu.memory_space<vmem>>, vector<1x8x128xf32>,
    %209 = arith.addf %189, %200 : vector<32x32xf32>
    %cst_59 = arith.constant dense<0.000000e+00> : vector<32xf32>
    %210 = vector.multi_reduction <add>, %209, %cst_59 [1] : vector<32x32xf32> to vector<32xf32>
    %211 = vector.shape_cast %210 : vector<32xf32> to vector<32x1xf32>
    %cst_60 = arith.constant 3.200000e+01 : f32
    %212 = vector.broadcast %cst_60 : f32 to vector<32x1xf32>
    %213 = arith.divf %211, %212 : vector<32x1xf32>
    %214 = vector.broadcast %213 : vector<32x1xf32> to vector<32x32xf32>
    %215 = arith.subf %209, %214 : vector<32x32xf32>
    %216 = arith.mulf %215, %215 : vector<32x32xf32>
    %cst_61 = arith.constant dense<0.000000e+00> : vector<32xf32>
    %217 = vector.multi_reduction <add>, %216, %cst_61 [1] : vector<32x32xf32> to vector<32xf32>
    %218 = vector.shape_cast %217 : vector<32xf32> to vector<32x1xf32>
    %cst_62 = arith.constant 3.200000e+01 : f32
    %219 = vector.broadcast %cst_62 : f32 to vector<32x1xf32>
    %220 = arith.divf %218, %219 : vector<32x1xf32>
    %221 = vector.broadcast %213 : vector<32x1xf32> to vector<32x32xf32>
    %222 = arith.subf %209, %221 : vector<32x32xf32>
    %cst_63 = arith.constant 9.99999974E-6 : f32
    %223 = vector.broadcast %cst_63 : f32 to vector<32x1xf32>
    %224 = arith.addf %220, %223 : vector<32x1xf32>
    %225 = math.rsqrt %224 : vector<32x1xf32>
    %226 = vector.broadcast %225 : vector<32x1xf32> to vector<32x32xf32>
    %227 = arith.mulf %222, %226 : vector<32x32xf32>
    %228 = vector.broadcast %80 : vector<1x32xf32> to vector<32x32xf32>
    %229 = arith.mulf %227, %228 : vector<32x32xf32>
    %230 = vector.broadcast %81 : vector<1x32xf32> to vector<32x32xf32>
    %231 = arith.addf %229, %230 : vector<32x32xf32>
    %232 = vector.extract_strided_slice %231 {offsets = [0, 0], sizes = [8, 32], strides = [1, 1]} : vector<32x32xf32> to vector<8x32xf32>
    %233 = vector.extract_strided_slice %231 {offsets = [8, 0], sizes = [8, 32], strides = [1, 1]} : vector<32x32xf32> to vector<8x32xf32>
    %234 = vector.extract_strided_slice %231 {offsets = [16, 0], sizes = [8, 32], strides = [1, 1]} : vector<32x32xf32> to vector<8x32xf32>
    %235 = vector.extract_strided_slice %231 {offsets = [24, 0], sizes = [8, 32], strides = [1, 1]} : vector<32x32xf32> to vector<8x32xf32>
    %236 = tpu.concatenate %232, %233, %234, %235 in 1 : vector<8x32xf32>, vector<8x32xf32>, vector<8x32xf32>, vector<8x32xf32> -> vector<8x128xf32>
    %c0_64 = arith.constant 0 : index
    %c0_65 = arith.constant 0 : index
    %c0_66 = arith.constant 0 : index
    %237 = vector.load %arg5[%c0_64, %c0_65, %c0_66] : memref<4x8x128xf32, #tpu.memory_space<vmem>>, vector<1x8x128xf32>
    %238 = vector.shape_cast %237 : vector<1x8x128xf32> to vector<8x128xf32>
    %239 = vector.shape_cast %236 : vector<8x128xf32> to vector<1x8x128xf32>
    tpu.vector_store %arg5[%c0_64, %c0_65, %c0_66], %239 {strides = array<i32>} : memref<4x8x128xf32, #tpu.memory_space<vmem>>, vector<1x8x128xf32>,
    %240 = vector.extract_strided_slice %1 {offsets = [11, 0], sizes = [1, 96], strides = [1, 1]} : vector<19x128xf32> to vector<1x96xf32>
    %241 = vector.extract_strided_slice %1 {offsets = [12, 0], sizes = [1, 32], strides = [1, 1]} : vector<19x128xf32> to vector<1x32xf32>
    %242 = vector.extract_strided_slice %1 {offsets = [13, 0], sizes = [1, 32], strides = [1, 1]} : vector<19x128xf32> to vector<1x32xf32>
    %243 = vector.extract_strided_slice %1 {offsets = [14, 0], sizes = [1, 32], strides = [1, 1]} : vector<19x128xf32> to vector<1x32xf32>
    %244 = vector.extract_strided_slice %1 {offsets = [15, 0], sizes = [1, 64], strides = [1, 1]} : vector<19x128xf32> to vector<1x64xf32>
    %245 = vector.extract_strided_slice %1 {offsets = [16, 0], sizes = [1, 32], strides = [1, 1]} : vector<19x128xf32> to vector<1x32xf32>
    %246 = vector.extract_strided_slice %1 {offsets = [17, 0], sizes = [1, 32], strides = [1, 1]} : vector<19x128xf32> to vector<1x32xf32>
    %247 = vector.extract_strided_slice %1 {offsets = [18, 0], sizes = [1, 32], strides = [1, 1]} : vector<19x128xf32> to vector<1x32xf32>
    %c1 = arith.constant 1 : index
    %c0_67 = arith.constant 0 : index
    %c0_68 = arith.constant 0 : index
    %248 = vector.load %arg3[%c1, %c0_67, %c0_68] : memref<2x32x192xbf16, #tpu.memory_space<vmem>>, vector<1x32x192xbf16>
    %249 = vector.shape_cast %248 : vector<1x32x192xbf16> to vector<32x192xbf16>
    %c1_69 = arith.constant 1 : index
    %c0_70 = arith.constant 0 : index
    %c0_71 = arith.constant 0 : index
    %250 = vector.load %arg4[%c1_69, %c0_70, %c0_71] : memref<2x64x32xbf16, #tpu.memory_space<vmem>>, vector<1x64x32xbf16>
    %251 = vector.shape_cast %250 : vector<1x64x32xbf16> to vector<64x32xbf16>
    %252 = arith.truncf %231 : vector<32x32xf32> to vector<32x32xbf16>
    %253 = vector.extract_strided_slice %249 {offsets = [0, 0], sizes = [32, 96], strides = [1, 1]} : vector<32x192xbf16> to vector<32x96xbf16>
    %cst_72 = arith.constant dense<0.000000e+00> : vector<32x96xf32>
    %254 = tpu.matmul %252, %253, %cst_72 {dimension_numbers = #tpu.dot_dimension_numbers<[1], [0], [0], [1], [0, 0, 1, 1], [], []>} : vector<32x32xbf16>, vector<32x96xbf16>, vector<32x96xf32> -> vector<32x96xf32>
    %255 = vector.broadcast %240 : vector<1x96xf32> to vector<32x96xf32>
    %256 = arith.addf %254, %255 : vector<32x96xf32>
    %257 = vector.extract_strided_slice %256 {offsets = [0, 0], sizes = [32, 32], strides = [1, 1]} : vector<32x96xf32> to vector<32x32xf32>
    %258 = vector.shape_cast %257 : vector<32x32xf32> to vector<2x16x32xf32>
    %259 = vector.extract_strided_slice %256 {offsets = [0, 32], sizes = [32, 32], strides = [1, 1]} : vector<32x96xf32> to vector<32x32xf32>
    %260 = vector.shape_cast %259 : vector<32x32xf32> to vector<2x16x32xf32>
    %261 = vector.extract_strided_slice %256 {offsets = [0, 64], sizes = [32, 32], strides = [1, 1]} : vector<32x96xf32> to vector<32x32xf32>
    %262 = vector.shape_cast %261 : vector<32x32xf32> to vector<2x16x32xf32>
    %263 = vector.extract_strided_slice %258 {offsets = [0, 0, 0], sizes = [2, 16, 8], strides = [1, 1, 1]} : vector<2x16x32xf32> to vector<2x16x8xf32>
    %264 = vector.extract_strided_slice %260 {offsets = [0, 0, 0], sizes = [2, 16, 8], strides = [1, 1, 1]} : vector<2x16x32xf32> to vector<2x16x8xf32>
    "tpu.trace_start"() <{level = 10 : i32, message = "btd,bsd->bts"}> : () -> ()
    %cst_73 = arith.constant dense<0.000000e+00> : vector<2x16x16xf32>
    %265 = tpu.matmul %263, %264, %cst_73 {dimension_numbers = #tpu.dot_dimension_numbers<[2], [2], [1], [1], [0, 0, 0, 1, 1, 1], [0], [0]>} : vector<2x16x8xf32>, vector<2x16x8xf32>, vector<2x16x16xf32> -> vector<2x16x16xf32>
    "tpu.trace_stop"() : () -> ()
    %cst_74 = arith.constant dense<0xFF800000> : vector<2x16xf32>
    %266 = vector.multi_reduction <maximumf>, %265, %cst_74 [2] : vector<2x16x16xf32> to vector<2x16xf32>
    %267 = vector.shape_cast %266 : vector<2x16xf32> to vector<2x16x1xf32>
    %268 = vector.broadcast %267 : vector<2x16x1xf32> to vector<2x16x16xf32>
    %269 = arith.subf %265, %268 : vector<2x16x16xf32>
    %270 = math.exp %269 : vector<2x16x16xf32>
    %cst_75 = arith.constant dense<0.000000e+00> : vector<2x16xf32>
    %271 = vector.multi_reduction <add>, %270, %cst_75 [2] : vector<2x16x16xf32> to vector<2x16xf32>
    %272 = vector.shape_cast %271 : vector<2x16xf32> to vector<2x16x1xf32>
    %273 = tpu.reciprocal %272 {approx = true} : vector<2x16x1xf32> -> vector<2x16x1xf32>
    %274 = vector.broadcast %273 : vector<2x16x1xf32> to vector<2x16x16xf32>
    %275 = arith.mulf %270, %274 : vector<2x16x16xf32>
    %276 = vector.extract_strided_slice %262 {offsets = [0, 0, 0], sizes = [2, 16, 8], strides = [1, 1, 1]} : vector<2x16x32xf32> to vector<2x16x8xf32>
    "tpu.trace_start"() <{level = 10 : i32, message = "bts,bsd->btd"}> : () -> ()
    %cst_76 = arith.constant dense<0.000000e+00> : vector<2x16x8xf32>
    %277 = tpu.matmul %275, %276, %cst_76 {dimension_numbers = #tpu.dot_dimension_numbers<[2], [1], [1], [2], [0, 0, 0, 1, 1, 2], [0], [0]>} : vector<2x16x16xf32>, vector<2x16x8xf32>, vector<2x16x8xf32> -> vector<2x16x8xf32>
    "tpu.trace_stop"() : () -> ()
    %278 = vector.shape_cast %277 : vector<2x16x8xf32> to vector<32x8xf32>
    %279 = vector.extract_strided_slice %258 {offsets = [0, 0, 8], sizes = [2, 16, 8], strides = [1, 1, 1]} : vector<2x16x32xf32> to vector<2x16x8xf32>
    %280 = vector.extract_strided_slice %260 {offsets = [0, 0, 8], sizes = [2, 16, 8], strides = [1, 1, 1]} : vector<2x16x32xf32> to vector<2x16x8xf32>
    "tpu.trace_start"() <{level = 10 : i32, message = "btd,bsd->bts"}> : () -> ()
    %cst_77 = arith.constant dense<0.000000e+00> : vector<2x16x16xf32>
    %281 = tpu.matmul %279, %280, %cst_77 {dimension_numbers = #tpu.dot_dimension_numbers<[2], [2], [1], [1], [0, 0, 0, 1, 1, 1], [0], [0]>} : vector<2x16x8xf32>, vector<2x16x8xf32>, vector<2x16x16xf32> -> vector<2x16x16xf32>
    "tpu.trace_stop"() : () -> ()
    %cst_78 = arith.constant dense<0xFF800000> : vector<2x16xf32>
    %282 = vector.multi_reduction <maximumf>, %281, %cst_78 [2] : vector<2x16x16xf32> to vector<2x16xf32>
    %283 = vector.shape_cast %282 : vector<2x16xf32> to vector<2x16x1xf32>
    %284 = vector.broadcast %283 : vector<2x16x1xf32> to vector<2x16x16xf32>
    %285 = arith.subf %281, %284 : vector<2x16x16xf32>
    %286 = math.exp %285 : vector<2x16x16xf32>
    %cst_79 = arith.constant dense<0.000000e+00> : vector<2x16xf32>
    %287 = vector.multi_reduction <add>, %286, %cst_79 [2] : vector<2x16x16xf32> to vector<2x16xf32>
    %288 = vector.shape_cast %287 : vector<2x16xf32> to vector<2x16x1xf32>
    %289 = tpu.reciprocal %288 {approx = true} : vector<2x16x1xf32> -> vector<2x16x1xf32>
    %290 = vector.broadcast %289 : vector<2x16x1xf32> to vector<2x16x16xf32>
    %291 = arith.mulf %286, %290 : vector<2x16x16xf32>
    %292 = vector.extract_strided_slice %262 {offsets = [0, 0, 8], sizes = [2, 16, 8], strides = [1, 1, 1]} : vector<2x16x32xf32> to vector<2x16x8xf32>
    "tpu.trace_start"() <{level = 10 : i32, message = "bts,bsd->btd"}> : () -> ()
    %cst_80 = arith.constant dense<0.000000e+00> : vector<2x16x8xf32>
    %293 = tpu.matmul %291, %292, %cst_80 {dimension_numbers = #tpu.dot_dimension_numbers<[2], [1], [1], [2], [0, 0, 0, 1, 1, 2], [0], [0]>} : vector<2x16x16xf32>, vector<2x16x8xf32>, vector<2x16x8xf32> -> vector<2x16x8xf32>
    "tpu.trace_stop"() : () -> ()
    %294 = vector.shape_cast %293 : vector<2x16x8xf32> to vector<32x8xf32>
    %295 = vector.extract_strided_slice %258 {offsets = [0, 0, 16], sizes = [2, 16, 8], strides = [1, 1, 1]} : vector<2x16x32xf32> to vector<2x16x8xf32>
    %296 = vector.extract_strided_slice %260 {offsets = [0, 0, 16], sizes = [2, 16, 8], strides = [1, 1, 1]} : vector<2x16x32xf32> to vector<2x16x8xf32>
    "tpu.trace_start"() <{level = 10 : i32, message = "btd,bsd->bts"}> : () -> ()
    %cst_81 = arith.constant dense<0.000000e+00> : vector<2x16x16xf32>
    %297 = tpu.matmul %295, %296, %cst_81 {dimension_numbers = #tpu.dot_dimension_numbers<[2], [2], [1], [1], [0, 0, 0, 1, 1, 1], [0], [0]>} : vector<2x16x8xf32>, vector<2x16x8xf32>, vector<2x16x16xf32> -> vector<2x16x16xf32>
    "tpu.trace_stop"() : () -> ()
    %cst_82 = arith.constant dense<0xFF800000> : vector<2x16xf32>
    %298 = vector.multi_reduction <maximumf>, %297, %cst_82 [2] : vector<2x16x16xf32> to vector<2x16xf32>
    %299 = vector.shape_cast %298 : vector<2x16xf32> to vector<2x16x1xf32>
    %300 = vector.broadcast %299 : vector<2x16x1xf32> to vector<2x16x16xf32>
    %301 = arith.subf %297, %300 : vector<2x16x16xf32>
    %302 = math.exp %301 : vector<2x16x16xf32>
    %cst_83 = arith.constant dense<0.000000e+00> : vector<2x16xf32>
    %303 = vector.multi_reduction <add>, %302, %cst_83 [2] : vector<2x16x16xf32> to vector<2x16xf32>
    %304 = vector.shape_cast %303 : vector<2x16xf32> to vector<2x16x1xf32>
    %305 = tpu.reciprocal %304 {approx = true} : vector<2x16x1xf32> -> vector<2x16x1xf32>
    %306 = vector.broadcast %305 : vector<2x16x1xf32> to vector<2x16x16xf32>
    %307 = arith.mulf %302, %306 : vector<2x16x16xf32>
    %308 = vector.extract_strided_slice %262 {offsets = [0, 0, 16], sizes = [2, 16, 8], strides = [1, 1, 1]} : vector<2x16x32xf32> to vector<2x16x8xf32>
    "tpu.trace_start"() <{level = 10 : i32, message = "bts,bsd->btd"}> : () -> ()
    %cst_84 = arith.constant dense<0.000000e+00> : vector<2x16x8xf32>
    %309 = tpu.matmul %307, %308, %cst_84 {dimension_numbers = #tpu.dot_dimension_numbers<[2], [1], [1], [2], [0, 0, 0, 1, 1, 2], [0], [0]>} : vector<2x16x16xf32>, vector<2x16x8xf32>, vector<2x16x8xf32> -> vector<2x16x8xf32>
    "tpu.trace_stop"() : () -> ()
    %310 = vector.shape_cast %309 : vector<2x16x8xf32> to vector<32x8xf32>
    %311 = vector.extract_strided_slice %258 {offsets = [0, 0, 24], sizes = [2, 16, 8], strides = [1, 1, 1]} : vector<2x16x32xf32> to vector<2x16x8xf32>
    %312 = vector.extract_strided_slice %260 {offsets = [0, 0, 24], sizes = [2, 16, 8], strides = [1, 1, 1]} : vector<2x16x32xf32> to vector<2x16x8xf32>
    "tpu.trace_start"() <{level = 10 : i32, message = "btd,bsd->bts"}> : () -> ()
    %cst_85 = arith.constant dense<0.000000e+00> : vector<2x16x16xf32>
    %313 = tpu.matmul %311, %312, %cst_85 {dimension_numbers = #tpu.dot_dimension_numbers<[2], [2], [1], [1], [0, 0, 0, 1, 1, 1], [0], [0]>} : vector<2x16x8xf32>, vector<2x16x8xf32>, vector<2x16x16xf32> -> vector<2x16x16xf32>
    "tpu.trace_stop"() : () -> ()
    %cst_86 = arith.constant dense<0xFF800000> : vector<2x16xf32>
    %314 = vector.multi_reduction <maximumf>, %313, %cst_86 [2] : vector<2x16x16xf32> to vector<2x16xf32>
    %315 = vector.shape_cast %314 : vector<2x16xf32> to vector<2x16x1xf32>
    %316 = vector.broadcast %315 : vector<2x16x1xf32> to vector<2x16x16xf32>
    %317 = arith.subf %313, %316 : vector<2x16x16xf32>
    %318 = math.exp %317 : vector<2x16x16xf32>
    %cst_87 = arith.constant dense<0.000000e+00> : vector<2x16xf32>
    %319 = vector.multi_reduction <add>, %318, %cst_87 [2] : vector<2x16x16xf32> to vector<2x16xf32>
    %320 = vector.shape_cast %319 : vector<2x16xf32> to vector<2x16x1xf32>
    %321 = tpu.reciprocal %320 {approx = true} : vector<2x16x1xf32> -> vector<2x16x1xf32>
    %322 = vector.broadcast %321 : vector<2x16x1xf32> to vector<2x16x16xf32>
    %323 = arith.mulf %318, %322 : vector<2x16x16xf32>
    %324 = vector.extract_strided_slice %262 {offsets = [0, 0, 24], sizes = [2, 16, 8], strides = [1, 1, 1]} : vector<2x16x32xf32> to vector<2x16x8xf32>
    "tpu.trace_start"() <{level = 10 : i32, message = "bts,bsd->btd"}> : () -> ()
    %cst_88 = arith.constant dense<0.000000e+00> : vector<2x16x8xf32>
    %325 = tpu.matmul %323, %324, %cst_88 {dimension_numbers = #tpu.dot_dimension_numbers<[2], [1], [1], [2], [0, 0, 0, 1, 1, 2], [0], [0]>} : vector<2x16x16xf32>, vector<2x16x8xf32>, vector<2x16x8xf32> -> vector<2x16x8xf32>
    "tpu.trace_stop"() : () -> ()
    %326 = vector.shape_cast %325 : vector<2x16x8xf32> to vector<32x8xf32>
    %327 = tpu.concatenate %278, %294, %310, %326 in 1 : vector<32x8xf32>, vector<32x8xf32>, vector<32x8xf32>, vector<32x8xf32> -> vector<32x32xf32>
    %328 = arith.truncf %327 : vector<32x32xf32> to vector<32x32xbf16>
    %329 = vector.extract_strided_slice %249 {offsets = [0, 96], sizes = [32, 32], strides = [1, 1]} : vector<32x192xbf16> to vector<32x32xbf16>
    %cst_89 = arith.constant dense<0.000000e+00> : vector<32x32xf32>
    %330 = tpu.matmul %328, %329, %cst_89 {dimension_numbers = #tpu.dot_dimension_numbers<[1], [0], [0], [1], [0, 0, 1, 1], [], []>} : vector<32x32xbf16>, vector<32x32xbf16>, vector<32x32xf32> -> vector<32x32xf32>
    %331 = vector.broadcast %241 : vector<1x32xf32> to vector<32x32xf32>
    %332 = arith.addf %330, %331 : vector<32x32xf32>
    %333 = arith.addf %231, %332 : vector<32x32xf32>
    %cst_90 = arith.constant dense<0.000000e+00> : vector<32xf32>
    %334 = vector.multi_reduction <add>, %333, %cst_90 [1] : vector<32x32xf32> to vector<32xf32>
    %335 = vector.shape_cast %334 : vector<32xf32> to vector<32x1xf32>
    %cst_91 = arith.constant 3.200000e+01 : f32
    %336 = vector.broadcast %cst_91 : f32 to vector<32x1xf32>
    %337 = arith.divf %335, %336 : vector<32x1xf32>
    %338 = vector.broadcast %337 : vector<32x1xf32> to vector<32x32xf32>
    %339 = arith.subf %333, %338 : vector<32x32xf32>
    %340 = arith.mulf %339, %339 : vector<32x32xf32>
    %cst_92 = arith.constant dense<0.000000e+00> : vector<32xf32>
    %341 = vector.multi_reduction <add>, %340, %cst_92 [1] : vector<32x32xf32> to vector<32xf32>
    %342 = vector.shape_cast %341 : vector<32xf32> to vector<32x1xf32>
    %cst_93 = arith.constant 3.200000e+01 : f32
    %343 = vector.broadcast %cst_93 : f32 to vector<32x1xf32>
    %344 = arith.divf %342, %343 : vector<32x1xf32>
    %345 = vector.broadcast %337 : vector<32x1xf32> to vector<32x32xf32>
    %346 = arith.subf %333, %345 : vector<32x32xf32>
    %cst_94 = arith.constant 9.99999974E-6 : f32
    %347 = vector.broadcast %cst_94 : f32 to vector<32x1xf32>
    %348 = arith.addf %344, %347 : vector<32x1xf32>
    %349 = math.rsqrt %348 : vector<32x1xf32>
    %350 = vector.broadcast %349 : vector<32x1xf32> to vector<32x32xf32>
    %351 = arith.mulf %346, %350 : vector<32x32xf32>
    %352 = vector.broadcast %242 : vector<1x32xf32> to vector<32x32xf32>
    %353 = arith.mulf %351, %352 : vector<32x32xf32>
    %354 = vector.broadcast %243 : vector<1x32xf32> to vector<32x32xf32>
    %355 = arith.addf %353, %354 : vector<32x32xf32>
    %356 = arith.truncf %355 : vector<32x32xf32> to vector<32x32xbf16>
    %357 = vector.extract_strided_slice %249 {offsets = [0, 128], sizes = [32, 64], strides = [1, 1]} : vector<32x192xbf16> to vector<32x64xbf16>
    %cst_95 = arith.constant dense<0.000000e+00> : vector<32x64xf32>
    %358 = tpu.matmul %356, %357, %cst_95 {dimension_numbers = #tpu.dot_dimension_numbers<[1], [0], [0], [1], [0, 0, 1, 1], [], []>} : vector<32x32xbf16>, vector<32x64xbf16>, vector<32x64xf32> -> vector<32x64xf32>
    %359 = vector.broadcast %244 : vector<1x64xf32> to vector<32x64xf32>
    %360 = arith.addf %358, %359 : vector<32x64xf32>
    %cst_96 = arith.constant 0.000000e+00 : f32
    %361 = vector.broadcast %cst_96 : f32 to vector<32x64xf32>
    %362 = arith.maximumf %360, %361 : vector<32x64xf32>
    %363 = arith.truncf %362 : vector<32x64xf32> to vector<32x64xbf16>
    %cst_97 = arith.constant dense<0.000000e+00> : vector<32x32xf32>
    %364 = tpu.matmul %363, %251, %cst_97 {dimension_numbers = #tpu.dot_dimension_numbers<[1], [0], [0], [1], [0, 0, 1, 1], [], []>} : vector<32x64xbf16>, vector<64x32xbf16>, vector<32x32xf32> -> vector<32x32xf32>
    %365 = vector.broadcast %245 : vector<1x32xf32> to vector<32x32xf32>
    %366 = arith.addf %364, %365 : vector<32x32xf32>
    %367 = vector.extract_strided_slice %366 {offsets = [0, 0], sizes = [8, 32], strides = [1, 1]} : vector<32x32xf32> to vector<8x32xf32>
    %368 = vector.extract_strided_slice %366 {offsets = [8, 0], sizes = [8, 32], strides = [1, 1]} : vector<32x32xf32> to vector<8x32xf32>
    %369 = vector.extract_strided_slice %366 {offsets = [16, 0], sizes = [8, 32], strides = [1, 1]} : vector<32x32xf32> to vector<8x32xf32>
    %370 = vector.extract_strided_slice %366 {offsets = [24, 0], sizes = [8, 32], strides = [1, 1]} : vector<32x32xf32> to vector<8x32xf32>
    %371 = tpu.concatenate %367, %368, %369, %370 in 1 : vector<8x32xf32>, vector<8x32xf32>, vector<8x32xf32>, vector<8x32xf32> -> vector<8x128xf32>
    %c3 = arith.constant 3 : index
    %c0_98 = arith.constant 0 : index
    %c0_99 = arith.constant 0 : index
    %372 = vector.load %arg5[%c3, %c0_98, %c0_99] : memref<4x8x128xf32, #tpu.memory_space<vmem>>, vector<1x8x128xf32>
    %373 = vector.shape_cast %372 : vector<1x8x128xf32> to vector<8x128xf32>
    %374 = vector.shape_cast %371 : vector<8x128xf32> to vector<1x8x128xf32>
    tpu.vector_store %arg5[%c3, %c0_98, %c0_99], %374 {strides = array<i32>} : memref<4x8x128xf32, #tpu.memory_space<vmem>>, vector<1x8x128xf32>,
    %375 = arith.addf %355, %366 : vector<32x32xf32>
    %cst_100 = arith.constant dense<0.000000e+00> : vector<32xf32>
    %376 = vector.multi_reduction <add>, %375, %cst_100 [1] : vector<32x32xf32> to vector<32xf32>
    %377 = vector.shape_cast %376 : vector<32xf32> to vector<32x1xf32>
    %cst_101 = arith.constant 3.200000e+01 : f32
    %378 = vector.broadcast %cst_101 : f32 to vector<32x1xf32>
    %379 = arith.divf %377, %378 : vector<32x1xf32>
    %380 = vector.broadcast %379 : vector<32x1xf32> to vector<32x32xf32>
    %381 = arith.subf %375, %380 : vector<32x32xf32>
    %382 = arith.mulf %381, %381 : vector<32x32xf32>
    %cst_102 = arith.constant dense<0.000000e+00> : vector<32xf32>
    %383 = vector.multi_reduction <add>, %382, %cst_102 [1] : vector<32x32xf32> to vector<32xf32>
    %384 = vector.shape_cast %383 : vector<32xf32> to vector<32x1xf32>
    %cst_103 = arith.constant 3.200000e+01 : f32
    %385 = vector.broadcast %cst_103 : f32 to vector<32x1xf32>
    %386 = arith.divf %384, %385 : vector<32x1xf32>
    %387 = vector.broadcast %379 : vector<32x1xf32> to vector<32x32xf32>
    %388 = arith.subf %375, %387 : vector<32x32xf32>
    %cst_104 = arith.constant 9.99999974E-6 : f32
    %389 = vector.broadcast %cst_104 : f32 to vector<32x1xf32>
    %390 = arith.addf %386, %389 : vector<32x1xf32>
    %391 = math.rsqrt %390 : vector<32x1xf32>
    %392 = vector.broadcast %391 : vector<32x1xf32> to vector<32x32xf32>
    %393 = arith.mulf %388, %392 : vector<32x32xf32>
    %394 = vector.broadcast %246 : vector<1x32xf32> to vector<32x32xf32>
    %395 = arith.mulf %393, %394 : vector<32x32xf32>
    %396 = vector.broadcast %247 : vector<1x32xf32> to vector<32x32xf32>
    %397 = arith.addf %395, %396 : vector<32x32xf32>
    %398 = vector.extract_strided_slice %397 {offsets = [0, 0], sizes = [8, 32], strides = [1, 1]} : vector<32x32xf32> to vector<8x32xf32>
    %399 = vector.extract_strided_slice %397 {offsets = [8, 0], sizes = [8, 32], strides = [1, 1]} : vector<32x32xf32> to vector<8x32xf32>
    %400 = vector.extract_strided_slice %397 {offsets = [16, 0], sizes = [8, 32], strides = [1, 1]} : vector<32x32xf32> to vector<8x32xf32>
    %401 = vector.extract_strided_slice %397 {offsets = [24, 0], sizes = [8, 32], strides = [1, 1]} : vector<32x32xf32> to vector<8x32xf32>
    %402 = tpu.concatenate %398, %399, %400, %401 in 1 : vector<8x32xf32>, vector<8x32xf32>, vector<8x32xf32>, vector<8x32xf32> -> vector<8x128xf32>
    %c1_105 = arith.constant 1 : index
    %c0_106 = arith.constant 0 : index
    %c0_107 = arith.constant 0 : index
    %403 = vector.load %arg5[%c1_105, %c0_106, %c0_107] : memref<4x8x128xf32, #tpu.memory_space<vmem>>, vector<1x8x128xf32>
    %404 = vector.shape_cast %403 : vector<1x8x128xf32> to vector<8x128xf32>
    %405 = vector.shape_cast %402 : vector<8x128xf32> to vector<1x8x128xf32>
    tpu.vector_store %arg5[%c1_105, %c0_106, %c0_107], %405 {strides = array<i32>} : memref<4x8x128xf32, #tpu.memory_space<vmem>>, vector<1x8x128xf32>,
    return
  }
}

</mosaic_0001>

<llo_original>
// kernel: tpu_custom_call.1
$region0: #{tpu_custom_call.1}
  #allocation0 [shape = 'u32[]', space=smem, size = 0x4, offset = 0x4, fixed_abs, tag = 'smem constant byte address 0x4 - core index']
  #allocation1 [shape = 'u32[144,128]{1,0:T(1,128)}', space=vmem, size = 0x12000, scoped, tag = 'internal scratch']
  %s0 = inlined_call_operand.vmem [shape: f32[32,128], index: 0, kind: input, shape index: {}]
  %s1 = inlined_call_operand.vmem [shape: f32[19,128], index: 1, kind: input, shape index: {}]
  %s2 = inlined_call_operand.vmem [shape: bf16[128,32], index: 2, kind: input, shape index: {}]
  %s3 = inlined_call_operand.vmem [shape: bf16[2,32,192], index: 3, kind: input, shape index: {}]
  %s4 = inlined_call_operand.vmem [shape: bf16[2,64,32], index: 4, kind: input, shape index: {}]
  %s5 = inlined_call_operand.hbm [shape: f32[4,8,128], index: 5, kind: output, shape index: {}]
  %s6 = sld [smem:[#allocation0]]
  $region30: #{tpu_custom_call.1} parent=0
    _
  %s8 = ssub.s32 1, %s6
  %s9 = scalar_select 0, %s8, %s6
  $region1: #{tpu_custom_call.1} parent=0
    #allocation2 [shape = 'u8[16384]{0}', space=vmem, size = 0x4000, scoped, tag = 'output window, operand 0, single buffered']
    #allocation3 [shape = 's32[1]{0}', space=sflag, size = 0x4, scoped, tag = 'scoped memory for tpu_custom_call.1']
    %10 = vsyncpa [#allocation3], 0
    // Predicated region
    $region2: #{tpu_custom_call.1} parent=1 // pred_check
      _
    $region3: #{tpu_custom_call.1} parent=1 // pred_check_branch
      %12 = sbr.rel (0) target = $region5
    $region4: #{tpu_custom_call.1} parent=1 // pred_region
      _
    $region5: #{tpu_custom_call.1} parent=1 // pred_fallthru
      _
    // Predicated region
    $region6: #{tpu_custom_call.1} parent=1 // pred_check
      _
    $region7: #{tpu_custom_call.1} parent=1 // pred_check_branch
      %14 = sbr.rel (0) target = $region9
    $region8: #{tpu_custom_call.1} parent=1 // pred_region
      _
    $region9: #{tpu_custom_call.1} parent=1 // pred_fallthru
      _
    // Predicated region
    $region10: #{tpu_custom_call.1} parent=1 // pred_check
      _
    $region11: #{tpu_custom_call.1} parent=1 // pred_check_branch
      %16 = sbr.rel (0) target = $region13
    $region12: #{tpu_custom_call.1} parent=1 // pred_region
      _
    $region13: #{tpu_custom_call.1} parent=1 // pred_fallthru
      _
    // Predicated region
    $region14: #{tpu_custom_call.1} parent=1 // pred_check
      _
    $region15: #{tpu_custom_call.1} parent=1 // pred_check_branch
      %18 = sbr.rel (0) target = $region17
    $region16: #{tpu_custom_call.1} parent=1 // pred_region
      _
    $region17: #{tpu_custom_call.1} parent=1 // pred_fallthru
      _
    // Predicated region
    $region18: #{tpu_custom_call.1} parent=1 // pred_check
      _
    $region19: #{tpu_custom_call.1} parent=1 // pred_check_branch
      %20 = sbr.rel (0) target = $region21
    $region20: #{tpu_custom_call.1} parent=1 // pred_region
      _
    $region21: #{tpu_custom_call.1} parent=1 // pred_fallthru
      _
    %v22 = vld [vmem:[%s0] sm:$0xff]
    %v23 = vld [vmem:[%s0 + $0x8] sm:$0xff]
    %v24 = vld [vmem:[%s0 + $0x10] sm:$0xff]
    %v25 = vld [vmem:[%s0 + $0x18] sm:$0xff]
    %v26 = vld [vmem:[%s1] sm:$0xff]
    %v27 = vld [vmem:[%s1 + $0x8] sm:$0xff]
    %v28 = vld [vmem:[%s1 + $0x10] sm:$0x7]
    %v29 = vpack.c.bf16 %v23, %v22
    %v30 = vpack.c.bf16 %v25, %v24
    %v31 = vld [vmem:[%s2] sm:$0xf]
    %v32 = vld [vmem:[%s2 + $0x4] sm:$0xf]
    %v33 = vld [vmem:[%s2 + $0x8] sm:$0xf]
    %v34 = vld [vmem:[%s2 + $0xc] sm:$0xf]
    %v35 = vld [vmem:[%s2 + $0x10] sm:$0xf]
    %v36 = vld [vmem:[%s2 + $0x14] sm:$0xf]
    %v37 = vld [vmem:[%s2 + $0x18] sm:$0xf]
    %v38 = vld [vmem:[%s2 + $0x1c] sm:$0xf]
    %v39 = vld [vmem:[%s2 + $0x20] sm:$0xf]
    %v40 = vld [vmem:[%s2 + $0x24] sm:$0xf]
    %v41 = vld [vmem:[%s2 + $0x28] sm:$0xf]
    %v42 = vld [vmem:[%s2 + $0x2c] sm:$0xf]
    %v43 = vld [vmem:[%s2 + $0x30] sm:$0xf]
    %v44 = vld [vmem:[%s2 + $0x34] sm:$0xf]
    %v45 = vld [vmem:[%s2 + $0x38] sm:$0xf]
    %v46 = vld [vmem:[%s2 + $0x3c] sm:$0xf]
    %v47 = vlaneseq
    %v48 = vshrl.u32 %v47, 7
    %v49 = vsub.s32 0, %v48
    %v50 = vrot.slane %v26, %v49
    %v67 = vunpack.c.l.b16 %v31
    %v68 = vunpack.c.l.b16 %v32
    %v69 = vunpack.c.l.b16 %v33
    %v70 = vunpack.c.l.b16 %v34
    %v71 = vunpack.c.l.b16 %v35
    %v72 = vunpack.c.l.b16 %v36
    %v73 = vunpack.c.l.b16 %v37
    %v74 = vunpack.c.l.b16 %v38
    %v75 = vunpack.c.l.b16 %v39
    %v76 = vunpack.c.l.b16 %v40
    %v77 = vunpack.c.l.b16 %v41
    %v78 = vunpack.c.l.b16 %v42
    %v79 = vunpack.c.l.b16 %v43
    %v80 = vunpack.c.l.b16 %v44
    %v81 = vunpack.c.l.b16 %v45
    %v82 = vunpack.c.l.b16 %v46
    %v83 = vpack.c.b16 %v68, %v67
    %v84 = vpack.c.b16 %v70, %v69
    %v85 = vpack.c.b16 %v72, %v71
    %v86 = vpack.c.b16 %v74, %v73
    %v87 = vpack.c.b16 %v76, %v75
    %v88 = vpack.c.b16 %v78, %v77
    %v89 = vpack.c.b16 %v80, %v79
    %v90 = vpack.c.b16 %v82, %v81
    %99 = vmatprep.subr.bf16.mxu0 0
    %100 = vmatpush1.bf16.msra.mxu0 %v83
    %101 = vmatprep.subr.bf16.mxu0 0
    %102 = vmatpush1.bf16.msra.mxu0 %v84
    %103 = vmatprep.subr.bf16.mxu0 0
    %104 = vmatpush1.bf16.msra.mxu0 %v85
    %105 = vmatprep.subr.bf16.mxu0 0
    %106 = vmatpush1.bf16.msra.mxu0 %v86
    %107 = vmatprep.subr.bf16.mxu0 0
    %108 = vmatpush1.bf16.msra.mxu0 %v87
    %109 = vmatprep.subr.bf16.mxu0 0
    %110 = vmatpush1.bf16.msra.mxu0 %v88
    %111 = vmatprep.subr.bf16.mxu0 0
    %112 = vmatpush1.bf16.msra.mxu0 %v89
    %113 = vmatprep.subr.bf16.mxu0 0
    %114 = vmatpush1.bf16.msra.mxu0 %v90
    %115 = vmatprep.subr.bf16.mxu0 0
    %116 = vmatpush1.bf16.msra.mxu0 0
    %117 = vmatprep.subr.bf16.mxu0 0
    %118 = vmatpush1.bf16.msra.mxu0 0
    %119 = vmatprep.subr.bf16.mxu0 0
    %120 = vmatpush1.bf16.msra.mxu0 0
    %121 = vmatprep.subr.bf16.mxu0 0
    %122 = vmatpush1.bf16.msra.mxu0 0
    %123 = vmatprep.subr.bf16.mxu0 0
    %124 = vmatpush1.bf16.msra.mxu0 0
    %125 = vmatprep.subr.bf16.mxu0 0
    %126 = vmatpush1.bf16.msra.mxu0 0
    %127 = vmatprep.subr.bf16.mxu0 0
    %128 = vmatpush1.bf16.msra.mxu0 0
    %129 = vmatprep.subr.bf16.mxu0 0
    %130 = vmatpush1.bf16.msra.mxu0 0
    %131 = vmatprep.mubr.bf16.mxu0 0
    %132 = vmatmul.mubr.bf16.gmra.mrb[0].mxu0 %v29
    %v133 = vpop.f32.mrb[0].mxu0
    %v134 = vadd.f32 %v50, %v133
    %v135 = vpop.f32.mrb[0].mxu0
    %v136 = vpop.f32.mrb[0].mxu0
    %v137 = vadd.f32 %v50, %v136
    %v138 = vpop.f32.mrb[0].mxu0
    %139 = vmatprep.mubr.bf16.mxu0 0
    %140 = vmatmul.mubr.bf16.gmra.mrb[0].mxu0 %v30
    %v141 = vpop.f32.mrb[0].mxu0
    %v142 = vadd.f32 %v50, %v141
    %v143 = vpop.f32.mrb[0].mxu0
    %v144 = vpop.f32.mrb[0].mxu0
    %v145 = vadd.f32 %v50, %v144
    %v146 = vpop.f32.mrb[0].mxu0
    %147 = vdwg.mxu0
    %v148 = vmul.f32 %v134, 0.5
    %v149 = vmul.f32 %v137, 0.5
    %v150 = vmul.f32 %v142, 0.5
    %v151 = vmul.f32 %v145, 0.5
    %v152 = vmul.f32 %v134, 0.70710677
    %v153 = vmul.f32 %v137, 0.70710677
    %v154 = vmul.f32 %v142, 0.70710677
    %v155 = vmul.f32 %v145, 0.70710677
    %v156 = vand.u32 2147483647, %v152
    %v157 = vand.u32 2147483647, %v153
    %v158 = vand.u32 2147483647, %v154
    %v159 = vand.u32 2147483647, %v155
    %v160 = vmul.f32 %v156, 0.3275911
    %v161 = vmul.f32 %v157, 0.3275911
    %v162 = vmul.f32 %v158, 0.3275911
    %v163 = vmul.f32 %v159, 0.3275911
    %v164 = vadd.f32 %v160, 1.0
    %v165 = vadd.f32 %v161, 1.0
    %v166 = vadd.f32 %v162, 1.0
    %v167 = vadd.f32 %v163, 1.0
    %v168 = vrcp.pop %v164
    %v169 = vmul.f32 1.0, %v168
    %v170 = vrcp.pop %v165
    %v171 = vmul.f32 1.0, %v170
    %v172 = vrcp.pop %v166
    %v173 = vmul.f32 1.0, %v172
    %v174 = vrcp.pop %v167
    %v175 = vmul.f32 1.0, %v174
    %v176 = vmul.f32 %v169, 1.0614054
    %v177 = vmul.f32 %v171, 1.0614054
    %v178 = vmul.f32 %v173, 1.0614054
    %v179 = vmul.f32 %v175, 1.0614054
    %v180 = vadd.f32 %v176, -1.4531521
    %v181 = vadd.f32 %v177, -1.4531521
    %v182 = vadd.f32 %v178, -1.4531521
    %v183 = vadd.f32 %v179, -1.4531521
    %v184 = vmul.f32 %v180, %v169
    %v185 = vmul.f32 %v181, %v171
    %v186 = vmul.f32 %v182, %v173
    %v187 = vmul.f32 %v183, %v175
    %v188 = vadd.f32 %v184, 1.4214138
    %v189 = vadd.f32 %v185, 1.4214138
    %v190 = vadd.f32 %v186, 1.4214138
    %v191 = vadd.f32 %v187, 1.4214138
    %v192 = vmul.f32 %v188, %v169
    %v193 = vmul.f32 %v189, %v171
    %v194 = vmul.f32 %v190, %v173
    %v195 = vmul.f32 %v191, %v175
    %v196 = vadd.f32 %v192, -0.28449672
    %v197 = vadd.f32 %v193, -0.28449672
    %v198 = vadd.f32 %v194, -0.28449672
    %v199 = vadd.f32 %v195, -0.28449672
    %v200 = vmul.f32 %v196, %v169
    %v201 = vmul.f32 %v197, %v171
    %v202 = vmul.f32 %v198, %v173
    %v203 = vmul.f32 %v199, %v175
    %v204 = vadd.f32 %v200, 0.2548296
    %v205 = vadd.f32 %v201, 0.2548296
    %v206 = vadd.f32 %v202, 0.2548296
    %v207 = vadd.f32 %v203, 0.2548296
    %v208 = vmul.f32 %v204, %v169
    %v209 = vmul.f32 %v205, %v171
    %v210 = vmul.f32 %v206, %v173
    %v211 = vmul.f32 %v207, %v175
    %v212 = vsub.f32 0.0, %v156
    %v213 = vsub.f32 0.0, %v157
    %v214 = vsub.f32 0.0, %v158
    %v215 = vsub.f32 0.0, %v159
    %v216 = vmul.f32 %v212, %v156
    %v217 = vmul.f32 %v213, %v157
    %v218 = vmul.f32 %v214, %v158
    %v219 = vmul.f32 %v215, %v159
    %v220 = vmul.f32 %v216, 1.442695
    %v221 = vpow.pop %v220
    %v222 = vmul.f32 %v217, 1.442695
    %v223 = vpow.pop %v222
    %v224 = vmul.f32 %v218, 1.442695
    %v225 = vpow.pop %v224
    %v226 = vmul.f32 %v219, 1.442695
    %v227 = vpow.pop %v226
    %v228 = vmul.f32 %v208, %v221
    %v229 = vmul.f32 %v209, %v223
    %v230 = vmul.f32 %v210, %v225
    %v231 = vmul.f32 %v211, %v227
    %v232 = vsub.f32 1.0, %v228
    %v233 = vsub.f32 1.0, %v229
    %v234 = vsub.f32 1.0, %v230
    %v235 = vsub.f32 1.0, %v231
    %vm236 = vcmp.ge.f32.partialorder %v152, 0.0
    %vm237 = vcmp.ge.f32.partialorder %v153, 0.0
    %vm238 = vcmp.ge.f32.partialorder %v154, 0.0
    %vm239 = vcmp.ge.f32.partialorder %v155, 0.0
    %v240 = vsub.f32 0.0, %v232
    %v241 = vsub.f32 0.0, %v233
    %v242 = vsub.f32 0.0, %v234
    %v243 = vsub.f32 0.0, %v235
    %v244 = vsel %vm236, %v232, %v240
    %v245 = vsel %vm237, %v233, %v241
    %v246 = vsel %vm238, %v234, %v242
    %v247 = vsel %vm239, %v235, %v243
    %v248 = vadd.f32 %v244, 1.0
    %v249 = vadd.f32 %v245, 1.0
    %v250 = vadd.f32 %v246, 1.0
    %v251 = vadd.f32 %v247, 1.0
    %v252 = vmul.f32 %v148, %v248
    %v253 = vmul.f32 %v149, %v249
    %v254 = vmul.f32 %v150, %v250
    %v255 = vmul.f32 %v151, %v251
    %260 = vrot.lane.b32.xlu0 %v252, 64
    %v261 = vpop.permute.xlu0 %260
    %262 = vrot.lane.b32.xlu0 %v253, 64
    %v263 = vpop.permute.xlu0 %262
    %264 = vrot.lane.b32.xlu0 %v254, 64
    %v265 = vpop.permute.xlu0 %264
    %266 = vrot.lane.b32.xlu0 %v255, 64
    %v267 = vpop.permute.xlu0 %266
    %v272 = vadd.f32 %v22, %v261
    %v273 = vadd.f32 %v23, %v263
    %v274 = vadd.f32 %v24, %v265
    %v275 = vadd.f32 %v25, %v267
    %280 = vrot.lane.b32.xlu0 %v272, 64
    %v281 = vpop.permute.xlu0 %280
    %282 = vrot.lane.b32.xlu0 %v273, 64
    %v283 = vpop.permute.xlu0 %282
    %284 = vrot.lane.b32.xlu0 %v274, 64
    %v285 = vpop.permute.xlu0 %284
    %286 = vrot.lane.b32.xlu0 %v275, 64
    %v287 = vpop.permute.xlu0 %286
    %vm292 = vcmask 261120
    %v293 = vsel %vm292, %v281, 0.0
    %294 = vadd.xlane.f32.xlu0 %v293
    %v295 = vpop.xlane.xlu0 %294
    %v296 = vsel %vm292, %v283, 0.0
    %297 = vadd.xlane.f32.xlu0 %v296
    %v298 = vpop.xlane.xlu0 %297
    %v299 = vsel %vm292, %v285, 0.0
    %300 = vadd.xlane.f32.xlu0 %v299
    %v301 = vpop.xlane.xlu0 %300
    %v302 = vsel %vm292, %v287, 0.0
    %303 = vadd.xlane.f32.xlu0 %v302
    %v304 = vpop.xlane.xlu0 %303
    %v305 = vrcp.pop 32.0
    %v306 = vmul.f32 %v295, %v305
    %v307 = vmul.f32 %v298, %v305
    %v308 = vmul.f32 %v301, %v305
    %v309 = vmul.f32 %v304, %v305
    %v310 = vsub.f32 %v272, %v306
    %v311 = vsub.f32 %v273, %v307
    %v312 = vsub.f32 %v274, %v308
    %v313 = vsub.f32 %v275, %v309
    %v314 = vmul.f32 %v310, %v310
    %v315 = vmul.f32 %v311, %v311
    %v316 = vmul.f32 %v312, %v312
    %v317 = vmul.f32 %v313, %v313
    %322 = vrot.lane.b32.xlu0 %v314, 64
    %v323 = vpop.permute.xlu0 %322
    %324 = vrot.lane.b32.xlu0 %v315, 64
    %v325 = vpop.permute.xlu0 %324
    %326 = vrot.lane.b32.xlu0 %v316, 64
    %v327 = vpop.permute.xlu0 %326
    %328 = vrot.lane.b32.xlu0 %v317, 64
    %v329 = vpop.permute.xlu0 %328
    %v334 = vsel %vm292, %v323, 0.0
    %335 = vadd.xlane.f32.xlu0 %v334
    %v336 = vpop.xlane.xlu0 %335
    %v337 = vsel %vm292, %v325, 0.0
    %338 = vadd.xlane.f32.xlu0 %v337
    %v339 = vpop.xlane.xlu0 %338
    %v340 = vsel %vm292, %v327, 0.0
    %341 = vadd.xlane.f32.xlu0 %v340
    %v342 = vpop.xlane.xlu0 %341
    %v343 = vsel %vm292, %v329, 0.0
    %344 = vadd.xlane.f32.xlu0 %v343
    %v345 = vpop.xlane.xlu0 %344
    %v346 = vmul.f32 %v336, %v305
    %v347 = vmul.f32 %v339, %v305
    %v348 = vmul.f32 %v342, %v305
    %v349 = vmul.f32 %v345, %v305
    %v350 = vadd.f32 %v346, 1e-05
    %v351 = vadd.f32 %v347, 1e-05
    %v352 = vadd.f32 %v348, 1e-05
    %v353 = vadd.f32 %v349, 1e-05
    %v354 = vrsqrt.pop %v350
    %v355 = vrsqrt.pop %v351
    %v356 = vrsqrt.pop %v352
    %v357 = vrsqrt.pop %v353
    %v358 = vmul.f32 %v310, %v354
    %v359 = vmul.f32 %v311, %v355
    %v360 = vmul.f32 %v312, %v356
    %v361 = vmul.f32 %v313, %v357
    %v362 = vlaneseq
    %v363 = vshrl.u32 %v362, 7
    %v364 = vsub.s32 1, %v363
    %v365 = vrot.slane %v26, %v364
    %367 = vrot.lane.b32.xlu0 %v365, 64
    %v368 = vpop.permute.xlu0 %367
    %v370 = vmul.f32 %v358, %v368
    %v371 = vmul.f32 %v359, %v368
    %v372 = vmul.f32 %v360, %v368
    %v373 = vmul.f32 %v361, %v368
    %v374 = vlaneseq
    %v375 = vshrl.u32 %v374, 7
    %v376 = vsub.s32 2, %v375
    %v377 = vrot.slane %v26, %v376
    %379 = vrot.lane.b32.xlu0 %v377, 64
    %v380 = vpop.permute.xlu0 %379
    %v382 = vadd.f32 %v370, %v380
    %v383 = vadd.f32 %v371, %v380
    %v384 = vadd.f32 %v372, %v380
    %v385 = vadd.f32 %v373, %v380
    %v386 = vld [vmem:[%s3] sm:$0xff]
    %v387 = vld [vmem:[%s3 + $0x8] sm:$0xff]
    %v388 = vld [vmem:[%s3 + $0x10] sm:$0xff]
    %v389 = vld [vmem:[%s3 + $0x18] sm:$0xff]
    %v390 = vld [vmem:[%s4] sm:$0xf]
    %v391 = vld [vmem:[%s4 + $0x4] sm:$0xf]
    %v392 = vld [vmem:[%s4 + $0x8] sm:$0xf]
    %v393 = vld [vmem:[%s4 + $0xc] sm:$0xf]
    %v394 = vld [vmem:[%s4 + $0x10] sm:$0xf]
    %v395 = vld [vmem:[%s4 + $0x14] sm:$0xf]
    %v396 = vld [vmem:[%s4 + $0x18] sm:$0xf]
    %v397 = vld [vmem:[%s4 + $0x1c] sm:$0xf]
    %v398 = vpack.c.bf16 %v383, %v382
    %v399 = vpack.c.bf16 %v385, %v384
    %v400 = vlaneseq
    %v401 = vshrl.u32 %v400, 7
    %v402 = vsub.s32 3, %v401
    %v403 = vrot.slane %v26, %v402
    %406 = vrot.lane.b32.xlu0 %v398, 64
    %v407 = vpop.permute.xlu0 %406
    %408 = vrot.lane.b32.xlu0 %v399, 64
    %v409 = vpop.permute.xlu0 %408
    %v414 = vunpack.c.l.b16 %v386
    %v415 = vunpack.c.l.b16 %v387
    %v416 = vunpack.c.l.b16 %v388
    %v417 = vunpack.c.l.b16 %v389
    %v418 = vpack.c.b16 %v415, %v414
    %v419 = vpack.c.b16 %v417, %v416
    %v423 = vsel %vm292, %v407, 0
    %v426 = vsel %vm292, %v409, 0
    %428 = vmatprep.subr.bf16.mxu0 0
    %429 = vmatpush1.bf16.msra.mxu0 %v418
    %430 = vmatprep.subr.bf16.mxu0 0
    %431 = vmatpush1.bf16.msra.mxu0 %v419
    %432 = vmatprep.subr.bf16.mxu0 0
    %433 = vmatpush1.bf16.msra.mxu0 0
    %434 = vmatprep.subr.bf16.mxu0 0
    %435 = vmatpush1.bf16.msra.mxu0 0
    %436 = vmatprep.subr.bf16.mxu0 0
    %437 = vmatpush1.bf16.msra.mxu0 0
    %438 = vmatprep.subr.bf16.mxu0 0
    %439 = vmatpush1.bf16.msra.mxu0 0
    %440 = vmatprep.subr.bf16.mxu0 0
    %441 = vmatpush1.bf16.msra.mxu0 0
    %442 = vmatprep.subr.bf16.mxu0 0
    %443 = vmatpush1.bf16.msra.mxu0 0
    %444 = vmatprep.subr.bf16.mxu0 0
    %445 = vmatpush1.bf16.msra.mxu0 0
    %446 = vmatprep.subr.bf16.mxu0 0
    %447 = vmatpush1.bf16.msra.mxu0 0
    %448 = vmatprep.subr.bf16.mxu0 0
    %449 = vmatpush1.bf16.msra.mxu0 0
    %450 = vmatprep.subr.bf16.mxu0 0
    %451 = vmatpush1.bf16.msra.mxu0 0
    %452 = vmatprep.subr.bf16.mxu0 0
    %453 = vmatpush1.bf16.msra.mxu0 0
    %454 = vmatprep.subr.bf16.mxu0 0
    %455 = vmatpush1.bf16.msra.mxu0 0
    %456 = vmatprep.subr.bf16.mxu0 0
    %457 = vmatpush1.bf16.msra.mxu0 0
    %458 = vmatprep.subr.bf16.mxu0 0
    %459 = vmatpush1.bf16.msra.mxu0 0
    %460 = vmatprep.mubr.bf16.mxu0 0
    %461 = vmatmul.mubr.bf16.gmra.mrb[0].mxu0 %v423
    %v462 = vpop.f32.mrb[0].mxu0
    %v463 = vadd.f32 %v403, %v462
    %v464 = vpop.f32.mrb[0].mxu0
    %v465 = vpop.f32.mrb[0].mxu0
    %v466 = vadd.f32 %v403, %v465
    %v467 = vpop.f32.mrb[0].mxu0
    %468 = vmatprep.mubr.bf16.mxu0 0
    %469 = vmatmul.mubr.bf16.gmra.mrb[0].mxu0 %v426
    %v470 = vpop.f32.mrb[0].mxu0
    %v471 = vadd.f32 %v403, %v470
    %v472 = vpop.f32.mrb[0].mxu0
    %v473 = vpop.f32.mrb[0].mxu0
    %v474 = vadd.f32 %v403, %v473
    %v475 = vpop.f32.mrb[0].mxu0
    %476 = vdwg.mxu0
    %479 = vrot.lane.b32.xlu0 %v463, 96
    %v480 = vpop.permute.xlu0 %479
    %481 = vrot.lane.b32.xlu0 %v466, 96
    %v482 = vpop.permute.xlu0 %481
    %vm483 = vcmask 64512
    %v484 = vsel %vm483, %v463, 0
    %v486 = vsel %vm483, %v466, 0
    %v488 = vsel %vm483, %v480, 0
    %v490 = vsel %vm483, %v482, 0
    %492 = vmatprep.subr.mxu0 0.0
    %493 = vmatpush1.xpose.msra.mxu0 %v488
    %494 = vmatprep.subr.mxu0 0.0
    %495 = vmatpush1.xpose.msra.mxu0 %v490
    %496 = vmatprep.subr.mxu0 0.0
    %497 = vmatpush1.xpose.msra.mxu0 0.0
    %498 = vmatprep.subr.mxu0 0.0
    %499 = vmatpush1.xpose.msra.mxu0 0.0
    %500 = vmatprep.subr.mxu0 0.0
    %501 = vmatpush1.xpose.msra.mxu0 0.0
    %502 = vmatprep.subr.mxu0 0.0
    %503 = vmatpush1.xpose.msra.mxu0 0.0
    %504 = vmatprep.subr.mxu0 0.0
    %505 = vmatpush1.xpose.msra.mxu0 0.0
    %506 = vmatprep.subr.mxu0 0.0
    %507 = vmatpush1.xpose.msra.mxu0 0.0
    %508 = vmatprep.subr.mxu0 0.0
    %509 = vmatpush1.xpose.msra.mxu0 0.0
    %510 = vmatprep.subr.mxu0 0.0
    %511 = vmatpush1.xpose.msra.mxu0 0.0
    %512 = vmatprep.subr.mxu0 0.0
    %513 = vmatpush1.xpose.msra.mxu0 0.0
    %514 = vmatprep.subr.mxu0 0.0
    %515 = vmatpush1.xpose.msra.mxu0 0.0
    %516 = vmatprep.subr.mxu0 0.0
    %517 = vmatpush1.xpose.msra.mxu0 0.0
    %518 = vmatprep.subr.mxu0 0.0
    %519 = vmatpush1.xpose.msra.mxu0 0.0
    %520 = vmatprep.subr.mxu0 0.0
    %521 = vmatpush1.xpose.msra.mxu0 0.0
    %522 = vmatprep.subr.mxu0 0.0
    %523 = vmatpush1.xpose.msra.mxu0 0.0
    %524 = vmatprep.subr.mxu0 0.0
    %525 = vmatpush1.xpose.msra.mxu0 0.0
    %526 = vmatprep.subr.mxu0 0.0
    %527 = vmatpush1.xpose.msra.mxu0 0.0
    %528 = vmatprep.subr.mxu0 0.0
    %529 = vmatpush1.xpose.msra.mxu0 0.0
    %530 = vmatprep.subr.mxu0 0.0
    %531 = vmatpush1.xpose.msra.mxu0 0.0
    %532 = vmatprep.subr.mxu0 0.0
    %533 = vmatpush1.xpose.msra.mxu0 0.0
    %534 = vmatprep.subr.mxu0 0.0
    %535 = vmatpush1.xpose.msra.mxu0 0.0
    %536 = vmatprep.subr.mxu0 0.0
    %537 = vmatpush1.xpose.msra.mxu0 0.0
    %538 = vmatprep.subr.mxu0 0.0
    %539 = vmatpush1.xpose.msra.mxu0 0.0
    %540 = vmatprep.subr.mxu0 0.0
    %541 = vmatpush1.xpose.msra.mxu0 0.0
    %542 = vmatprep.subr.mxu0 0.0
    %543 = vmatpush1.xpose.msra.mxu0 0.0
    %544 = vmatprep.subr.mxu0 0.0
    %545 = vmatpush1.xpose.msra.mxu0 0.0
    %546 = vmatprep.subr.mxu0 0.0
    %547 = vmatpush1.xpose.msra.mxu0 0.0
    %548 = vmatprep.subr.mxu0 0.0
    %549 = vmatpush1.xpose.msra.mxu0 0.0
    %550 = vmatprep.subr.mxu0 0.0
    %551 = vmatpush1.xpose.msra.mxu0 0.0
    %552 = vmatprep.subr.mxu0 0.0
    %553 = vmatpush1.xpose.msra.mxu0 0.0
    %554 = vmatprep.subr.mxu0 0.0
    %555 = vmatpush1.xpose.msra.mxu0 0.0
    %556 = vmatprep.mubr.f32.mxu0 0.0
    %557 = vmatmul.mubr.f32.gmra.mrb[0].mxu0 %v484
    %v558 = vpop.f32.mrb[0].mxu0
    %v559 = vadd.f32 0.0, %v558
    %v560 = vpop.f32.mrb[0].mxu0
    %561 = vmatprep.mubr.f32.mxu0 0.0
    %562 = vmatmul.mubr.f32.gmra.mrb[0].mxu0 %v486
    %v563 = vpop.f32.mrb[0].mxu0
    %v564 = vadd.f32 0.0, %v563
    %v565 = vpop.f32.mrb[0].mxu0
    %566 = vdwg.mxu0
    %569 = vrot.lane.b32.xlu0 %v471, 96
    %v570 = vpop.permute.xlu0 %569
    %571 = vrot.lane.b32.xlu0 %v474, 96
    %v572 = vpop.permute.xlu0 %571
    %v573 = vsel %vm483, %v471, 0
    %v575 = vsel %vm483, %v474, 0
    %v577 = vsel %vm483, %v570, 0
    %v579 = vsel %vm483, %v572, 0
    %581 = vmatprep.subr.mxu0 0.0
    %582 = vmatpush1.xpose.msra.mxu0 %v577
    %583 = vmatprep.subr.mxu0 0.0
    %584 = vmatpush1.xpose.msra.mxu0 %v579
    %585 = vmatprep.subr.mxu0 0.0
    %586 = vmatpush1.xpose.msra.mxu0 0.0
    %587 = vmatprep.subr.mxu0 0.0
    %588 = vmatpush1.xpose.msra.mxu0 0.0
    %589 = vmatprep.subr.mxu0 0.0
    %590 = vmatpush1.xpose.msra.mxu0 0.0
    %591 = vmatprep.subr.mxu0 0.0
    %592 = vmatpush1.xpose.msra.mxu0 0.0
    %593 = vmatprep.subr.mxu0 0.0
    %594 = vmatpush1.xpose.msra.mxu0 0.0
    %595 = vmatprep.subr.mxu0 0.0
    %596 = vmatpush1.xpose.msra.mxu0 0.0
    %597 = vmatprep.subr.mxu0 0.0
    %598 = vmatpush1.xpose.msra.mxu0 0.0
    %599 = vmatprep.subr.mxu0 0.0
    %600 = vmatpush1.xpose.msra.mxu0 0.0
    %601 = vmatprep.subr.mxu0 0.0
    %602 = vmatpush1.xpose.msra.mxu0 0.0
    %603 = vmatprep.subr.mxu0 0.0
    %604 = vmatpush1.xpose.msra.mxu0 0.0
    %605 = vmatprep.subr.mxu0 0.0
    %606 = vmatpush1.xpose.msra.mxu0 0.0
    %607 = vmatprep.subr.mxu0 0.0
    %608 = vmatpush1.xpose.msra.mxu0 0.0
    %609 = vmatprep.subr.mxu0 0.0
    %610 = vmatpush1.xpose.msra.mxu0 0.0
    %611 = vmatprep.subr.mxu0 0.0
    %612 = vmatpush1.xpose.msra.mxu0 0.0
    %613 = vmatprep.subr.mxu0 0.0
    %614 = vmatpush1.xpose.msra.mxu0 0.0
    %615 = vmatprep.subr.mxu0 0.0
    %616 = vmatpush1.xpose.msra.mxu0 0.0
    %617 = vmatprep.subr.mxu0 0.0
    %618 = vmatpush1.xpose.msra.mxu0 0.0
    %619 = vmatprep.subr.mxu0 0.0
    %620 = vmatpush1.xpose.msra.mxu0 0.0
    %621 = vmatprep.subr.mxu0 0.0
    %622 = vmatpush1.xpose.msra.mxu0 0.0
    %623 = vmatprep.subr.mxu0 0.0
    %624 = vmatpush1.xpose.msra.mxu0 0.0
    %625 = vmatprep.subr.mxu0 0.0
    %626 = vmatpush1.xpose.msra.mxu0 0.0
    %627 = vmatprep.subr.mxu0 0.0
    %628 = vmatpush1.xpose.msra.mxu0 0.0
    %629 = vmatprep.subr.mxu0 0.0
    %630 = vmatpush1.xpose.msra.mxu0 0.0
    %631 = vmatprep.subr.mxu0 0.0
    %632 = vmatpush1.xpose.msra.mxu0 0.0
    %633 = vmatprep.subr.mxu0 0.0
    %634 = vmatpush1.xpose.msra.mxu0 0.0
    %635 = vmatprep.subr.mxu0 0.0
    %636 = vmatpush1.xpose.msra.mxu0 0.0
    %637 = vmatprep.subr.mxu0 0.0
    %638 = vmatpush1.xpose.msra.mxu0 0.0
    %639 = vmatprep.subr.mxu0 0.0
    %640 = vmatpush1.xpose.msra.mxu0 0.0
    %641 = vmatprep.subr.mxu0 0.0
    %642 = vmatpush1.xpose.msra.mxu0 0.0
    %643 = vmatprep.subr.mxu0 0.0
    %644 = vmatpush1.xpose.msra.mxu0 0.0
    %645 = vmatprep.mubr.f32.mxu0 0.0
    %646 = vmatmul.mubr.f32.gmra.mrb[0].mxu0 %v573
    %v647 = vpop.f32.mrb[0].mxu0
    %v648 = vadd.f32 0.0, %v647
    %v649 = vpop.f32.mrb[0].mxu0
    %650 = vmatprep.mubr.f32.mxu0 0.0
    %651 = vmatmul.mubr.f32.gmra.mrb[0].mxu0 %v575
    %v652 = vpop.f32.mrb[0].mxu0
    %v653 = vadd.f32 0.0, %v652
    %v654 = vpop.f32.mrb[0].mxu0
    %655 = vdwg.mxu0
    %vm656 = vcmask 130048
    %v657 = vsel %vm656, %v559, -inf
    %658 = vmax.xlane.f32.xlu0 %v657
    %v659 = vpop.xlane.xlu0 %658
    %v660 = vsel %vm656, %v564, -inf
    %661 = vmax.xlane.f32.xlu0 %v660
    %v662 = vpop.xlane.xlu0 %661
    %v663 = vsel %vm656, %v648, -inf
    %664 = vmax.xlane.f32.xlu0 %v663
    %v665 = vpop.xlane.xlu0 %664
    %v666 = vsel %vm656, %v653, -inf
    %667 = vmax.xlane.f32.xlu0 %v666
    %v668 = vpop.xlane.xlu0 %667
    %v669 = vsub.f32 %v559, %v659
    %v670 = vsub.f32 %v564, %v662
    %v671 = vsub.f32 %v648, %v665
    %v672 = vsub.f32 %v653, %v668
    %v673 = vmul.f32 %v669, 1.442695
    %v674 = vpow.pop %v673
    %v675 = vmul.f32 %v670, 1.442695
    %v676 = vpow.pop %v675
    %v677 = vmul.f32 %v671, 1.442695
    %v678 = vpow.pop %v677
    %v679 = vmul.f32 %v672, 1.442695
    %v680 = vpow.pop %v679
    %v681 = vsel %vm656, %v674, 0.0
    %682 = vadd.xlane.f32.xlu0 %v681
    %v683 = vpop.xlane.xlu0 %682
    %v684 = vsel %vm656, %v676, 0.0
    %685 = vadd.xlane.f32.xlu0 %v684
    %v686 = vpop.xlane.xlu0 %685
    %v687 = vsel %vm656, %v678, 0.0
    %688 = vadd.xlane.f32.xlu0 %v687
    %v689 = vpop.xlane.xlu0 %688
    %v690 = vsel %vm656, %v680, 0.0
    %691 = vadd.xlane.f32.xlu0 %v690
    %v692 = vpop.xlane.xlu0 %691
    %v693 = vrcp.pop %v683
    %v694 = vrcp.pop %v686
    %v695 = vrcp.pop %v689
    %v696 = vrcp.pop %v692
    %v697 = vmul.f32 %v674, %v693
    %v698 = vmul.f32 %v676, %v694
    %v699 = vmul.f32 %v678, %v695
    %v700 = vmul.f32 %v680, %v696
    %701 = vrot.lane.b32.xlu0 %v463, 64
    %v702 = vpop.permute.xlu0 %701
    %703 = vrot.lane.b32.xlu0 %v466, 64
    %v704 = vpop.permute.xlu0 %703
    %v708 = vsel %vm656, %v697, 0
    %v711 = vsel %vm656, %v698, 0
    %713 = vmatprep.subr.mxu0 0.0
    %714 = vmatpush1.msra.mxu0 %v702
    %715 = vmatprep.subr.mxu0 0.0
    %716 = vmatpush1.msra.mxu0 %v704
    %717 = vmatprep.subr.mxu0 0.0
    %718 = vmatpush1.msra.mxu0 0.0
    %719 = vmatprep.subr.mxu0 0.0
    %720 = vmatpush1.msra.mxu0 0.0
    %721 = vmatprep.subr.mxu0 0.0
    %722 = vmatpush1.msra.mxu0 0.0
    %723 = vmatprep.subr.mxu0 0.0
    %724 = vmatpush1.msra.mxu0 0.0
    %725 = vmatprep.subr.mxu0 0.0
    %726 = vmatpush1.msra.mxu0 0.0
    %727 = vmatprep.subr.mxu0 0.0
    %728 = vmatpush1.msra.mxu0 0.0
    %729 = vmatprep.subr.mxu0 0.0
    %730 = vmatpush1.msra.mxu0 0.0
    %731 = vmatprep.subr.mxu0 0.0
    %732 = vmatpush1.msra.mxu0 0.0
    %733 = vmatprep.subr.mxu0 0.0
    %734 = vmatpush1.msra.mxu0 0.0
    %735 = vmatprep.subr.mxu0 0.0
    %736 = vmatpush1.msra.mxu0 0.0
    %737 = vmatprep.subr.mxu0 0.0
    %738 = vmatpush1.msra.mxu0 0.0
    %739 = vmatprep.subr.mxu0 0.0
    %740 = vmatpush1.msra.mxu0 0.0
    %741 = vmatprep.subr.mxu0 0.0
    %742 = vmatpush1.msra.mxu0 0.0
    %743 = vmatprep.subr.mxu0 0.0
    %744 = vmatpush1.msra.mxu0 0.0
    %745 = vmatprep.subr.mxu0 0.0
    %746 = vmatpush1.msra.mxu0 0.0
    %747 = vmatprep.subr.mxu0 0.0
    %748 = vmatpush1.msra.mxu0 0.0
    %749 = vmatprep.subr.mxu0 0.0
    %750 = vmatpush1.msra.mxu0 0.0
    %751 = vmatprep.subr.mxu0 0.0
    %752 = vmatpush1.msra.mxu0 0.0
    %753 = vmatprep.subr.mxu0 0.0
    %754 = vmatpush1.msra.mxu0 0.0
    %755 = vmatprep.subr.mxu0 0.0
    %756 = vmatpush1.msra.mxu0 0.0
    %757 = vmatprep.subr.mxu0 0.0
    %758 = vmatpush1.msra.mxu0 0.0
    %759 = vmatprep.subr.mxu0 0.0
    %760 = vmatpush1.msra.mxu0 0.0
    %761 = vmatprep.subr.mxu0 0.0
    %762 = vmatpush1.msra.mxu0 0.0
    %763 = vmatprep.subr.mxu0 0.0
    %764 = vmatpush1.msra.mxu0 0.0
    %765 = vmatprep.subr.mxu0 0.0
    %766 = vmatpush1.msra.mxu0 0.0
    %767 = vmatprep.subr.mxu0 0.0
    %768 = vmatpush1.msra.mxu0 0.0
    %769 = vmatprep.subr.mxu0 0.0
    %770 = vmatpush1.msra.mxu0 0.0
    %771 = vmatprep.subr.mxu0 0.0
    %772 = vmatpush1.msra.mxu0 0.0
    %773 = vmatprep.subr.mxu0 0.0
    %774 = vmatpush1.msra.mxu0 0.0
    %775 = vmatprep.subr.mxu0 0.0
    %776 = vmatpush1.msra.mxu0 0.0
    %777 = vmatprep.mubr.f32.mxu0 0.0
    %778 = vmatmul.mubr.f32.gmra.mrb[0].mxu0 %v708
    %v779 = vpop.f32.mrb[0].mxu0
    %v780 = vadd.f32 0.0, %v779
    %v781 = vpop.f32.mrb[0].mxu0
    %782 = vmatprep.mubr.f32.mxu0 0.0
    %783 = vmatmul.mubr.f32.gmra.mrb[0].mxu0 %v711
    %v784 = vpop.f32.mrb[0].mxu0
    %v785 = vadd.f32 0.0, %v784
    %v786 = vpop.f32.mrb[0].mxu0
    %787 = vdwg.mxu0
    %788 = vrot.lane.b32.xlu0 %v471, 64
    %v789 = vpop.permute.xlu0 %788
    %790 = vrot.lane.b32.xlu0 %v474, 64
    %v791 = vpop.permute.xlu0 %790
    %v795 = vsel %vm656, %v699, 0
    %v798 = vsel %vm656, %v700, 0
    %800 = vmatprep.subr.mxu0 0.0
    %801 = vmatpush1.msra.mxu0 %v789
    %802 = vmatprep.subr.mxu0 0.0
    %803 = vmatpush1.msra.mxu0 %v791
    %804 = vmatprep.subr.mxu0 0.0
    %805 = vmatpush1.msra.mxu0 0.0
    %806 = vmatprep.subr.mxu0 0.0
    %807 = vmatpush1.msra.mxu0 0.0
    %808 = vmatprep.subr.mxu0 0.0
    %809 = vmatpush1.msra.mxu0 0.0
    %810 = vmatprep.subr.mxu0 0.0
    %811 = vmatpush1.msra.mxu0 0.0
    %812 = vmatprep.subr.mxu0 0.0
    %813 = vmatpush1.msra.mxu0 0.0
    %814 = vmatprep.subr.mxu0 0.0
    %815 = vmatpush1.msra.mxu0 0.0
    %816 = vmatprep.subr.mxu0 0.0
    %817 = vmatpush1.msra.mxu0 0.0
    %818 = vmatprep.subr.mxu0 0.0
    %819 = vmatpush1.msra.mxu0 0.0
    %820 = vmatprep.subr.mxu0 0.0
    %821 = vmatpush1.msra.mxu0 0.0
    %822 = vmatprep.subr.mxu0 0.0
    %823 = vmatpush1.msra.mxu0 0.0
    %824 = vmatprep.subr.mxu0 0.0
    %825 = vmatpush1.msra.mxu0 0.0
    %826 = vmatprep.subr.mxu0 0.0
    %827 = vmatpush1.msra.mxu0 0.0
    %828 = vmatprep.subr.mxu0 0.0
    %829 = vmatpush1.msra.mxu0 0.0
    %830 = vmatprep.subr.mxu0 0.0
    %831 = vmatpush1.msra.mxu0 0.0
    %832 = vmatprep.subr.mxu0 0.0
    %833 = vmatpush1.msra.mxu0 0.0
    %834 = vmatprep.subr.mxu0 0.0
    %835 = vmatpush1.msra.mxu0 0.0
    %836 = vmatprep.subr.mxu0 0.0
    %837 = vmatpush1.msra.mxu0 0.0
    %838 = vmatprep.subr.mxu0 0.0
    %839 = vmatpush1.msra.mxu0 0.0
    %840 = vmatprep.subr.mxu0 0.0
    %841 = vmatpush1.msra.mxu0 0.0
    %842 = vmatprep.subr.mxu0 0.0
    %843 = vmatpush1.msra.mxu0 0.0
    %844 = vmatprep.subr.mxu0 0.0
    %845 = vmatpush1.msra.mxu0 0.0
    %846 = vmatprep.subr.mxu0 0.0
    %847 = vmatpush1.msra.mxu0 0.0
    %848 = vmatprep.subr.mxu0 0.0
    %849 = vmatpush1.msra.mxu0 0.0
    %850 = vmatprep.subr.mxu0 0.0
    %851 = vmatpush1.msra.mxu0 0.0
    %852 = vmatprep.subr.mxu0 0.0
    %853 = vmatpush1.msra.mxu0 0.0
    %854 = vmatprep.subr.mxu0 0.0
    %855 = vmatpush1.msra.mxu0 0.0
    %856 = vmatprep.subr.mxu0 0.0
    %857 = vmatpush1.msra.mxu0 0.0
    %858 = vmatprep.subr.mxu0 0.0
    %859 = vmatpush1.msra.mxu0 0.0
    %860 = vmatprep.subr.mxu0 0.0
    %861 = vmatpush1.msra.mxu0 0.0
    %862 = vmatprep.subr.mxu0 0.0
    %863 = vmatpush1.msra.mxu0 0.0
    %864 = vmatprep.mubr.f32.mxu0 0.0
    %865 = vmatmul.mubr.f32.gmra.mrb[0].mxu0 %v795
    %v866 = vpop.f32.mrb[0].mxu0
    %v867 = vadd.f32 0.0, %v866
    %v868 = vpop.f32.mrb[0].mxu0
    %869 = vmatprep.mubr.f32.mxu0 0.0
    %870 = vmatmul.mubr.f32.gmra.mrb[0].mxu0 %v798
    %v871 = vpop.f32.mrb[0].mxu0
    %v872 = vadd.f32 0.0, %v871
    %v873 = vpop.f32.mrb[0].mxu0
    %874 = vdwg.mxu0
    %875 = vrot.lane.b32.xlu0 %v463, 120
    %v876 = vpop.permute.xlu0 %875
    %877 = vrot.lane.b32.xlu0 %v466, 120
    %v878 = vpop.permute.xlu0 %877
    %879 = vrot.lane.b32.xlu0 %v463, 88
    %v880 = vpop.permute.xlu0 %879
    %881 = vrot.lane.b32.xlu0 %v466, 88
    %v882 = vpop.permute.xlu0 %881
    %v883 = vsel %vm483, %v876, 0
    %v885 = vsel %vm483, %v878, 0
    %v887 = vsel %vm483, %v880, 0
    %v889 = vsel %vm483, %v882, 0
    %891 = vmatprep.subr.mxu0 0.0
    %892 = vmatpush1.xpose.msra.mxu0 %v887
    %893 = vmatprep.subr.mxu0 0.0
    %894 = vmatpush1.xpose.msra.mxu0 %v889
    %895 = vmatprep.subr.mxu0 0.0
    %896 = vmatpush1.xpose.msra.mxu0 0.0
    %897 = vmatprep.subr.mxu0 0.0
    %898 = vmatpush1.xpose.msra.mxu0 0.0
    %899 = vmatprep.subr.mxu0 0.0
    %900 = vmatpush1.xpose.msra.mxu0 0.0
    %901 = vmatprep.subr.mxu0 0.0
    %902 = vmatpush1.xpose.msra.mxu0 0.0
    %903 = vmatprep.subr.mxu0 0.0
    %904 = vmatpush1.xpose.msra.mxu0 0.0
    %905 = vmatprep.subr.mxu0 0.0
    %906 = vmatpush1.xpose.msra.mxu0 0.0
    %907 = vmatprep.subr.mxu0 0.0
    %908 = vmatpush1.xpose.msra.mxu0 0.0
    %909 = vmatprep.subr.mxu0 0.0
    %910 = vmatpush1.xpose.msra.mxu0 0.0
    %911 = vmatprep.subr.mxu0 0.0
    %912 = vmatpush1.xpose.msra.mxu0 0.0
    %913 = vmatprep.subr.mxu0 0.0
    %914 = vmatpush1.xpose.msra.mxu0 0.0
    %915 = vmatprep.subr.mxu0 0.0
    %916 = vmatpush1.xpose.msra.mxu0 0.0
    %917 = vmatprep.subr.mxu0 0.0
    %918 = vmatpush1.xpose.msra.mxu0 0.0
    %919 = vmatprep.subr.mxu0 0.0
    %920 = vmatpush1.xpose.msra.mxu0 0.0
    %921 = vmatprep.subr.mxu0 0.0
    %922 = vmatpush1.xpose.msra.mxu0 0.0
    %923 = vmatprep.subr.mxu0 0.0
    %924 = vmatpush1.xpose.msra.mxu0 0.0
    %925 = vmatprep.subr.mxu0 0.0
    %926 = vmatpush1.xpose.msra.mxu0 0.0
    %927 = vmatprep.subr.mxu0 0.0
    %928 = vmatpush1.xpose.msra.mxu0 0.0
    %929 = vmatprep.subr.mxu0 0.0
    %930 = vmatpush1.xpose.msra.mxu0 0.0
    %931 = vmatprep.subr.mxu0 0.0
    %932 = vmatpush1.xpose.msra.mxu0 0.0
    %933 = vmatprep.subr.mxu0 0.0
    %934 = vmatpush1.xpose.msra.mxu0 0.0
    %935 = vmatprep.subr.mxu0 0.0
    %936 = vmatpush1.xpose.msra.mxu0 0.0
    %937 = vmatprep.subr.mxu0 0.0
    %938 = vmatpush1.xpose.msra.mxu0 0.0
    %939 = vmatprep.subr.mxu0 0.0
    %940 = vmatpush1.xpose.msra.mxu0 0.0
    %941 = vmatprep.subr.mxu0 0.0
    %942 = vmatpush1.xpose.msra.mxu0 0.0
    %943 = vmatprep.subr.mxu0 0.0
    %944 = vmatpush1.xpose.msra.mxu0 0.0
    %945 = vmatprep.subr.mxu0 0.0
    %946 = vmatpush1.xpose.msra.mxu0 0.0
    %947 = vmatprep.subr.mxu0 0.0
    %948 = vmatpush1.xpose.msra.mxu0 0.0
    %949 = vmatprep.subr.mxu0 0.0
    %950 = vmatpush1.xpose.msra.mxu0 0.0
    %951 = vmatprep.subr.mxu0 0.0
    %952 = vmatpush1.xpose.msra.mxu0 0.0
    %953 = vmatprep.subr.mxu0 0.0
    %954 = vmatpush1.xpose.msra.mxu0 0.0
    %955 = vmatprep.mubr.f32.mxu0 0.0
    %956 = vmatmul.mubr.f32.gmra.mrb[0].mxu0 %v883
    %v957 = vpop.f32.mrb[0].mxu0
    %v958 = vadd.f32 0.0, %v957
    %v959 = vpop.f32.mrb[0].mxu0
    %960 = vmatprep.mubr.f32.mxu0 0.0
    %961 = vmatmul.mubr.f32.gmra.mrb[0].mxu0 %v885
    %v962 = vpop.f32.mrb[0].mxu0
    %v963 = vadd.f32 0.0, %v962
    %v964 = vpop.f32.mrb[0].mxu0
    %965 = vdwg.mxu0
    %966 = vrot.lane.b32.xlu0 %v471, 120
    %v967 = vpop.permute.xlu0 %966
    %968 = vrot.lane.b32.xlu0 %v474, 120
    %v969 = vpop.permute.xlu0 %968
    %970 = vrot.lane.b32.xlu0 %v471, 88
    %v971 = vpop.permute.xlu0 %970
    %972 = vrot.lane.b32.xlu0 %v474, 88
    %v973 = vpop.permute.xlu0 %972
    %v974 = vsel %vm483, %v967, 0
    %v976 = vsel %vm483, %v969, 0
    %v978 = vsel %vm483, %v971, 0
    %v980 = vsel %vm483, %v973, 0
    %982 = vmatprep.subr.mxu0 0.0
    %983 = vmatpush1.xpose.msra.mxu0 %v978
    %984 = vmatprep.subr.mxu0 0.0
    %985 = vmatpush1.xpose.msra.mxu0 %v980
    %986 = vmatprep.subr.mxu0 0.0
    %987 = vmatpush1.xpose.msra.mxu0 0.0
    %988 = vmatprep.subr.mxu0 0.0
    %989 = vmatpush1.xpose.msra.mxu0 0.0
    %990 = vmatprep.subr.mxu0 0.0
    %991 = vmatpush1.xpose.msra.mxu0 0.0
    %992 = vmatprep.subr.mxu0 0.0
    %993 = vmatpush1.xpose.msra.mxu0 0.0
    %994 = vmatprep.subr.mxu0 0.0
    %995 = vmatpush1.xpose.msra.mxu0 0.0
    %996 = vmatprep.subr.mxu0 0.0
    %997 = vmatpush1.xpose.msra.mxu0 0.0
    %998 = vmatprep.subr.mxu0 0.0
    %999 = vmatpush1.xpose.msra.mxu0 0.0
    %1000 = vmatprep.subr.mxu0 0.0
    %1001 = vmatpush1.xpose.msra.mxu0 0.0
    %1002 = vmatprep.subr.mxu0 0.0
    %1003 = vmatpush1.xpose.msra.mxu0 0.0
    %1004 = vmatprep.subr.mxu0 0.0
    %1005 = vmatpush1.xpose.msra.mxu0 0.0
    %1006 = vmatprep.subr.mxu0 0.0
    %1007 = vmatpush1.xpose.msra.mxu0 0.0
    %1008 = vmatprep.subr.mxu0 0.0
    %1009 = vmatpush1.xpose.msra.mxu0 0.0
    %1010 = vmatprep.subr.mxu0 0.0
    %1011 = vmatpush1.xpose.msra.mxu0 0.0
    %1012 = vmatprep.subr.mxu0 0.0
    %1013 = vmatpush1.xpose.msra.mxu0 0.0
    %1014 = vmatprep.subr.mxu0 0.0
    %1015 = vmatpush1.xpose.msra.mxu0 0.0
    %1016 = vmatprep.subr.mxu0 0.0
    %1017 = vmatpush1.xpose.msra.mxu0 0.0
    %1018 = vmatprep.subr.mxu0 0.0
    %1019 = vmatpush1.xpose.msra.mxu0 0.0
    %1020 = vmatprep.subr.mxu0 0.0
    %1021 = vmatpush1.xpose.msra.mxu0 0.0
    %1022 = vmatprep.subr.mxu0 0.0
    %1023 = vmatpush1.xpose.msra.mxu0 0.0
    %1024 = vmatprep.subr.mxu0 0.0
    %1025 = vmatpush1.xpose.msra.mxu0 0.0
    %1026 = vmatprep.subr.mxu0 0.0
    %1027 = vmatpush1.xpose.msra.mxu0 0.0
    %1028 = vmatprep.subr.mxu0 0.0
    %1029 = vmatpush1.xpose.msra.mxu0 0.0
    %1030 = vmatprep.subr.mxu0 0.0
    %1031 = vmatpush1.xpose.msra.mxu0 0.0
    %1032 = vmatprep.subr.mxu0 0.0
    %1033 = vmatpush1.xpose.msra.mxu0 0.0
    %1034 = vmatprep.subr.mxu0 0.0
    %1035 = vmatpush1.xpose.msra.mxu0 0.0
    %1036 = vmatprep.subr.mxu0 0.0
    %1037 = vmatpush1.xpose.msra.mxu0 0.0
    %1038 = vmatprep.subr.mxu0 0.0
    %1039 = vmatpush1.xpose.msra.mxu0 0.0
    %1040 = vmatprep.subr.mxu0 0.0
    %1041 = vmatpush1.xpose.msra.mxu0 0.0
    %1042 = vmatprep.subr.mxu0 0.0
    %1043 = vmatpush1.xpose.msra.mxu0 0.0
    %1044 = vmatprep.subr.mxu0 0.0
    %1045 = vmatpush1.xpose.msra.mxu0 0.0
    %1046 = vmatprep.mubr.f32.mxu0 0.0
    %1047 = vmatmul.mubr.f32.gmra.mrb[0].mxu0 %v974
    %v1048 = vpop.f32.mrb[0].mxu0
    %v1049 = vadd.f32 0.0, %v1048
    %v1050 = vpop.f32.mrb[0].mxu0
    %1051 = vmatprep.mubr.f32.mxu0 0.0
    %1052 = vmatmul.mubr.f32.gmra.mrb[0].mxu0 %v976
    %v1053 = vpop.f32.mrb[0].mxu0
    %v1054 = vadd.f32 0.0, %v1053
    %v1055 = vpop.f32.mrb[0].mxu0
    %1056 = vdwg.mxu0
    %v1057 = vsel %vm656, %v958, -inf
    %1058 = vmax.xlane.f32.xlu0 %v1057
    %v1059 = vpop.xlane.xlu0 %1058
    %v1060 = vsel %vm656, %v963, -inf
    %1061 = vmax.xlane.f32.xlu0 %v1060
    %v1062 = vpop.xlane.xlu0 %1061
    %v1063 = vsel %vm656, %v1049, -inf
    %1064 = vmax.xlane.f32.xlu0 %v1063
    %v1065 = vpop.xlane.xlu0 %1064
    %v1066 = vsel %vm656, %v1054, -inf
    %1067 = vmax.xlane.f32.xlu0 %v1066
    %v1068 = vpop.xlane.xlu0 %1067
    %v1069 = vsub.f32 %v958, %v1059
    %v1070 = vsub.f32 %v963, %v1062
    %v1071 = vsub.f32 %v1049, %v1065
    %v1072 = vsub.f32 %v1054, %v1068
    %v1073 = vmul.f32 %v1069, 1.442695
    %v1074 = vpow.pop %v1073
    %v1075 = vmul.f32 %v1070, 1.442695
    %v1076 = vpow.pop %v1075
    %v1077 = vmul.f32 %v1071, 1.442695
    %v1078 = vpow.pop %v1077
    %v1079 = vmul.f32 %v1072, 1.442695
    %v1080 = vpow.pop %v1079
    %v1081 = vsel %vm656, %v1074, 0.0
    %1082 = vadd.xlane.f32.xlu0 %v1081
    %v1083 = vpop.xlane.xlu0 %1082
    %v1084 = vsel %vm656, %v1076, 0.0
    %1085 = vadd.xlane.f32.xlu0 %v1084
    %v1086 = vpop.xlane.xlu0 %1085
    %v1087 = vsel %vm656, %v1078, 0.0
    %1088 = vadd.xlane.f32.xlu0 %v1087
    %v1089 = vpop.xlane.xlu0 %1088
    %v1090 = vsel %vm656, %v1080, 0.0
    %1091 = vadd.xlane.f32.xlu0 %v1090
    %v1092 = vpop.xlane.xlu0 %1091
    %v1093 = vrcp.pop %v1083
    %v1094 = vrcp.pop %v1086
    %v1095 = vrcp.pop %v1089
    %v1096 = vrcp.pop %v1092
    %v1097 = vmul.f32 %v1074, %v1093
    %v1098 = vmul.f32 %v1076, %v1094
    %v1099 = vmul.f32 %v1078, %v1095
    %v1100 = vmul.f32 %v1080, %v1096
    %1101 = vrot.lane.b32.xlu0 %v463, 56
    %v1102 = vpop.permute.xlu0 %1101
    %1103 = vrot.lane.b32.xlu0 %v466, 56
    %v1104 = vpop.permute.xlu0 %1103
    %v1108 = vsel %vm656, %v1097, 0
    %v1111 = vsel %vm656, %v1098, 0
    %1113 = vmatprep.subr.mxu0 0.0
    %1114 = vmatpush1.msra.mxu0 %v1102
    %1115 = vmatprep.subr.mxu0 0.0
    %1116 = vmatpush1.msra.mxu0 %v1104
    %1117 = vmatprep.subr.mxu0 0.0
    %1118 = vmatpush1.msra.mxu0 0.0
    %1119 = vmatprep.subr.mxu0 0.0
    %1120 = vmatpush1.msra.mxu0 0.0
    %1121 = vmatprep.subr.mxu0 0.0
    %1122 = vmatpush1.msra.mxu0 0.0
    %1123 = vmatprep.subr.mxu0 0.0
    %1124 = vmatpush1.msra.mxu0 0.0
    %1125 = vmatprep.subr.mxu0 0.0
    %1126 = vmatpush1.msra.mxu0 0.0
    %1127 = vmatprep.subr.mxu0 0.0
    %1128 = vmatpush1.msra.mxu0 0.0
    %1129 = vmatprep.subr.mxu0 0.0
    %1130 = vmatpush1.msra.mxu0 0.0
    %1131 = vmatprep.subr.mxu0 0.0
    %1132 = vmatpush1.msra.mxu0 0.0
    %1133 = vmatprep.subr.mxu0 0.0
    %1134 = vmatpush1.msra.mxu0 0.0
    %1135 = vmatprep.subr.mxu0 0.0
    %1136 = vmatpush1.msra.mxu0 0.0
    %1137 = vmatprep.subr.mxu0 0.0
    %1138 = vmatpush1.msra.mxu0 0.0
    %1139 = vmatprep.subr.mxu0 0.0
    %1140 = vmatpush1.msra.mxu0 0.0
    %1141 = vmatprep.subr.mxu0 0.0
    %1142 = vmatpush1.msra.mxu0 0.0
    %1143 = vmatprep.subr.mxu0 0.0
    %1144 = vmatpush1.msra.mxu0 0.0
    %1145 = vmatprep.subr.mxu0 0.0
    %1146 = vmatpush1.msra.mxu0 0.0
    %1147 = vmatprep.subr.mxu0 0.0
    %1148 = vmatpush1.msra.mxu0 0.0
    %1149 = vmatprep.subr.mxu0 0.0
    %1150 = vmatpush1.msra.mxu0 0.0
    %1151 = vmatprep.subr.mxu0 0.0
    %1152 = vmatpush1.msra.mxu0 0.0
    %1153 = vmatprep.subr.mxu0 0.0
    %1154 = vmatpush1.msra.mxu0 0.0
    %1155 = vmatprep.subr.mxu0 0.0
    %1156 = vmatpush1.msra.mxu0 0.0
    %1157 = vmatprep.subr.mxu0 0.0
    %1158 = vmatpush1.msra.mxu0 0.0
    %1159 = vmatprep.subr.mxu0 0.0
    %1160 = vmatpush1.msra.mxu0 0.0
    %1161 = vmatprep.subr.mxu0 0.0
    %1162 = vmatpush1.msra.mxu0 0.0
    %1163 = vmatprep.subr.mxu0 0.0
    %1164 = vmatpush1.msra.mxu0 0.0
    %1165 = vmatprep.subr.mxu0 0.0
    %1166 = vmatpush1.msra.mxu0 0.0
    %1167 = vmatprep.subr.mxu0 0.0
    %1168 = vmatpush1.msra.mxu0 0.0
    %1169 = vmatprep.subr.mxu0 0.0
    %1170 = vmatpush1.msra.mxu0 0.0
    %1171 = vmatprep.subr.mxu0 0.0
    %1172 = vmatpush1.msra.mxu0 0.0
    %1173 = vmatprep.subr.mxu0 0.0
    %1174 = vmatpush1.msra.mxu0 0.0
    %1175 = vmatprep.subr.mxu0 0.0
    %1176 = vmatpush1.msra.mxu0 0.0
    %1177 = vmatprep.mubr.f32.mxu0 0.0
    %1178 = vmatmul.mubr.f32.gmra.mrb[0].mxu0 %v1108
    %v1179 = vpop.f32.mrb[0].mxu0
    %v1180 = vadd.f32 0.0, %v1179
    %v1181 = vpop.f32.mrb[0].mxu0
    %1182 = vmatprep.mubr.f32.mxu0 0.0
    %1183 = vmatmul.mubr.f32.gmra.mrb[0].mxu0 %v1111
    %v1184 = vpop.f32.mrb[0].mxu0
    %v1185 = vadd.f32 0.0, %v1184
    %v1186 = vpop.f32.mrb[0].mxu0
    %1187 = vdwg.mxu0
    %1188 = vrot.lane.b32.xlu0 %v471, 56
    %v1189 = vpop.permute.xlu0 %1188
    %1190 = vrot.lane.b32.xlu0 %v474, 56
    %v1191 = vpop.permute.xlu0 %1190
    %v1195 = vsel %vm656, %v1099, 0
    %v1198 = vsel %vm656, %v1100, 0
    %1200 = vmatprep.subr.mxu0 0.0
    %1201 = vmatpush1.msra.mxu0 %v1189
    %1202 = vmatprep.subr.mxu0 0.0
    %1203 = vmatpush1.msra.mxu0 %v1191
    %1204 = vmatprep.subr.mxu0 0.0
    %1205 = vmatpush1.msra.mxu0 0.0
    %1206 = vmatprep.subr.mxu0 0.0
    %1207 = vmatpush1.msra.mxu0 0.0
    %1208 = vmatprep.subr.mxu0 0.0
    %1209 = vmatpush1.msra.mxu0 0.0
    %1210 = vmatprep.subr.mxu0 0.0
    %1211 = vmatpush1.msra.mxu0 0.0
    %1212 = vmatprep.subr.mxu0 0.0
    %1213 = vmatpush1.msra.mxu0 0.0
    %1214 = vmatprep.subr.mxu0 0.0
    %1215 = vmatpush1.msra.mxu0 0.0
    %1216 = vmatprep.subr.mxu0 0.0
    %1217 = vmatpush1.msra.mxu0 0.0
    %1218 = vmatprep.subr.mxu0 0.0
    %1219 = vmatpush1.msra.mxu0 0.0
    %1220 = vmatprep.subr.mxu0 0.0
    %1221 = vmatpush1.msra.mxu0 0.0
    %1222 = vmatprep.subr.mxu0 0.0
    %1223 = vmatpush1.msra.mxu0 0.0
    %1224 = vmatprep.subr.mxu0 0.0
    %1225 = vmatpush1.msra.mxu0 0.0
    %1226 = vmatprep.subr.mxu0 0.0
    %1227 = vmatpush1.msra.mxu0 0.0
    %1228 = vmatprep.subr.mxu0 0.0
    %1229 = vmatpush1.msra.mxu0 0.0
    %1230 = vmatprep.subr.mxu0 0.0
    %1231 = vmatpush1.msra.mxu0 0.0
    %1232 = vmatprep.subr.mxu0 0.0
    %1233 = vmatpush1.msra.mxu0 0.0
    %1234 = vmatprep.subr.mxu0 0.0
    %1235 = vmatpush1.msra.mxu0 0.0
    %1236 = vmatprep.subr.mxu0 0.0
    %1237 = vmatpush1.msra.mxu0 0.0
    %1238 = vmatprep.subr.mxu0 0.0
    %1239 = vmatpush1.msra.mxu0 0.0
    %1240 = vmatprep.subr.mxu0 0.0
    %1241 = vmatpush1.msra.mxu0 0.0
    %1242 = vmatprep.subr.mxu0 0.0
    %1243 = vmatpush1.msra.mxu0 0.0
    %1244 = vmatprep.subr.mxu0 0.0
    %1245 = vmatpush1.msra.mxu0 0.0
    %1246 = vmatprep.subr.mxu0 0.0
    %1247 = vmatpush1.msra.mxu0 0.0
    %1248 = vmatprep.subr.mxu0 0.0
    %1249 = vmatpush1.msra.mxu0 0.0
    %1250 = vmatprep.subr.mxu0 0.0
    %1251 = vmatpush1.msra.mxu0 0.0
    %1252 = vmatprep.subr.mxu0 0.0
    %1253 = vmatpush1.msra.mxu0 0.0
    %1254 = vmatprep.subr.mxu0 0.0
    %1255 = vmatpush1.msra.mxu0 0.0
    %1256 = vmatprep.subr.mxu0 0.0
    %1257 = vmatpush1.msra.mxu0 0.0
    %1258 = vmatprep.subr.mxu0 0.0
    %1259 = vmatpush1.msra.mxu0 0.0
    %1260 = vmatprep.subr.mxu0 0.0
    %1261 = vmatpush1.msra.mxu0 0.0
    %1262 = vmatprep.subr.mxu0 0.0
    %1263 = vmatpush1.msra.mxu0 0.0
    %1264 = vmatprep.mubr.f32.mxu0 0.0
    %1265 = vmatmul.mubr.f32.gmra.mrb[0].mxu0 %v1195
    %v1266 = vpop.f32.mrb[0].mxu0
    %v1267 = vadd.f32 0.0, %v1266
    %v1268 = vpop.f32.mrb[0].mxu0
    %1269 = vmatprep.mubr.f32.mxu0 0.0
    %1270 = vmatmul.mubr.f32.gmra.mrb[0].mxu0 %v1198
    %v1271 = vpop.f32.mrb[0].mxu0
    %v1272 = vadd.f32 0.0, %v1271
    %v1273 = vpop.f32.mrb[0].mxu0
    %1274 = vdwg.mxu0
    %1275 = vrot.lane.b32.xlu0 %v463, 112
    %v1276 = vpop.permute.xlu0 %1275
    %1277 = vrot.lane.b32.xlu0 %v466, 112
    %v1278 = vpop.permute.xlu0 %1277
    %1279 = vrot.lane.b32.xlu0 %v463, 80
    %v1280 = vpop.permute.xlu0 %1279
    %1281 = vrot.lane.b32.xlu0 %v466, 80
    %v1282 = vpop.permute.xlu0 %1281
    %v1283 = vsel %vm483, %v1276, 0
    %v1285 = vsel %vm483, %v1278, 0
    %v1287 = vsel %vm483, %v1280, 0
    %v1289 = vsel %vm483, %v1282, 0
    %1291 = vmatprep.subr.mxu0 0.0
    %1292 = vmatpush1.xpose.msra.mxu0 %v1287
    %1293 = vmatprep.subr.mxu0 0.0
    %1294 = vmatpush1.xpose.msra.mxu0 %v1289
    %1295 = vmatprep.subr.mxu0 0.0
    %1296 = vmatpush1.xpose.msra.mxu0 0.0
    %1297 = vmatprep.subr.mxu0 0.0
    %1298 = vmatpush1.xpose.msra.mxu0 0.0
    %1299 = vmatprep.subr.mxu0 0.0
    %1300 = vmatpush1.xpose.msra.mxu0 0.0
    %1301 = vmatprep.subr.mxu0 0.0
    %1302 = vmatpush1.xpose.msra.mxu0 0.0
    %1303 = vmatprep.subr.mxu0 0.0
    %1304 = vmatpush1.xpose.msra.mxu0 0.0
    %1305 = vmatprep.subr.mxu0 0.0
    %1306 = vmatpush1.xpose.msra.mxu0 0.0
    %1307 = vmatprep.subr.mxu0 0.0
    %1308 = vmatpush1.xpose.msra.mxu0 0.0
    %1309 = vmatprep.subr.mxu0 0.0
    %1310 = vmatpush1.xpose.msra.mxu0 0.0
    %1311 = vmatprep.subr.mxu0 0.0
    %1312 = vmatpush1.xpose.msra.mxu0 0.0
    %1313 = vmatprep.subr.mxu0 0.0
    %1314 = vmatpush1.xpose.msra.mxu0 0.0
    %1315 = vmatprep.subr.mxu0 0.0
    %1316 = vmatpush1.xpose.msra.mxu0 0.0
    %1317 = vmatprep.subr.mxu0 0.0
    %1318 = vmatpush1.xpose.msra.mxu0 0.0
    %1319 = vmatprep.subr.mxu0 0.0
    %1320 = vmatpush1.xpose.msra.mxu0 0.0
    %1321 = vmatprep.subr.mxu0 0.0
    %1322 = vmatpush1.xpose.msra.mxu0 0.0
    %1323 = vmatprep.subr.mxu0 0.0
    %1324 = vmatpush1.xpose.msra.mxu0 0.0
    %1325 = vmatprep.subr.mxu0 0.0
    %1326 = vmatpush1.xpose.msra.mxu0 0.0
    %1327 = vmatprep.subr.mxu0 0.0
    %1328 = vmatpush1.xpose.msra.mxu0 0.0
    %1329 = vmatprep.subr.mxu0 0.0
    %1330 = vmatpush1.xpose.msra.mxu0 0.0
    %1331 = vmatprep.subr.mxu0 0.0
    %1332 = vmatpush1.xpose.msra.mxu0 0.0
    %1333 = vmatprep.subr.mxu0 0.0
    %1334 = vmatpush1.xpose.msra.mxu0 0.0
    %1335 = vmatprep.subr.mxu0 0.0
    %1336 = vmatpush1.xpose.msra.mxu0 0.0
    %1337 = vmatprep.subr.mxu0 0.0
    %1338 = vmatpush1.xpose.msra.mxu0 0.0
    %1339 = vmatprep.subr.mxu0 0.0
    %1340 = vmatpush1.xpose.msra.mxu0 0.0
    %1341 = vmatprep.subr.mxu0 0.0
    %1342 = vmatpush1.xpose.msra.mxu0 0.0
    %1343 = vmatprep.subr.mxu0 0.0
    %1344 = vmatpush1.xpose.msra.mxu0 0.0
    %1345 = vmatprep.subr.mxu0 0.0
    %1346 = vmatpush1.xpose.msra.mxu0 0.0
    %1347 = vmatprep.subr.mxu0 0.0
    %1348 = vmatpush1.xpose.msra.mxu0 0.0
    %1349 = vmatprep.subr.mxu0 0.0
    %1350 = vmatpush1.xpose.msra.mxu0 0.0
    %1351 = vmatprep.subr.mxu0 0.0
    %1352 = vmatpush1.xpose.msra.mxu0 0.0
    %1353 = vmatprep.subr.mxu0 0.0
    %1354 = vmatpush1.xpose.msra.mxu0 0.0
    %1355 = vmatprep.mubr.f32.mxu0 0.0
    %1356 = vmatmul.mubr.f32.gmra.mrb[0].mxu0 %v1283
    %v1357 = vpop.f32.mrb[0].mxu0
    %v1358 = vadd.f32 0.0, %v1357
    %v1359 = vpop.f32.mrb[0].mxu0
    %1360 = vmatprep.mubr.f32.mxu0 0.0
    %1361 = vmatmul.mubr.f32.gmra.mrb[0].mxu0 %v1285
    %v1362 = vpop.f32.mrb[0].mxu0
    %v1363 = vadd.f32 0.0, %v1362
    %v1364 = vpop.f32.mrb[0].mxu0
    %1365 = vdwg.mxu0
    %1366 = vrot.lane.b32.xlu0 %v471, 112
    %v1367 = vpop.permute.xlu0 %1366
    %1368 = vrot.lane.b32.xlu0 %v474, 112
    %v1369 = vpop.permute.xlu0 %1368
    %1370 = vrot.lane.b32.xlu0 %v471, 80
    %v1371 = vpop.permute.xlu0 %1370
    %1372 = vrot.lane.b32.xlu0 %v474, 80
    %v1373 = vpop.permute.xlu0 %1372
    %v1374 = vsel %vm483, %v1367, 0
    %v1376 = vsel %vm483, %v1369, 0
    %v1378 = vsel %vm483, %v1371, 0
    %v1380 = vsel %vm483, %v1373, 0
    %1382 = vmatprep.subr.mxu0 0.0
    %1383 = vmatpush1.xpose.msra.mxu0 %v1378
    %1384 = vmatprep.subr.mxu0 0.0
    %1385 = vmatpush1.xpose.msra.mxu0 %v1380
    %1386 = vmatprep.subr.mxu0 0.0
    %1387 = vmatpush1.xpose.msra.mxu0 0.0
    %1388 = vmatprep.subr.mxu0 0.0
    %1389 = vmatpush1.xpose.msra.mxu0 0.0
    %1390 = vmatprep.subr.mxu0 0.0
    %1391 = vmatpush1.xpose.msra.mxu0 0.0
    %1392 = vmatprep.subr.mxu0 0.0
    %1393 = vmatpush1.xpose.msra.mxu0 0.0
    %1394 = vmatprep.subr.mxu0 0.0
    %1395 = vmatpush1.xpose.msra.mxu0 0.0
    %1396 = vmatprep.subr.mxu0 0.0
    %1397 = vmatpush1.xpose.msra.mxu0 0.0
    %1398 = vmatprep.subr.mxu0 0.0
    %1399 = vmatpush1.xpose.msra.mxu0 0.0
    %1400 = vmatprep.subr.mxu0 0.0
    %1401 = vmatpush1.xpose.msra.mxu0 0.0
    %1402 = vmatprep.subr.mxu0 0.0
    %1403 = vmatpush1.xpose.msra.mxu0 0.0
    %1404 = vmatprep.subr.mxu0 0.0
    %1405 = vmatpush1.xpose.msra.mxu0 0.0
    %1406 = vmatprep.subr.mxu0 0.0
    %1407 = vmatpush1.xpose.msra.mxu0 0.0
    %1408 = vmatprep.subr.mxu0 0.0
    %1409 = vmatpush1.xpose.msra.mxu0 0.0
    %1410 = vmatprep.subr.mxu0 0.0
    %1411 = vmatpush1.xpose.msra.mxu0 0.0
    %1412 = vmatprep.subr.mxu0 0.0
    %1413 = vmatpush1.xpose.msra.mxu0 0.0
    %1414 = vmatprep.subr.mxu0 0.0
    %1415 = vmatpush1.xpose.msra.mxu0 0.0
    %1416 = vmatprep.subr.mxu0 0.0
    %1417 = vmatpush1.xpose.msra.mxu0 0.0
    %1418 = vmatprep.subr.mxu0 0.0
    %1419 = vmatpush1.xpose.msra.mxu0 0.0
    %1420 = vmatprep.subr.mxu0 0.0
    %1421 = vmatpush1.xpose.msra.mxu0 0.0
    %1422 = vmatprep.subr.mxu0 0.0
    %1423 = vmatpush1.xpose.msra.mxu0 0.0
    %1424 = vmatprep.subr.mxu0 0.0
    %1425 = vmatpush1.xpose.msra.mxu0 0.0
    %1426 = vmatprep.subr.mxu0 0.0
    %1427 = vmatpush1.xpose.msra.mxu0 0.0
    %1428 = vmatprep.subr.mxu0 0.0
    %1429 = vmatpush1.xpose.msra.mxu0 0.0
    %1430 = vmatprep.subr.mxu0 0.0
    %1431 = vmatpush1.xpose.msra.mxu0 0.0
    %1432 = vmatprep.subr.mxu0 0.0
    %1433 = vmatpush1.xpose.msra.mxu0 0.0
    %1434 = vmatprep.subr.mxu0 0.0
    %1435 = vmatpush1.xpose.msra.mxu0 0.0
    %1436 = vmatprep.subr.mxu0 0.0
    %1437 = vmatpush1.xpose.msra.mxu0 0.0
    %1438 = vmatprep.subr.mxu0 0.0
    %1439 = vmatpush1.xpose.msra.mxu0 0.0
    %1440 = vmatprep.subr.mxu0 0.0
    %1441 = vmatpush1.xpose.msra.mxu0 0.0
    %1442 = vmatprep.subr.mxu0 0.0
    %1443 = vmatpush1.xpose.msra.mxu0 0.0
    %1444 = vmatprep.subr.mxu0 0.0
    %1445 = vmatpush1.xpose.msra.mxu0 0.0
    %1446 = vmatprep.mubr.f32.mxu0 0.0
    %1447 = vmatmul.mubr.f32.gmra.mrb[0].mxu0 %v1374
    %v1448 = vpop.f32.mrb[0].mxu0
    %v1449 = vadd.f32 0.0, %v1448
    %v1450 = vpop.f32.mrb[0].mxu0
    %1451 = vmatprep.mubr.f32.mxu0 0.0
    %1452 = vmatmul.mubr.f32.gmra.mrb[0].mxu0 %v1376
    %v1453 = vpop.f32.mrb[0].mxu0
    %v1454 = vadd.f32 0.0, %v1453
    %v1455 = vpop.f32.mrb[0].mxu0
    %1456 = vdwg.mxu0
    %v1457 = vsel %vm656, %v1358, -inf
    %1458 = vmax.xlane.f32.xlu0 %v1457
    %v1459 = vpop.xlane.xlu0 %1458
    %v1460 = vsel %vm656, %v1363, -inf
    %1461 = vmax.xlane.f32.xlu0 %v1460
    %v1462 = vpop.xlane.xlu0 %1461
    %v1463 = vsel %vm656, %v1449, -inf
    %1464 = vmax.xlane.f32.xlu0 %v1463
    %v1465 = vpop.xlane.xlu0 %1464
    %v1466 = vsel %vm656, %v1454, -inf
    %1467 = vmax.xlane.f32.xlu0 %v1466
    %v1468 = vpop.xlane.xlu0 %1467
    %v1469 = vsub.f32 %v1358, %v1459
    %v1470 = vsub.f32 %v1363, %v1462
    %v1471 = vsub.f32 %v1449, %v1465
    %v1472 = vsub.f32 %v1454, %v1468
    %v1473 = vmul.f32 %v1469, 1.442695
    %v1474 = vpow.pop %v1473
    %v1475 = vmul.f32 %v1470, 1.442695
    %v1476 = vpow.pop %v1475
    %v1477 = vmul.f32 %v1471, 1.442695
    %v1478 = vpow.pop %v1477
    %v1479 = vmul.f32 %v1472, 1.442695
    %v1480 = vpow.pop %v1479
    %v1481 = vsel %vm656, %v1474, 0.0
    %1482 = vadd.xlane.f32.xlu0 %v1481
    %v1483 = vpop.xlane.xlu0 %1482
    %v1484 = vsel %vm656, %v1476, 0.0
    %1485 = vadd.xlane.f32.xlu0 %v1484
    %v1486 = vpop.xlane.xlu0 %1485
    %v1487 = vsel %vm656, %v1478, 0.0
    %1488 = vadd.xlane.f32.xlu0 %v1487
    %v1489 = vpop.xlane.xlu0 %1488
    %v1490 = vsel %vm656, %v1480, 0.0
    %1491 = vadd.xlane.f32.xlu0 %v1490
    %v1492 = vpop.xlane.xlu0 %1491
    %v1493 = vrcp.pop %v1483
    %v1494 = vrcp.pop %v1486
    %v1495 = vrcp.pop %v1489
    %v1496 = vrcp.pop %v1492
    %v1497 = vmul.f32 %v1474, %v1493
    %v1498 = vmul.f32 %v1476, %v1494
    %v1499 = vmul.f32 %v1478, %v1495
    %v1500 = vmul.f32 %v1480, %v1496
    %1501 = vrot.lane.b32.xlu0 %v463, 48
    %v1502 = vpop.permute.xlu0 %1501
    %1503 = vrot.lane.b32.xlu0 %v466, 48
    %v1504 = vpop.permute.xlu0 %1503
    %v1508 = vsel %vm656, %v1497, 0
    %v1511 = vsel %vm656, %v1498, 0
    %1513 = vmatprep.subr.mxu0 0.0
    %1514 = vmatpush1.msra.mxu0 %v1502
    %1515 = vmatprep.subr.mxu0 0.0
    %1516 = vmatpush1.msra.mxu0 %v1504
    %1517 = vmatprep.subr.mxu0 0.0
    %1518 = vmatpush1.msra.mxu0 0.0
    %1519 = vmatprep.subr.mxu0 0.0
    %1520 = vmatpush1.msra.mxu0 0.0
    %1521 = vmatprep.subr.mxu0 0.0
    %1522 = vmatpush1.msra.mxu0 0.0
    %1523 = vmatprep.subr.mxu0 0.0
    %1524 = vmatpush1.msra.mxu0 0.0
    %1525 = vmatprep.subr.mxu0 0.0
    %1526 = vmatpush1.msra.mxu0 0.0
    %1527 = vmatprep.subr.mxu0 0.0
    %1528 = vmatpush1.msra.mxu0 0.0
    %1529 = vmatprep.subr.mxu0 0.0
    %1530 = vmatpush1.msra.mxu0 0.0
    %1531 = vmatprep.subr.mxu0 0.0
    %1532 = vmatpush1.msra.mxu0 0.0
    %1533 = vmatprep.subr.mxu0 0.0
    %1534 = vmatpush1.msra.mxu0 0.0
    %1535 = vmatprep.subr.mxu0 0.0
    %1536 = vmatpush1.msra.mxu0 0.0
    %1537 = vmatprep.subr.mxu0 0.0
    %1538 = vmatpush1.msra.mxu0 0.0
    %1539 = vmatprep.subr.mxu0 0.0
    %1540 = vmatpush1.msra.mxu0 0.0
    %1541 = vmatprep.subr.mxu0 0.0
    %1542 = vmatpush1.msra.mxu0 0.0
    %1543 = vmatprep.subr.mxu0 0.0
    %1544 = vmatpush1.msra.mxu0 0.0
    %1545 = vmatprep.subr.mxu0 0.0
    %1546 = vmatpush1.msra.mxu0 0.0
    %1547 = vmatprep.subr.mxu0 0.0
    %1548 = vmatpush1.msra.mxu0 0.0
    %1549 = vmatprep.subr.mxu0 0.0
    %1550 = vmatpush1.msra.mxu0 0.0
    %1551 = vmatprep.subr.mxu0 0.0
    %1552 = vmatpush1.msra.mxu0 0.0
    %1553 = vmatprep.subr.mxu0 0.0
    %1554 = vmatpush1.msra.mxu0 0.0
    %1555 = vmatprep.subr.mxu0 0.0
    %1556 = vmatpush1.msra.mxu0 0.0
    %1557 = vmatprep.subr.mxu0 0.0
    %1558 = vmatpush1.msra.mxu0 0.0
    %1559 = vmatprep.subr.mxu0 0.0
    %1560 = vmatpush1.msra.mxu0 0.0
    %1561 = vmatprep.subr.mxu0 0.0
    %1562 = vmatpush1.msra.mxu0 0.0
    %1563 = vmatprep.subr.mxu0 0.0
    %1564 = vmatpush1.msra.mxu0 0.0
    %1565 = vmatprep.subr.mxu0 0.0
    %1566 = vmatpush1.msra.mxu0 0.0
    %1567 = vmatprep.subr.mxu0 0.0
    %1568 = vmatpush1.msra.mxu0 0.0
    %1569 = vmatprep.subr.mxu0 0.0
    %1570 = vmatpush1.msra.mxu0 0.0
    %1571 = vmatprep.subr.mxu0 0.0
    %1572 = vmatpush1.msra.mxu0 0.0
    %1573 = vmatprep.subr.mxu0 0.0
    %1574 = vmatpush1.msra.mxu0 0.0
    %1575 = vmatprep.subr.mxu0 0.0
    %1576 = vmatpush1.msra.mxu0 0.0
    %1577 = vmatprep.mubr.f32.mxu0 0.0
    %1578 = vmatmul.mubr.f32.gmra.mrb[0].mxu0 %v1508
    %v1579 = vpop.f32.mrb[0].mxu0
    %v1580 = vadd.f32 0.0, %v1579
    %v1581 = vpop.f32.mrb[0].mxu0
    %1582 = vmatprep.mubr.f32.mxu0 0.0
    %1583 = vmatmul.mubr.f32.gmra.mrb[0].mxu0 %v1511
    %v1584 = vpop.f32.mrb[0].mxu0
    %v1585 = vadd.f32 0.0, %v1584
    %v1586 = vpop.f32.mrb[0].mxu0
    %1587 = vdwg.mxu0
    %1588 = vrot.lane.b32.xlu0 %v471, 48
    %v1589 = vpop.permute.xlu0 %1588
    %1590 = vrot.lane.b32.xlu0 %v474, 48
    %v1591 = vpop.permute.xlu0 %1590
    %v1595 = vsel %vm656, %v1499, 0
    %v1598 = vsel %vm656, %v1500, 0
    %1600 = vmatprep.subr.mxu0 0.0
    %1601 = vmatpush1.msra.mxu0 %v1589
    %1602 = vmatprep.subr.mxu0 0.0
    %1603 = vmatpush1.msra.mxu0 %v1591
    %1604 = vmatprep.subr.mxu0 0.0
    %1605 = vmatpush1.msra.mxu0 0.0
    %1606 = vmatprep.subr.mxu0 0.0
    %1607 = vmatpush1.msra.mxu0 0.0
    %1608 = vmatprep.subr.mxu0 0.0
    %1609 = vmatpush1.msra.mxu0 0.0
    %1610 = vmatprep.subr.mxu0 0.0
    %1611 = vmatpush1.msra.mxu0 0.0
    %1612 = vmatprep.subr.mxu0 0.0
    %1613 = vmatpush1.msra.mxu0 0.0
    %1614 = vmatprep.subr.mxu0 0.0
    %1615 = vmatpush1.msra.mxu0 0.0
    %1616 = vmatprep.subr.mxu0 0.0
    %1617 = vmatpush1.msra.mxu0 0.0
    %1618 = vmatprep.subr.mxu0 0.0
    %1619 = vmatpush1.msra.mxu0 0.0
    %1620 = vmatprep.subr.mxu0 0.0
    %1621 = vmatpush1.msra.mxu0 0.0
    %1622 = vmatprep.subr.mxu0 0.0
    %1623 = vmatpush1.msra.mxu0 0.0
    %1624 = vmatprep.subr.mxu0 0.0
    %1625 = vmatpush1.msra.mxu0 0.0
    %1626 = vmatprep.subr.mxu0 0.0
    %1627 = vmatpush1.msra.mxu0 0.0
    %1628 = vmatprep.subr.mxu0 0.0
    %1629 = vmatpush1.msra.mxu0 0.0
    %1630 = vmatprep.subr.mxu0 0.0
    %1631 = vmatpush1.msra.mxu0 0.0
    %1632 = vmatprep.subr.mxu0 0.0
    %1633 = vmatpush1.msra.mxu0 0.0
    %1634 = vmatprep.subr.mxu0 0.0
    %1635 = vmatpush1.msra.mxu0 0.0
    %1636 = vmatprep.subr.mxu0 0.0
    %1637 = vmatpush1.msra.mxu0 0.0
    %1638 = vmatprep.subr.mxu0 0.0
    %1639 = vmatpush1.msra.mxu0 0.0
    %1640 = vmatprep.subr.mxu0 0.0
    %1641 = vmatpush1.msra.mxu0 0.0
    %1642 = vmatprep.subr.mxu0 0.0
    %1643 = vmatpush1.msra.mxu0 0.0
    %1644 = vmatprep.subr.mxu0 0.0
    %1645 = vmatpush1.msra.mxu0 0.0
    %1646 = vmatprep.subr.mxu0 0.0
    %1647 = vmatpush1.msra.mxu0 0.0
    %1648 = vmatprep.subr.mxu0 0.0
    %1649 = vmatpush1.msra.mxu0 0.0
    %1650 = vmatprep.subr.mxu0 0.0
    %1651 = vmatpush1.msra.mxu0 0.0
    %1652 = vmatprep.subr.mxu0 0.0
    %1653 = vmatpush1.msra.mxu0 0.0
    %1654 = vmatprep.subr.mxu0 0.0
    %1655 = vmatpush1.msra.mxu0 0.0
    %1656 = vmatprep.subr.mxu0 0.0
    %1657 = vmatpush1.msra.mxu0 0.0
    %1658 = vmatprep.subr.mxu0 0.0
    %1659 = vmatpush1.msra.mxu0 0.0
    %1660 = vmatprep.subr.mxu0 0.0
    %1661 = vmatpush1.msra.mxu0 0.0
    %1662 = vmatprep.subr.mxu0 0.0
    %1663 = vmatpush1.msra.mxu0 0.0
    %1664 = vmatprep.mubr.f32.mxu0 0.0
    %1665 = vmatmul.mubr.f32.gmra.mrb[0].mxu0 %v1595
    %v1666 = vpop.f32.mrb[0].mxu0
    %v1667 = vadd.f32 0.0, %v1666
    %v1668 = vpop.f32.mrb[0].mxu0
    %1669 = vmatprep.mubr.f32.mxu0 0.0
    %1670 = vmatmul.mubr.f32.gmra.mrb[0].mxu0 %v1598
    %v1671 = vpop.f32.mrb[0].mxu0
    %v1672 = vadd.f32 0.0, %v1671
    %v1673 = vpop.f32.mrb[0].mxu0
    %1674 = vdwg.mxu0
    %1675 = vrot.lane.b32.xlu0 %v463, 104
    %v1676 = vpop.permute.xlu0 %1675
    %1677 = vrot.lane.b32.xlu0 %v466, 104
    %v1678 = vpop.permute.xlu0 %1677
    %1679 = vrot.lane.b32.xlu0 %v463, 72
    %v1680 = vpop.permute.xlu0 %1679
    %1681 = vrot.lane.b32.xlu0 %v466, 72
    %v1682 = vpop.permute.xlu0 %1681
    %v1683 = vsel %vm483, %v1676, 0
    %v1685 = vsel %vm483, %v1678, 0
    %v1687 = vsel %vm483, %v1680, 0
    %v1689 = vsel %vm483, %v1682, 0
    %1691 = vmatprep.subr.mxu0 0.0
    %1692 = vmatpush1.xpose.msra.mxu0 %v1687
    %1693 = vmatprep.subr.mxu0 0.0
    %1694 = vmatpush1.xpose.msra.mxu0 %v1689
    %1695 = vmatprep.subr.mxu0 0.0
    %1696 = vmatpush1.xpose.msra.mxu0 0.0
    %1697 = vmatprep.subr.mxu0 0.0
    %1698 = vmatpush1.xpose.msra.mxu0 0.0
    %1699 = vmatprep.subr.mxu0 0.0
    %1700 = vmatpush1.xpose.msra.mxu0 0.0
    %1701 = vmatprep.subr.mxu0 0.0
    %1702 = vmatpush1.xpose.msra.mxu0 0.0
    %1703 = vmatprep.subr.mxu0 0.0
    %1704 = vmatpush1.xpose.msra.mxu0 0.0
    %1705 = vmatprep.subr.mxu0 0.0
    %1706 = vmatpush1.xpose.msra.mxu0 0.0
    %1707 = vmatprep.subr.mxu0 0.0
    %1708 = vmatpush1.xpose.msra.mxu0 0.0
    %1709 = vmatprep.subr.mxu0 0.0
    %1710 = vmatpush1.xpose.msra.mxu0 0.0
    %1711 = vmatprep.subr.mxu0 0.0
    %1712 = vmatpush1.xpose.msra.mxu0 0.0
    %1713 = vmatprep.subr.mxu0 0.0
    %1714 = vmatpush1.xpose.msra.mxu0 0.0
    %1715 = vmatprep.subr.mxu0 0.0
    %1716 = vmatpush1.xpose.msra.mxu0 0.0
    %1717 = vmatprep.subr.mxu0 0.0
    %1718 = vmatpush1.xpose.msra.mxu0 0.0
    %1719 = vmatprep.subr.mxu0 0.0
    %1720 = vmatpush1.xpose.msra.mxu0 0.0
    %1721 = vmatprep.subr.mxu0 0.0
    %1722 = vmatpush1.xpose.msra.mxu0 0.0
    %1723 = vmatprep.subr.mxu0 0.0
    %1724 = vmatpush1.xpose.msra.mxu0 0.0
    %1725 = vmatprep.subr.mxu0 0.0
    %1726 = vmatpush1.xpose.msra.mxu0 0.0
    %1727 = vmatprep.subr.mxu0 0.0
    %1728 = vmatpush1.xpose.msra.mxu0 0.0
    %1729 = vmatprep.subr.mxu0 0.0
    %1730 = vmatpush1.xpose.msra.mxu0 0.0
    %1731 = vmatprep.subr.mxu0 0.0
    %1732 = vmatpush1.xpose.msra.mxu0 0.0
    %1733 = vmatprep.subr.mxu0 0.0
    %1734 = vmatpush1.xpose.msra.mxu0 0.0
    %1735 = vmatprep.subr.mxu0 0.0
    %1736 = vmatpush1.xpose.msra.mxu0 0.0
    %1737 = vmatprep.subr.mxu0 0.0
    %1738 = vmatpush1.xpose.msra.mxu0 0.0
    %1739 = vmatprep.subr.mxu0 0.0
    %1740 = vmatpush1.xpose.msra.mxu0 0.0
    %1741 = vmatprep.subr.mxu0 0.0
    %1742 = vmatpush1.xpose.msra.mxu0 0.0
    %1743 = vmatprep.subr.mxu0 0.0
    %1744 = vmatpush1.xpose.msra.mxu0 0.0
    %1745 = vmatprep.subr.mxu0 0.0
    %1746 = vmatpush1.xpose.msra.mxu0 0.0
    %1747 = vmatprep.subr.mxu0 0.0
    %1748 = vmatpush1.xpose.msra.mxu0 0.0
    %1749 = vmatprep.subr.mxu0 0.0
    %1750 = vmatpush1.xpose.msra.mxu0 0.0
    %1751 = vmatprep.subr.mxu0 0.0
    %1752 = vmatpush1.xpose.msra.mxu0 0.0
    %1753 = vmatprep.subr.mxu0 0.0
    %1754 = vmatpush1.xpose.msra.mxu0 0.0
    %1755 = vmatprep.mubr.f32.mxu0 0.0
    %1756 = vmatmul.mubr.f32.gmra.mrb[0].mxu0 %v1683
    %v1757 = vpop.f32.mrb[0].mxu0
    %v1758 = vadd.f32 0.0, %v1757
    %v1759 = vpop.f32.mrb[0].mxu0
    %1760 = vmatprep.mubr.f32.mxu0 0.0
    %1761 = vmatmul.mubr.f32.gmra.mrb[0].mxu0 %v1685
    %v1762 = vpop.f32.mrb[0].mxu0
    %v1763 = vadd.f32 0.0, %v1762
    %v1764 = vpop.f32.mrb[0].mxu0
    %1765 = vdwg.mxu0
    %1766 = vrot.lane.b32.xlu0 %v471, 104
    %v1767 = vpop.permute.xlu0 %1766
    %1768 = vrot.lane.b32.xlu0 %v474, 104
    %v1769 = vpop.permute.xlu0 %1768
    %1770 = vrot.lane.b32.xlu0 %v471, 72
    %v1771 = vpop.permute.xlu0 %1770
    %1772 = vrot.lane.b32.xlu0 %v474, 72
    %v1773 = vpop.permute.xlu0 %1772
    %v1774 = vsel %vm483, %v1767, 0
    %v1776 = vsel %vm483, %v1769, 0
    %v1778 = vsel %vm483, %v1771, 0
    %v1780 = vsel %vm483, %v1773, 0
    %1782 = vmatprep.subr.mxu0 0.0
    %1783 = vmatpush1.xpose.msra.mxu0 %v1778
    %1784 = vmatprep.subr.mxu0 0.0
    %1785 = vmatpush1.xpose.msra.mxu0 %v1780
    %1786 = vmatprep.subr.mxu0 0.0
    %1787 = vmatpush1.xpose.msra.mxu0 0.0
    %1788 = vmatprep.subr.mxu0 0.0
    %1789 = vmatpush1.xpose.msra.mxu0 0.0
    %1790 = vmatprep.subr.mxu0 0.0
    %1791 = vmatpush1.xpose.msra.mxu0 0.0
    %1792 = vmatprep.subr.mxu0 0.0
    %1793 = vmatpush1.xpose.msra.mxu0 0.0
    %1794 = vmatprep.subr.mxu0 0.0
    %1795 = vmatpush1.xpose.msra.mxu0 0.0
    %1796 = vmatprep.subr.mxu0 0.0
    %1797 = vmatpush1.xpose.msra.mxu0 0.0
    %1798 = vmatprep.subr.mxu0 0.0
    %1799 = vmatpush1.xpose.msra.mxu0 0.0
    %1800 = vmatprep.subr.mxu0 0.0
    %1801 = vmatpush1.xpose.msra.mxu0 0.0
    %1802 = vmatprep.subr.mxu0 0.0
    %1803 = vmatpush1.xpose.msra.mxu0 0.0
    %1804 = vmatprep.subr.mxu0 0.0
    %1805 = vmatpush1.xpose.msra.mxu0 0.0
    %1806 = vmatprep.subr.mxu0 0.0
    %1807 = vmatpush1.xpose.msra.mxu0 0.0
    %1808 = vmatprep.subr.mxu0 0.0
    %1809 = vmatpush1.xpose.msra.mxu0 0.0
    %1810 = vmatprep.subr.mxu0 0.0
    %1811 = vmatpush1.xpose.msra.mxu0 0.0
    %1812 = vmatprep.subr.mxu0 0.0
    %1813 = vmatpush1.xpose.msra.mxu0 0.0
    %1814 = vmatprep.subr.mxu0 0.0
    %1815 = vmatpush1.xpose.msra.mxu0 0.0
    %1816 = vmatprep.subr.mxu0 0.0
    %1817 = vmatpush1.xpose.msra.mxu0 0.0
    %1818 = vmatprep.subr.mxu0 0.0
    %1819 = vmatpush1.xpose.msra.mxu0 0.0
    %1820 = vmatprep.subr.mxu0 0.0
    %1821 = vmatpush1.xpose.msra.mxu0 0.0
    %1822 = vmatprep.subr.mxu0 0.0
    %1823 = vmatpush1.xpose.msra.mxu0 0.0
    %1824 = vmatprep.subr.mxu0 0.0
    %1825 = vmatpush1.xpose.msra.mxu0 0.0
    %1826 = vmatprep.subr.mxu0 0.0
    %1827 = vmatpush1.xpose.msra.mxu0 0.0
    %1828 = vmatprep.subr.mxu0 0.0
    %1829 = vmatpush1.xpose.msra.mxu0 0.0
    %1830 = vmatprep.subr.mxu0 0.0
    %1831 = vmatpush1.xpose.msra.mxu0 0.0
    %1832 = vmatprep.subr.mxu0 0.0
    %1833 = vmatpush1.xpose.msra.mxu0 0.0
    %1834 = vmatprep.subr.mxu0 0.0
    %1835 = vmatpush1.xpose.msra.mxu0 0.0
    %1836 = vmatprep.subr.mxu0 0.0
    %1837 = vmatpush1.xpose.msra.mxu0 0.0
    %1838 = vmatprep.subr.mxu0 0.0
    %1839 = vmatpush1.xpose.msra.mxu0 0.0
    %1840 = vmatprep.subr.mxu0 0.0
    %1841 = vmatpush1.xpose.msra.mxu0 0.0
    %1842 = vmatprep.subr.mxu0 0.0
    %1843 = vmatpush1.xpose.msra.mxu0 0.0
    %1844 = vmatprep.subr.mxu0 0.0
    %1845 = vmatpush1.xpose.msra.mxu0 0.0
    %1846 = vmatprep.mubr.f32.mxu0 0.0
    %1847 = vmatmul.mubr.f32.gmra.mrb[0].mxu0 %v1774
    %v1848 = vpop.f32.mrb[0].mxu0
    %v1849 = vadd.f32 0.0, %v1848
    %v1850 = vpop.f32.mrb[0].mxu0
    %1851 = vmatprep.mubr.f32.mxu0 0.0
    %1852 = vmatmul.mubr.f32.gmra.mrb[0].mxu0 %v1776
    %v1853 = vpop.f32.mrb[0].mxu0
    %v1854 = vadd.f32 0.0, %v1853
    %v1855 = vpop.f32.mrb[0].mxu0
    %1856 = vdwg.mxu0
    %v1857 = vsel %vm656, %v1758, -inf
    %1858 = vmax.xlane.f32.xlu0 %v1857
    %v1859 = vpop.xlane.xlu0 %1858
    %v1860 = vsel %vm656, %v1763, -inf
    %1861 = vmax.xlane.f32.xlu0 %v1860
    %v1862 = vpop.xlane.xlu0 %1861
    %v1863 = vsel %vm656, %v1849, -inf
    %1864 = vmax.xlane.f32.xlu0 %v1863
    %v1865 = vpop.xlane.xlu0 %1864
    %v1866 = vsel %vm656, %v1854, -inf
    %1867 = vmax.xlane.f32.xlu0 %v1866
    %v1868 = vpop.xlane.xlu0 %1867
    %v1869 = vsub.f32 %v1758, %v1859
    %v1870 = vsub.f32 %v1763, %v1862
    %v1871 = vsub.f32 %v1849, %v1865
    %v1872 = vsub.f32 %v1854, %v1868
    %v1873 = vmul.f32 %v1869, 1.442695
    %v1874 = vpow.pop %v1873
    %v1875 = vmul.f32 %v1870, 1.442695
    %v1876 = vpow.pop %v1875
    %v1877 = vmul.f32 %v1871, 1.442695
    %v1878 = vpow.pop %v1877
    %v1879 = vmul.f32 %v1872, 1.442695
    %v1880 = vpow.pop %v1879
    %v1881 = vsel %vm656, %v1874, 0.0
    %1882 = vadd.xlane.f32.xlu0 %v1881
    %v1883 = vpop.xlane.xlu0 %1882
    %v1884 = vsel %vm656, %v1876, 0.0
    %1885 = vadd.xlane.f32.xlu0 %v1884
    %v1886 = vpop.xlane.xlu0 %1885
    %v1887 = vsel %vm656, %v1878, 0.0
    %1888 = vadd.xlane.f32.xlu0 %v1887
    %v1889 = vpop.xlane.xlu0 %1888
    %v1890 = vsel %vm656, %v1880, 0.0
    %1891 = vadd.xlane.f32.xlu0 %v1890
    %v1892 = vpop.xlane.xlu0 %1891
    %v1893 = vrcp.pop %v1883
    %v1894 = vrcp.pop %v1886
    %v1895 = vrcp.pop %v1889
    %v1896 = vrcp.pop %v1892
    %v1897 = vmul.f32 %v1874, %v1893
    %v1898 = vmul.f32 %v1876, %v1894
    %v1899 = vmul.f32 %v1878, %v1895
    %v1900 = vmul.f32 %v1880, %v1896
    %1901 = vrot.lane.b32.xlu0 %v463, 40
    %v1902 = vpop.permute.xlu0 %1901
    %1903 = vrot.lane.b32.xlu0 %v466, 40
    %v1904 = vpop.permute.xlu0 %1903
    %v1908 = vsel %vm656, %v1897, 0
    %v1911 = vsel %vm656, %v1898, 0
    %1913 = vmatprep.subr.mxu0 0.0
    %1914 = vmatpush1.msra.mxu0 %v1902
    %1915 = vmatprep.subr.mxu0 0.0
    %1916 = vmatpush1.msra.mxu0 %v1904
    %1917 = vmatprep.subr.mxu0 0.0
    %1918 = vmatpush1.msra.mxu0 0.0
    %1919 = vmatprep.subr.mxu0 0.0
    %1920 = vmatpush1.msra.mxu0 0.0
    %1921 = vmatprep.subr.mxu0 0.0
    %1922 = vmatpush1.msra.mxu0 0.0
    %1923 = vmatprep.subr.mxu0 0.0
    %1924 = vmatpush1.msra.mxu0 0.0
    %1925 = vmatprep.subr.mxu0 0.0
    %1926 = vmatpush1.msra.mxu0 0.0
    %1927 = vmatprep.subr.mxu0 0.0
    %1928 = vmatpush1.msra.mxu0 0.0
    %1929 = vmatprep.subr.mxu0 0.0
    %1930 = vmatpush1.msra.mxu0 0.0
    %1931 = vmatprep.subr.mxu0 0.0
    %1932 = vmatpush1.msra.mxu0 0.0
    %1933 = vmatprep.subr.mxu0 0.0
    %1934 = vmatpush1.msra.mxu0 0.0
    %1935 = vmatprep.subr.mxu0 0.0
    %1936 = vmatpush1.msra.mxu0 0.0
    %1937 = vmatprep.subr.mxu0 0.0
    %1938 = vmatpush1.msra.mxu0 0.0
    %1939 = vmatprep.subr.mxu0 0.0
    %1940 = vmatpush1.msra.mxu0 0.0
    %1941 = vmatprep.subr.mxu0 0.0
    %1942 = vmatpush1.msra.mxu0 0.0
    %1943 = vmatprep.subr.mxu0 0.0
    %1944 = vmatpush1.msra.mxu0 0.0
    %1945 = vmatprep.subr.mxu0 0.0
    %1946 = vmatpush1.msra.mxu0 0.0
    %1947 = vmatprep.subr.mxu0 0.0
    %1948 = vmatpush1.msra.mxu0 0.0
    %1949 = vmatprep.subr.mxu0 0.0
    %1950 = vmatpush1.msra.mxu0 0.0
    %1951 = vmatprep.subr.mxu0 0.0
    %1952 = vmatpush1.msra.mxu0 0.0
    %1953 = vmatprep.subr.mxu0 0.0
    %1954 = vmatpush1.msra.mxu0 0.0
    %1955 = vmatprep.subr.mxu0 0.0
    %1956 = vmatpush1.msra.mxu0 0.0
    %1957 = vmatprep.subr.mxu0 0.0
    %1958 = vmatpush1.msra.mxu0 0.0
    %1959 = vmatprep.subr.mxu0 0.0
    %1960 = vmatpush1.msra.mxu0 0.0
    %1961 = vmatprep.subr.mxu0 0.0
    %1962 = vmatpush1.msra.mxu0 0.0
    %1963 = vmatprep.subr.mxu0 0.0
    %1964 = vmatpush1.msra.mxu0 0.0
    %1965 = vmatprep.subr.mxu0 0.0
    %1966 = vmatpush1.msra.mxu0 0.0
    %1967 = vmatprep.subr.mxu0 0.0
    %1968 = vmatpush1.msra.mxu0 0.0
    %1969 = vmatprep.subr.mxu0 0.0
    %1970 = vmatpush1.msra.mxu0 0.0
    %1971 = vmatprep.subr.mxu0 0.0
    %1972 = vmatpush1.msra.mxu0 0.0
    %1973 = vmatprep.subr.mxu0 0.0
    %1974 = vmatpush1.msra.mxu0 0.0
    %1975 = vmatprep.subr.mxu0 0.0
    %1976 = vmatpush1.msra.mxu0 0.0
    %1977 = vmatprep.mubr.f32.mxu0 0.0
    %1978 = vmatmul.mubr.f32.gmra.mrb[0].mxu0 %v1908
    %v1979 = vpop.f32.mrb[0].mxu0
    %v1980 = vadd.f32 0.0, %v1979
    %v1981 = vpop.f32.mrb[0].mxu0
    %1982 = vmatprep.mubr.f32.mxu0 0.0
    %1983 = vmatmul.mubr.f32.gmra.mrb[0].mxu0 %v1911
    %v1984 = vpop.f32.mrb[0].mxu0
    %v1985 = vadd.f32 0.0, %v1984
    %v1986 = vpop.f32.mrb[0].mxu0
    %1987 = vdwg.mxu0
    %1988 = vrot.lane.b32.xlu0 %v471, 40
    %v1989 = vpop.permute.xlu0 %1988
    %1990 = vrot.lane.b32.xlu0 %v474, 40
    %v1991 = vpop.permute.xlu0 %1990
    %v1995 = vsel %vm656, %v1899, 0
    %v1998 = vsel %vm656, %v1900, 0
    %2000 = vmatprep.subr.mxu0 0.0
    %2001 = vmatpush1.msra.mxu0 %v1989
    %2002 = vmatprep.subr.mxu0 0.0
    %2003 = vmatpush1.msra.mxu0 %v1991
    %2004 = vmatprep.subr.mxu0 0.0
    %2005 = vmatpush1.msra.mxu0 0.0
    %2006 = vmatprep.subr.mxu0 0.0
    %2007 = vmatpush1.msra.mxu0 0.0
    %2008 = vmatprep.subr.mxu0 0.0
    %2009 = vmatpush1.msra.mxu0 0.0
    %2010 = vmatprep.subr.mxu0 0.0
    %2011 = vmatpush1.msra.mxu0 0.0
    %2012 = vmatprep.subr.mxu0 0.0
    %2013 = vmatpush1.msra.mxu0 0.0
    %2014 = vmatprep.subr.mxu0 0.0
    %2015 = vmatpush1.msra.mxu0 0.0
    %2016 = vmatprep.subr.mxu0 0.0
    %2017 = vmatpush1.msra.mxu0 0.0
    %2018 = vmatprep.subr.mxu0 0.0
    %2019 = vmatpush1.msra.mxu0 0.0
    %2020 = vmatprep.subr.mxu0 0.0
    %2021 = vmatpush1.msra.mxu0 0.0
    %2022 = vmatprep.subr.mxu0 0.0
    %2023 = vmatpush1.msra.mxu0 0.0
    %2024 = vmatprep.subr.mxu0 0.0
    %2025 = vmatpush1.msra.mxu0 0.0
    %2026 = vmatprep.subr.mxu0 0.0
    %2027 = vmatpush1.msra.mxu0 0.0
    %2028 = vmatprep.subr.mxu0 0.0
    %2029 = vmatpush1.msra.mxu0 0.0
    %2030 = vmatprep.subr.mxu0 0.0
    %2031 = vmatpush1.msra.mxu0 0.0
    %2032 = vmatprep.subr.mxu0 0.0
    %2033 = vmatpush1.msra.mxu0 0.0
    %2034 = vmatprep.subr.mxu0 0.0
    %2035 = vmatpush1.msra.mxu0 0.0
    %2036 = vmatprep.subr.mxu0 0.0
    %2037 = vmatpush1.msra.mxu0 0.0
    %2038 = vmatprep.subr.mxu0 0.0
    %2039 = vmatpush1.msra.mxu0 0.0
    %2040 = vmatprep.subr.mxu0 0.0
    %2041 = vmatpush1.msra.mxu0 0.0
    %2042 = vmatprep.subr.mxu0 0.0
    %2043 = vmatpush1.msra.mxu0 0.0
    %2044 = vmatprep.subr.mxu0 0.0
    %2045 = vmatpush1.msra.mxu0 0.0
    %2046 = vmatprep.subr.mxu0 0.0
    %2047 = vmatpush1.msra.mxu0 0.0
    %2048 = vmatprep.subr.mxu0 0.0
    %2049 = vmatpush1.msra.mxu0 0.0
    %2050 = vmatprep.subr.mxu0 0.0
    %2051 = vmatpush1.msra.mxu0 0.0
    %2052 = vmatprep.subr.mxu0 0.0
    %2053 = vmatpush1.msra.mxu0 0.0
    %2054 = vmatprep.subr.mxu0 0.0
    %2055 = vmatpush1.msra.mxu0 0.0
    %2056 = vmatprep.subr.mxu0 0.0
    %2057 = vmatpush1.msra.mxu0 0.0
    %2058 = vmatprep.subr.mxu0 0.0
    %2059 = vmatpush1.msra.mxu0 0.0
    %2060 = vmatprep.subr.mxu0 0.0
    %2061 = vmatpush1.msra.mxu0 0.0
    %2062 = vmatprep.subr.mxu0 0.0
    %2063 = vmatpush1.msra.mxu0 0.0
    %2064 = vmatprep.mubr.f32.mxu0 0.0
    %2065 = vmatmul.mubr.f32.gmra.mrb[0].mxu0 %v1995
    %v2066 = vpop.f32.mrb[0].mxu0
    %v2067 = vadd.f32 0.0, %v2066
    %v2068 = vpop.f32.mrb[0].mxu0
    %2069 = vmatprep.mubr.f32.mxu0 0.0
    %2070 = vmatmul.mubr.f32.gmra.mrb[0].mxu0 %v1998
    %v2071 = vpop.f32.mrb[0].mxu0
    %v2072 = vadd.f32 0.0, %v2071
    %v2073 = vpop.f32.mrb[0].mxu0
    %2074 = vdwg.mxu0
    %2079 = vrot.lane.b32.xlu0 %v1180, 8
    %v2080 = vpop.permute.xlu0 %2079
    %2081 = vrot.lane.b32.xlu0 %v1185, 8
    %v2082 = vpop.permute.xlu0 %2081
    %2083 = vrot.lane.b32.xlu0 %v1267, 8
    %v2084 = vpop.permute.xlu0 %2083
    %2085 = vrot.lane.b32.xlu0 %v1272, 8
    %v2086 = vpop.permute.xlu0 %2085
    %2095 = vrot.lane.b32.xlu0 %v1580, 16
    %v2096 = vpop.permute.xlu0 %2095
    %2097 = vrot.lane.b32.xlu0 %v1585, 16
    %v2098 = vpop.permute.xlu0 %2097
    %2099 = vrot.lane.b32.xlu0 %v1667, 16
    %v2100 = vpop.permute.xlu0 %2099
    %2101 = vrot.lane.b32.xlu0 %v1672, 16
    %v2102 = vpop.permute.xlu0 %2101
    %2111 = vrot.lane.b32.xlu0 %v1980, 24
    %v2112 = vpop.permute.xlu0 %2111
    %2113 = vrot.lane.b32.xlu0 %v1985, 24
    %v2114 = vpop.permute.xlu0 %2113
    %2115 = vrot.lane.b32.xlu0 %v2067, 24
    %v2116 = vpop.permute.xlu0 %2115
    %2117 = vrot.lane.b32.xlu0 %v2072, 24
    %v2118 = vpop.permute.xlu0 %2117
    %v2123 = vsel %vm483, %v780, %v2080
    %v2124 = vsel %vm483, %v785, %v2082
    %v2125 = vsel %vm483, %v867, %v2084
    %v2126 = vsel %vm483, %v872, %v2086
    %v2127 = vsel %vm656, %v2123, %v2096
    %v2128 = vsel %vm656, %v2124, %v2098
    %v2129 = vsel %vm656, %v2125, %v2100
    %v2130 = vsel %vm656, %v2126, %v2102
    %vm2131 = vcmask 195584
    %v2132 = vsel %vm2131, %v2127, %v2112
    %v2133 = vsel %vm2131, %v2128, %v2114
    %v2134 = vsel %vm2131, %v2129, %v2116
    %v2135 = vsel %vm2131, %v2130, %v2118
    %v2136 = vpack.c.bf16 %v2133, %v2132
    %v2137 = vpack.c.bf16 %v2135, %v2134
    %v2138 = vlaneseq
    %v2139 = vshrl.u32 %v2138, 7
    %v2140 = vsub.s32 4, %v2139
    %v2141 = vrot.slane %v26, %v2140
    %2142 = vrot.lane.b32.xlu0 %v418, 32
    %v2143 = vpop.permute.xlu0 %2142
    %2144 = vrot.lane.b32.xlu0 %v419, 32
    %v2145 = vpop.permute.xlu0 %2144
    %v2149 = vsel %vm292, %v2136, 0
    %v2152 = vsel %vm292, %v2137, 0
    %2154 = vmatprep.subr.bf16.mxu0 0
    %2155 = vmatpush1.bf16.msra.mxu0 %v2143
    %2156 = vmatprep.subr.bf16.mxu0 0
    %2157 = vmatpush1.bf16.msra.mxu0 %v2145
    %2158 = vmatprep.subr.bf16.mxu0 0
    %2159 = vmatpush1.bf16.msra.mxu0 0
    %2160 = vmatprep.subr.bf16.mxu0 0
    %2161 = vmatpush1.bf16.msra.mxu0 0
    %2162 = vmatprep.subr.bf16.mxu0 0
    %2163 = vmatpush1.bf16.msra.mxu0 0
    %2164 = vmatprep.subr.bf16.mxu0 0
    %2165 = vmatpush1.bf16.msra.mxu0 0
    %2166 = vmatprep.subr.bf16.mxu0 0
    %2167 = vmatpush1.bf16.msra.mxu0 0
    %2168 = vmatprep.subr.bf16.mxu0 0
    %2169 = vmatpush1.bf16.msra.mxu0 0
    %2170 = vmatprep.subr.bf16.mxu0 0
    %2171 = vmatpush1.bf16.msra.mxu0 0
    %2172 = vmatprep.subr.bf16.mxu0 0
    %2173 = vmatpush1.bf16.msra.mxu0 0
    %2174 = vmatprep.subr.bf16.mxu0 0
    %2175 = vmatpush1.bf16.msra.mxu0 0
    %2176 = vmatprep.subr.bf16.mxu0 0
    %2177 = vmatpush1.bf16.msra.mxu0 0
    %2178 = vmatprep.subr.bf16.mxu0 0
    %2179 = vmatpush1.bf16.msra.mxu0 0
    %2180 = vmatprep.subr.bf16.mxu0 0
    %2181 = vmatpush1.bf16.msra.mxu0 0
    %2182 = vmatprep.subr.bf16.mxu0 0
    %2183 = vmatpush1.bf16.msra.mxu0 0
    %2184 = vmatprep.subr.bf16.mxu0 0
    %2185 = vmatpush1.bf16.msra.mxu0 0
    %2186 = vmatprep.mubr.bf16.mxu0 0
    %2187 = vmatmul.mubr.bf16.gmra.mrb[0].mxu0 %v2149
    %v2188 = vpop.f32.mrb[0].mxu0
    %v2189 = vadd.f32 %v2141, %v2188
    %v2190 = vpop.f32.mrb[0].mxu0
    %v2191 = vpop.f32.mrb[0].mxu0
    %v2192 = vadd.f32 %v2141, %v2191
    %v2193 = vpop.f32.mrb[0].mxu0
    %2194 = vmatprep.mubr.bf16.mxu0 0
    %2195 = vmatmul.mubr.bf16.gmra.mrb[0].mxu0 %v2152
    %v2196 = vpop.f32.mrb[0].mxu0
    %v2197 = vadd.f32 %v2141, %v2196
    %v2198 = vpop.f32.mrb[0].mxu0
    %v2199 = vpop.f32.mrb[0].mxu0
    %v2200 = vadd.f32 %v2141, %v2199
    %v2201 = vpop.f32.mrb[0].mxu0
    %2202 = vdwg.mxu0
    %2207 = vrot.lane.b32.xlu0 %v2189, 64
    %v2208 = vpop.permute.xlu0 %2207
    %2209 = vrot.lane.b32.xlu0 %v2192, 64
    %v2210 = vpop.permute.xlu0 %2209
    %2211 = vrot.lane.b32.xlu0 %v2197, 64
    %v2212 = vpop.permute.xlu0 %2211
    %2213 = vrot.lane.b32.xlu0 %v2200, 64
    %v2214 = vpop.permute.xlu0 %2213
    %v2219 = vadd.f32 %v382, %v2208
    %v2220 = vadd.f32 %v383, %v2210
    %v2221 = vadd.f32 %v384, %v2212
    %v2222 = vadd.f32 %v385, %v2214
    %2227 = vrot.lane.b32.xlu0 %v2219, 64
    %v2228 = vpop.permute.xlu0 %2227
    %2229 = vrot.lane.b32.xlu0 %v2220, 64
    %v2230 = vpop.permute.xlu0 %2229
    %2231 = vrot.lane.b32.xlu0 %v2221, 64
    %v2232 = vpop.permute.xlu0 %2231
    %2233 = vrot.lane.b32.xlu0 %v2222, 64
    %v2234 = vpop.permute.xlu0 %2233
    %v2239 = vsel %vm292, %v2228, 0.0
    %2240 = vadd.xlane.f32.xlu0 %v2239
    %v2241 = vpop.xlane.xlu0 %2240
    %v2242 = vsel %vm292, %v2230, 0.0
    %2243 = vadd.xlane.f32.xlu0 %v2242
    %v2244 = vpop.xlane.xlu0 %2243
    %v2245 = vsel %vm292, %v2232, 0.0
    %2246 = vadd.xlane.f32.xlu0 %v2245
    %v2247 = vpop.xlane.xlu0 %2246
    %v2248 = vsel %vm292, %v2234, 0.0
    %2249 = vadd.xlane.f32.xlu0 %v2248
    %v2250 = vpop.xlane.xlu0 %2249
    %v2251 = vmul.f32 %v2241, %v305
    %v2252 = vmul.f32 %v2244, %v305
    %v2253 = vmul.f32 %v2247, %v305
    %v2254 = vmul.f32 %v2250, %v305
    %v2255 = vsub.f32 %v2219, %v2251
    %v2256 = vsub.f32 %v2220, %v2252
    %v2257 = vsub.f32 %v2221, %v2253
    %v2258 = vsub.f32 %v2222, %v2254
    %v2259 = vmul.f32 %v2255, %v2255
    %v2260 = vmul.f32 %v2256, %v2256
    %v2261 = vmul.f32 %v2257, %v2257
    %v2262 = vmul.f32 %v2258, %v2258
    %2267 = vrot.lane.b32.xlu0 %v2259, 64
    %v2268 = vpop.permute.xlu0 %2267
    %2269 = vrot.lane.b32.xlu0 %v2260, 64
    %v2270 = vpop.permute.xlu0 %2269
    %2271 = vrot.lane.b32.xlu0 %v2261, 64
    %v2272 = vpop.permute.xlu0 %2271
    %2273 = vrot.lane.b32.xlu0 %v2262, 64
    %v2274 = vpop.permute.xlu0 %2273
    %v2279 = vsel %vm292, %v2268, 0.0
    %2280 = vadd.xlane.f32.xlu0 %v2279
    %v2281 = vpop.xlane.xlu0 %2280
    %v2282 = vsel %vm292, %v2270, 0.0
    %2283 = vadd.xlane.f32.xlu0 %v2282
    %v2284 = vpop.xlane.xlu0 %2283
    %v2285 = vsel %vm292, %v2272, 0.0
    %2286 = vadd.xlane.f32.xlu0 %v2285
    %v2287 = vpop.xlane.xlu0 %2286
    %v2288 = vsel %vm292, %v2274, 0.0
    %2289 = vadd.xlane.f32.xlu0 %v2288
    %v2290 = vpop.xlane.xlu0 %2289
    %v2291 = vmul.f32 %v2281, %v305
    %v2292 = vmul.f32 %v2284, %v305
    %v2293 = vmul.f32 %v2287, %v305
    %v2294 = vmul.f32 %v2290, %v305
    %v2295 = vadd.f32 %v2291, 1e-05
    %v2296 = vadd.f32 %v2292, 1e-05
    %v2297 = vadd.f32 %v2293, 1e-05
    %v2298 = vadd.f32 %v2294, 1e-05
    %v2299 = vrsqrt.pop %v2295
    %v2300 = vrsqrt.pop %v2296
    %v2301 = vrsqrt.pop %v2297
    %v2302 = vrsqrt.pop %v2298
    %v2303 = vmul.f32 %v2255, %v2299
    %v2304 = vmul.f32 %v2256, %v2300
    %v2305 = vmul.f32 %v2257, %v2301
    %v2306 = vmul.f32 %v2258, %v2302
    %v2307 = vlaneseq
    %v2308 = vshrl.u32 %v2307, 7
    %v2309 = vsub.s32 5, %v2308
    %v2310 = vrot.slane %v26, %v2309
    %2312 = vrot.lane.b32.xlu0 %v2310, 64
    %v2313 = vpop.permute.xlu0 %2312
    %v2315 = vmul.f32 %v2303, %v2313
    %v2316 = vmul.f32 %v2304, %v2313
    %v2317 = vmul.f32 %v2305, %v2313
    %v2318 = vmul.f32 %v2306, %v2313
    %v2319 = vlaneseq
    %v2320 = vshrl.u32 %v2319, 7
    %v2321 = vsub.s32 6, %v2320
    %v2322 = vrot.slane %v26, %v2321
    %2324 = vrot.lane.b32.xlu0 %v2322, 64
    %v2325 = vpop.permute.xlu0 %2324
    %v2327 = vadd.f32 %v2315, %v2325
    %v2328 = vadd.f32 %v2316, %v2325
    %v2329 = vadd.f32 %v2317, %v2325
    %v2330 = vadd.f32 %v2318, %v2325
    %v2331 = vpack.c.bf16 %v2328, %v2327
    %v2332 = vpack.c.bf16 %v2330, %v2329
    %v2333 = vlaneseq
    %v2334 = vshrl.u32 %v2333, 7
    %v2335 = vsub.s32 7, %v2334
    %v2336 = vrot.slane %v26, %v2335
    %2339 = vrot.lane.b32.xlu0 %v2331, 64
    %v2340 = vpop.permute.xlu0 %2339
    %2341 = vrot.lane.b32.xlu0 %v2332, 64
    %v2342 = vpop.permute.xlu0 %2341
    %v2343 = vunpack.c.h.b16 %v386
    %v2344 = vunpack.c.h.b16 %v387
    %v2345 = vunpack.c.h.b16 %v388
    %v2346 = vunpack.c.h.b16 %v389
    %v2347 = vpack.c.b16 %v2344, %v2343
    %v2348 = vpack.c.b16 %v2346, %v2345
    %v2352 = vsel %vm292, %v2340, 0
    %v2355 = vsel %vm292, %v2342, 0
    %2357 = vmatprep.subr.bf16.mxu0 0
    %2358 = vmatpush1.bf16.msra.mxu0 %v2347
    %2359 = vmatprep.subr.bf16.mxu0 0
    %2360 = vmatpush1.bf16.msra.mxu0 %v2348
    %2361 = vmatprep.subr.bf16.mxu0 0
    %2362 = vmatpush1.bf16.msra.mxu0 0
    %2363 = vmatprep.subr.bf16.mxu0 0
    %2364 = vmatpush1.bf16.msra.mxu0 0
    %2365 = vmatprep.subr.bf16.mxu0 0
    %2366 = vmatpush1.bf16.msra.mxu0 0
    %2367 = vmatprep.subr.bf16.mxu0 0
    %2368 = vmatpush1.bf16.msra.mxu0 0
    %2369 = vmatprep.subr.bf16.mxu0 0
    %2370 = vmatpush1.bf16.msra.mxu0 0
    %2371 = vmatprep.subr.bf16.mxu0 0
    %2372 = vmatpush1.bf16.msra.mxu0 0
    %2373 = vmatprep.subr.bf16.mxu0 0
    %2374 = vmatpush1.bf16.msra.mxu0 0
    %2375 = vmatprep.subr.bf16.mxu0 0
    %2376 = vmatpush1.bf16.msra.mxu0 0
    %2377 = vmatprep.subr.bf16.mxu0 0
    %2378 = vmatpush1.bf16.msra.mxu0 0
    %2379 = vmatprep.subr.bf16.mxu0 0
    %2380 = vmatpush1.bf16.msra.mxu0 0
    %2381 = vmatprep.subr.bf16.mxu0 0
    %2382 = vmatpush1.bf16.msra.mxu0 0
    %2383 = vmatprep.subr.bf16.mxu0 0
    %2384 = vmatpush1.bf16.msra.mxu0 0
    %2385 = vmatprep.subr.bf16.mxu0 0
    %2386 = vmatpush1.bf16.msra.mxu0 0
    %2387 = vmatprep.subr.bf16.mxu0 0
    %2388 = vmatpush1.bf16.msra.mxu0 0
    %2389 = vmatprep.mubr.bf16.mxu0 0
    %2390 = vmatmul.mubr.bf16.gmra.mrb[0].mxu0 %v2352
    %v2391 = vpop.f32.mrb[0].mxu0
    %v2392 = vadd.f32 %v2336, %v2391
    %v2393 = vpop.f32.mrb[0].mxu0
    %v2394 = vpop.f32.mrb[0].mxu0
    %v2395 = vadd.f32 %v2336, %v2394
    %v2396 = vpop.f32.mrb[0].mxu0
    %2397 = vmatprep.mubr.bf16.mxu0 0
    %2398 = vmatmul.mubr.bf16.gmra.mrb[0].mxu0 %v2355
    %v2399 = vpop.f32.mrb[0].mxu0
    %v2400 = vadd.f32 %v2336, %v2399
    %v2401 = vpop.f32.mrb[0].mxu0
    %v2402 = vpop.f32.mrb[0].mxu0
    %v2403 = vadd.f32 %v2336, %v2402
    %v2404 = vpop.f32.mrb[0].mxu0
    %2405 = vdwg.mxu0
    %v2406 = vmax.f32 %v2392, 0.0
    %v2407 = vmax.f32 %v2395, 0.0
    %v2408 = vmax.f32 %v2400, 0.0
    %v2409 = vmax.f32 %v2403, 0.0
    %v2410 = vpack.c.bf16 %v2407, %v2406
    %v2411 = vpack.c.bf16 %v2409, %v2408
    %v2412 = vlaneseq
    %v2413 = vshrl.u32 %v2412, 7
    %v2414 = vsub.s32 0, %v2413
    %v2415 = vrot.slane %v27, %v2414
    %v2424 = vunpack.c.l.b16 %v390
    %v2425 = vunpack.c.l.b16 %v391
    %v2426 = vunpack.c.l.b16 %v392
    %v2427 = vunpack.c.l.b16 %v393
    %v2428 = vunpack.c.l.b16 %v394
    %v2429 = vunpack.c.l.b16 %v395
    %v2430 = vunpack.c.l.b16 %v396
    %v2431 = vunpack.c.l.b16 %v397
    %v2432 = vpack.c.b16 %v2425, %v2424
    %v2433 = vpack.c.b16 %v2427, %v2426
    %v2434 = vpack.c.b16 %v2429, %v2428
    %v2435 = vpack.c.b16 %v2431, %v2430
    %vm2440 = vcmask 523264
    %v2442 = vsel %vm2440, %v2410, 0
    %v2445 = vsel %vm2440, %v2411, 0
    %2447 = vmatprep.subr.bf16.mxu0 0
    %2448 = vmatpush1.bf16.msra.mxu0 %v2432
    %2449 = vmatprep.subr.bf16.mxu0 0
    %2450 = vmatpush1.bf16.msra.mxu0 %v2433
    %2451 = vmatprep.subr.bf16.mxu0 0
    %2452 = vmatpush1.bf16.msra.mxu0 %v2434
    %2453 = vmatprep.subr.bf16.mxu0 0
    %2454 = vmatpush1.bf16.msra.mxu0 %v2435
    %2455 = vmatprep.subr.bf16.mxu0 0
    %2456 = vmatpush1.bf16.msra.mxu0 0
    %2457 = vmatprep.subr.bf16.mxu0 0
    %2458 = vmatpush1.bf16.msra.mxu0 0
    %2459 = vmatprep.subr.bf16.mxu0 0
    %2460 = vmatpush1.bf16.msra.mxu0 0
    %2461 = vmatprep.subr.bf16.mxu0 0
    %2462 = vmatpush1.bf16.msra.mxu0 0
    %2463 = vmatprep.subr.bf16.mxu0 0
    %2464 = vmatpush1.bf16.msra.mxu0 0
    %2465 = vmatprep.subr.bf16.mxu0 0
    %2466 = vmatpush1.bf16.msra.mxu0 0
    %2467 = vmatprep.subr.bf16.mxu0 0
    %2468 = vmatpush1.bf16.msra.mxu0 0
    %2469 = vmatprep.subr.bf16.mxu0 0
    %2470 = vmatpush1.bf16.msra.mxu0 0
    %2471 = vmatprep.subr.bf16.mxu0 0
    %2472 = vmatpush1.bf16.msra.mxu0 0
    %2473 = vmatprep.subr.bf16.mxu0 0
    %2474 = vmatpush1.bf16.msra.mxu0 0
    %2475 = vmatprep.subr.bf16.mxu0 0
    %2476 = vmatpush1.bf16.msra.mxu0 0
    %2477 = vmatprep.subr.bf16.mxu0 0
    %2478 = vmatpush1.bf16.msra.mxu0 0
    %2479 = vmatprep.mubr.bf16.mxu0 0
    %2480 = vmatmul.mubr.bf16.gmra.mrb[0].mxu0 %v2442
    %v2481 = vpop.f32.mrb[0].mxu0
    %v2482 = vadd.f32 %v2415, %v2481
    %v2483 = vpop.f32.mrb[0].mxu0
    %v2484 = vpop.f32.mrb[0].mxu0
    %v2485 = vadd.f32 %v2415, %v2484
    %v2486 = vpop.f32.mrb[0].mxu0
    %2487 = vmatprep.mubr.bf16.mxu0 0
    %2488 = vmatmul.mubr.bf16.gmra.mrb[0].mxu0 %v2445
    %v2489 = vpop.f32.mrb[0].mxu0
    %v2490 = vadd.f32 %v2415, %v2489
    %v2491 = vpop.f32.mrb[0].mxu0
    %v2492 = vpop.f32.mrb[0].mxu0
    %v2493 = vadd.f32 %v2415, %v2492
    %v2494 = vpop.f32.mrb[0].mxu0
    %2495 = vdwg.mxu0
    %2497 = vrot.lane.b32.xlu0 %v2485, 32
    %v2498 = vpop.permute.xlu0 %2497
    %2501 = vrot.lane.b32.xlu0 %v2490, 64
    %v2502 = vpop.permute.xlu0 %2501
    %2505 = vrot.lane.b32.xlu0 %v2493, 96
    %v2506 = vpop.permute.xlu0 %2505
    %v2508 = vsel %vm292, %v2482, %v2498
    %v2509 = vsel %vm2440, %v2508, %v2502
    %vm2510 = vcmask 785408
    %v2511 = vsel %vm2510, %v2509, %v2506
    %s2512 = scalar_lea.vmem [#allocation2], 16
    %2513 = vst [vmem:[%s2512] sm:$0xff] %v2511
    %2515 = vrot.lane.b32.xlu0 %v2482, 64
    %v2516 = vpop.permute.xlu0 %2515
    %2517 = vrot.lane.b32.xlu0 %v2485, 64
    %v2518 = vpop.permute.xlu0 %2517
    %2519 = vrot.lane.b32.xlu0 %v2493, 64
    %v2520 = vpop.permute.xlu0 %2519
    %v2524 = vadd.f32 %v2327, %v2516
    %v2525 = vadd.f32 %v2328, %v2518
    %v2526 = vadd.f32 %v2329, %v2502
    %v2527 = vadd.f32 %v2330, %v2520
    %2532 = vrot.lane.b32.xlu0 %v2524, 64
    %v2533 = vpop.permute.xlu0 %2532
    %2534 = vrot.lane.b32.xlu0 %v2525, 64
    %v2535 = vpop.permute.xlu0 %2534
    %2536 = vrot.lane.b32.xlu0 %v2526, 64
    %v2537 = vpop.permute.xlu0 %2536
    %2538 = vrot.lane.b32.xlu0 %v2527, 64
    %v2539 = vpop.permute.xlu0 %2538
    %v2544 = vsel %vm292, %v2533, 0.0
    %2545 = vadd.xlane.f32.xlu0 %v2544
    %v2546 = vpop.xlane.xlu0 %2545
    %v2547 = vsel %vm292, %v2535, 0.0
    %2548 = vadd.xlane.f32.xlu0 %v2547
    %v2549 = vpop.xlane.xlu0 %2548
    %v2550 = vsel %vm292, %v2537, 0.0
    %2551 = vadd.xlane.f32.xlu0 %v2550
    %v2552 = vpop.xlane.xlu0 %2551
    %v2553 = vsel %vm292, %v2539, 0.0
    %2554 = vadd.xlane.f32.xlu0 %v2553
    %v2555 = vpop.xlane.xlu0 %2554
    %v2556 = vmul.f32 %v2546, %v305
    %v2557 = vmul.f32 %v2549, %v305
    %v2558 = vmul.f32 %v2552, %v305
    %v2559 = vmul.f32 %v2555, %v305
    %v2560 = vsub.f32 %v2524, %v2556
    %v2561 = vsub.f32 %v2525, %v2557
    %v2562 = vsub.f32 %v2526, %v2558
    %v2563 = vsub.f32 %v2527, %v2559
    %v2564 = vmul.f32 %v2560, %v2560
    %v2565 = vmul.f32 %v2561, %v2561
    %v2566 = vmul.f32 %v2562, %v2562
    %v2567 = vmul.f32 %v2563, %v2563
    %2572 = vrot.lane.b32.xlu0 %v2564, 64
    %v2573 = vpop.permute.xlu0 %2572
    %2574 = vrot.lane.b32.xlu0 %v2565, 64
    %v2575 = vpop.permute.xlu0 %2574
    %2576 = vrot.lane.b32.xlu0 %v2566, 64
    %v2577 = vpop.permute.xlu0 %2576
    %2578 = vrot.lane.b32.xlu0 %v2567, 64
    %v2579 = vpop.permute.xlu0 %2578
    %v2584 = vsel %vm292, %v2573, 0.0
    %2585 = vadd.xlane.f32.xlu0 %v2584
    %v2586 = vpop.xlane.xlu0 %2585
    %v2587 = vsel %vm292, %v2575, 0.0
    %2588 = vadd.xlane.f32.xlu0 %v2587
    %v2589 = vpop.xlane.xlu0 %2588
    %v2590 = vsel %vm292, %v2577, 0.0
    %2591 = vadd.xlane.f32.xlu0 %v2590
    %v2592 = vpop.xlane.xlu0 %2591
    %v2593 = vsel %vm292, %v2579, 0.0
    %2594 = vadd.xlane.f32.xlu0 %v2593
    %v2595 = vpop.xlane.xlu0 %2594
    %v2596 = vmul.f32 %v2586, %v305
    %v2597 = vmul.f32 %v2589, %v305
    %v2598 = vmul.f32 %v2592, %v305
    %v2599 = vmul.f32 %v2595, %v305
    %v2600 = vadd.f32 %v2596, 1e-05
    %v2601 = vadd.f32 %v2597, 1e-05
    %v2602 = vadd.f32 %v2598, 1e-05
    %v2603 = vadd.f32 %v2599, 1e-05
    %v2604 = vrsqrt.pop %v2600
    %v2605 = vrsqrt.pop %v2601
    %v2606 = vrsqrt.pop %v2602
    %v2607 = vrsqrt.pop %v2603
    %v2608 = vmul.f32 %v2560, %v2604
    %v2609 = vmul.f32 %v2561, %v2605
    %v2610 = vmul.f32 %v2562, %v2606
    %v2611 = vmul.f32 %v2563, %v2607
    %v2612 = vlaneseq
    %v2613 = vshrl.u32 %v2612, 7
    %v2614 = vsub.s32 1, %v2613
    %v2615 = vrot.slane %v27, %v2614
    %2617 = vrot.lane.b32.xlu0 %v2615, 64
    %v2618 = vpop.permute.xlu0 %2617
    %v2620 = vmul.f32 %v2608, %v2618
    %v2621 = vmul.f32 %v2609, %v2618
    %v2622 = vmul.f32 %v2610, %v2618
    %v2623 = vmul.f32 %v2611, %v2618
    %v2624 = vlaneseq
    %v2625 = vshrl.u32 %v2624, 7
    %v2626 = vsub.s32 2, %v2625
    %v2627 = vrot.slane %v27, %v2626
    %2629 = vrot.lane.b32.xlu0 %v2627, 64
    %v2630 = vpop.permute.xlu0 %2629
    %v2632 = vadd.f32 %v2620, %v2630
    %v2633 = vadd.f32 %v2621, %v2630
    %v2634 = vadd.f32 %v2622, %v2630
    %v2635 = vadd.f32 %v2623, %v2630
    %2637 = vrot.lane.b32.xlu0 %v2632, 64
    %v2638 = vpop.permute.xlu0 %2637
    %2641 = vrot.lane.b32.xlu0 %v2633, 96
    %v2642 = vpop.permute.xlu0 %2641
    %2645 = vrot.lane.b32.xlu0 %v2635, 32
    %v2646 = vpop.permute.xlu0 %2645
    %v2648 = vsel %vm292, %v2638, %v2642
    %v2649 = vsel %vm2440, %v2648, %v2634
    %v2650 = vsel %vm2510, %v2649, %v2646
    %2651 = vst [vmem:[#allocation2] sm:$0xff] %v2650
    %s2652 = scalar_lea.vmem %s3, 32
    %v2653 = vld [vmem:[%s2652] sm:$0xff]
    %v2654 = vld [vmem:[%s2652 + $0x8] sm:$0xff]
    %v2655 = vld [vmem:[%s2652 + $0x10] sm:$0xff]
    %v2656 = vld [vmem:[%s2652 + $0x18] sm:$0xff]
    %s2657 = scalar_lea.vmem %s4, 32
    %v2658 = vld [vmem:[%s2657] sm:$0xf]
    %v2659 = vld [vmem:[%s2657 + $0x4] sm:$0xf]
    %v2660 = vld [vmem:[%s2657 + $0x8] sm:$0xf]
    %v2661 = vld [vmem:[%s2657 + $0xc] sm:$0xf]
    %v2662 = vld [vmem:[%s2657 + $0x10] sm:$0xf]
    %v2663 = vld [vmem:[%s2657 + $0x14] sm:$0xf]
    %v2664 = vld [vmem:[%s2657 + $0x18] sm:$0xf]
    %v2665 = vld [vmem:[%s2657 + $0x1c] sm:$0xf]
    %v2666 = vpack.c.bf16 %v2633, %v2632
    %v2667 = vpack.c.bf16 %v2635, %v2634
    %v2668 = vlaneseq
    %v2669 = vshrl.u32 %v2668, 7
    %v2670 = vsub.s32 3, %v2669
    %v2671 = vrot.slane %v27, %v2670
    %2674 = vrot.lane.b32.xlu0 %v2666, 64
    %v2675 = vpop.permute.xlu0 %2674
    %2676 = vrot.lane.b32.xlu0 %v2667, 64
    %v2677 = vpop.permute.xlu0 %2676
    %v2682 = vunpack.c.l.b16 %v2653
    %v2683 = vunpack.c.l.b16 %v2654
    %v2684 = vunpack.c.l.b16 %v2655
    %v2685 = vunpack.c.l.b16 %v2656
    %v2686 = vpack.c.b16 %v2683, %v2682
    %v2687 = vpack.c.b16 %v2685, %v2684
    %v2691 = vsel %vm292, %v2675, 0
    %v2694 = vsel %vm292, %v2677, 0
    %2696 = vmatprep.subr.bf16.mxu0 0
    %2697 = vmatpush1.bf16.msra.mxu0 %v2686
    %2698 = vmatprep.subr.bf16.mxu0 0
    %2699 = vmatpush1.bf16.msra.mxu0 %v2687
    %2700 = vmatprep.subr.bf16.mxu0 0
    %2701 = vmatpush1.bf16.msra.mxu0 0
    %2702 = vmatprep.subr.bf16.mxu0 0
    %2703 = vmatpush1.bf16.msra.mxu0 0
    %2704 = vmatprep.subr.bf16.mxu0 0
    %2705 = vmatpush1.bf16.msra.mxu0 0
    %2706 = vmatprep.subr.bf16.mxu0 0
    %2707 = vmatpush1.bf16.msra.mxu0 0
    %2708 = vmatprep.subr.bf16.mxu0 0
    %2709 = vmatpush1.bf16.msra.mxu0 0
    %2710 = vmatprep.subr.bf16.mxu0 0
    %2711 = vmatpush1.bf16.msra.mxu0 0
    %2712 = vmatprep.subr.bf16.mxu0 0
    %2713 = vmatpush1.bf16.msra.mxu0 0
    %2714 = vmatprep.subr.bf16.mxu0 0
    %2715 = vmatpush1.bf16.msra.mxu0 0
    %2716 = vmatprep.subr.bf16.mxu0 0
    %2717 = vmatpush1.bf16.msra.mxu0 0
    %2718 = vmatprep.subr.bf16.mxu0 0
    %2719 = vmatpush1.bf16.msra.mxu0 0
    %2720 = vmatprep.subr.bf16.mxu0 0
    %2721 = vmatpush1.bf16.msra.mxu0 0
    %2722 = vmatprep.subr.bf16.mxu0 0
    %2723 = vmatpush1.bf16.msra.mxu0 0
    %2724 = vmatprep.subr.bf16.mxu0 0
    %2725 = vmatpush1.bf16.msra.mxu0 0
    %2726 = vmatprep.subr.bf16.mxu0 0
    %2727 = vmatpush1.bf16.msra.mxu0 0
    %2728 = vmatprep.mubr.bf16.mxu0 0
    %2729 = vmatmul.mubr.bf16.gmra.mrb[0].mxu0 %v2691
    %v2730 = vpop.f32.mrb[0].mxu0
    %v2731 = vadd.f32 %v2671, %v2730
    %v2732 = vpop.f32.mrb[0].mxu0
    %v2733 = vpop.f32.mrb[0].mxu0
    %v2734 = vadd.f32 %v2671, %v2733
    %v2735 = vpop.f32.mrb[0].mxu0
    %2736 = vmatprep.mubr.bf16.mxu0 0
    %2737 = vmatmul.mubr.bf16.gmra.mrb[0].mxu0 %v2694
    %v2738 = vpop.f32.mrb[0].mxu0
    %v2739 = vadd.f32 %v2671, %v2738
    %v2740 = vpop.f32.mrb[0].mxu0
    %v2741 = vpop.f32.mrb[0].mxu0
    %v2742 = vadd.f32 %v2671, %v2741
    %v2743 = vpop.f32.mrb[0].mxu0
    %2744 = vdwg.mxu0
    %2747 = vrot.lane.b32.xlu0 %v2731, 96
    %v2748 = vpop.permute.xlu0 %2747
    %2749 = vrot.lane.b32.xlu0 %v2734, 96
    %v2750 = vpop.permute.xlu0 %2749
    %v2751 = vsel %vm483, %v2731, 0
    %v2753 = vsel %vm483, %v2734, 0
    %v2755 = vsel %vm483, %v2748, 0
    %v2757 = vsel %vm483, %v2750, 0
    %2759 = vmatprep.subr.mxu0 0.0
    %2760 = vmatpush1.xpose.msra.mxu0 %v2755
    %2761 = vmatprep.subr.mxu0 0.0
    %2762 = vmatpush1.xpose.msra.mxu0 %v2757
    %2763 = vmatprep.subr.mxu0 0.0
    %2764 = vmatpush1.xpose.msra.mxu0 0.0
    %2765 = vmatprep.subr.mxu0 0.0
    %2766 = vmatpush1.xpose.msra.mxu0 0.0
    %2767 = vmatprep.subr.mxu0 0.0
    %2768 = vmatpush1.xpose.msra.mxu0 0.0
    %2769 = vmatprep.subr.mxu0 0.0
    %2770 = vmatpush1.xpose.msra.mxu0 0.0
    %2771 = vmatprep.subr.mxu0 0.0
    %2772 = vmatpush1.xpose.msra.mxu0 0.0
    %2773 = vmatprep.subr.mxu0 0.0
    %2774 = vmatpush1.xpose.msra.mxu0 0.0
    %2775 = vmatprep.subr.mxu0 0.0
    %2776 = vmatpush1.xpose.msra.mxu0 0.0
    %2777 = vmatprep.subr.mxu0 0.0
    %2778 = vmatpush1.xpose.msra.mxu0 0.0
    %2779 = vmatprep.subr.mxu0 0.0
    %2780 = vmatpush1.xpose.msra.mxu0 0.0
    %2781 = vmatprep.subr.mxu0 0.0
    %2782 = vmatpush1.xpose.msra.mxu0 0.0
    %2783 = vmatprep.subr.mxu0 0.0
    %2784 = vmatpush1.xpose.msra.mxu0 0.0
    %2785 = vmatprep.subr.mxu0 0.0
    %2786 = vmatpush1.xpose.msra.mxu0 0.0
    %2787 = vmatprep.subr.mxu0 0.0
    %2788 = vmatpush1.xpose.msra.mxu0 0.0
    %2789 = vmatprep.subr.mxu0 0.0
    %2790 = vmatpush1.xpose.msra.mxu0 0.0
    %2791 = vmatprep.subr.mxu0 0.0
    %2792 = vmatpush1.xpose.msra.mxu0 0.0
    %2793 = vmatprep.subr.mxu0 0.0
    %2794 = vmatpush1.xpose.msra.mxu0 0.0
    %2795 = vmatprep.subr.mxu0 0.0
    %2796 = vmatpush1.xpose.msra.mxu0 0.0
    %2797 = vmatprep.subr.mxu0 0.0
    %2798 = vmatpush1.xpose.msra.mxu0 0.0
    %2799 = vmatprep.subr.mxu0 0.0
    %2800 = vmatpush1.xpose.msra.mxu0 0.0
    %2801 = vmatprep.subr.mxu0 0.0
    %2802 = vmatpush1.xpose.msra.mxu0 0.0
    %2803 = vmatprep.subr.mxu0 0.0
    %2804 = vmatpush1.xpose.msra.mxu0 0.0
    %2805 = vmatprep.subr.mxu0 0.0
    %2806 = vmatpush1.xpose.msra.mxu0 0.0
    %2807 = vmatprep.subr.mxu0 0.0
    %2808 = vmatpush1.xpose.msra.mxu0 0.0
    %2809 = vmatprep.subr.mxu0 0.0
    %2810 = vmatpush1.xpose.msra.mxu0 0.0
    %2811 = vmatprep.subr.mxu0 0.0
    %2812 = vmatpush1.xpose.msra.mxu0 0.0
    %2813 = vmatprep.subr.mxu0 0.0
    %2814 = vmatpush1.xpose.msra.mxu0 0.0
    %2815 = vmatprep.subr.mxu0 0.0
    %2816 = vmatpush1.xpose.msra.mxu0 0.0
    %2817 = vmatprep.subr.mxu0 0.0
    %2818 = vmatpush1.xpose.msra.mxu0 0.0
    %2819 = vmatprep.subr.mxu0 0.0
    %2820 = vmatpush1.xpose.msra.mxu0 0.0
    %2821 = vmatprep.subr.mxu0 0.0
    %2822 = vmatpush1.xpose.msra.mxu0 0.0
    %2823 = vmatprep.mubr.f32.mxu0 0.0
    %2824 = vmatmul.mubr.f32.gmra.mrb[0].mxu0 %v2751
    %v2825 = vpop.f32.mrb[0].mxu0
    %v2826 = vadd.f32 0.0, %v2825
    %v2827 = vpop.f32.mrb[0].mxu0
    %2828 = vmatprep.mubr.f32.mxu0 0.0
    %2829 = vmatmul.mubr.f32.gmra.mrb[0].mxu0 %v2753
    %v2830 = vpop.f32.mrb[0].mxu0
    %v2831 = vadd.f32 0.0, %v2830
    %v2832 = vpop.f32.mrb[0].mxu0
    %2833 = vdwg.mxu0
    %2836 = vrot.lane.b32.xlu0 %v2739, 96
    %v2837 = vpop.permute.xlu0 %2836
    %2838 = vrot.lane.b32.xlu0 %v2742, 96
    %v2839 = vpop.permute.xlu0 %2838
    %v2840 = vsel %vm483, %v2739, 0
    %v2842 = vsel %vm483, %v2742, 0
    %v2844 = vsel %vm483, %v2837, 0
    %v2846 = vsel %vm483, %v2839, 0
    %2848 = vmatprep.subr.mxu0 0.0
    %2849 = vmatpush1.xpose.msra.mxu0 %v2844
    %2850 = vmatprep.subr.mxu0 0.0
    %2851 = vmatpush1.xpose.msra.mxu0 %v2846
    %2852 = vmatprep.subr.mxu0 0.0
    %2853 = vmatpush1.xpose.msra.mxu0 0.0
    %2854 = vmatprep.subr.mxu0 0.0
    %2855 = vmatpush1.xpose.msra.mxu0 0.0
    %2856 = vmatprep.subr.mxu0 0.0
    %2857 = vmatpush1.xpose.msra.mxu0 0.0
    %2858 = vmatprep.subr.mxu0 0.0
    %2859 = vmatpush1.xpose.msra.mxu0 0.0
    %2860 = vmatprep.subr.mxu0 0.0
    %2861 = vmatpush1.xpose.msra.mxu0 0.0
    %2862 = vmatprep.subr.mxu0 0.0
    %2863 = vmatpush1.xpose.msra.mxu0 0.0
    %2864 = vmatprep.subr.mxu0 0.0
    %2865 = vmatpush1.xpose.msra.mxu0 0.0
    %2866 = vmatprep.subr.mxu0 0.0
    %2867 = vmatpush1.xpose.msra.mxu0 0.0
    %2868 = vmatprep.subr.mxu0 0.0
    %2869 = vmatpush1.xpose.msra.mxu0 0.0
    %2870 = vmatprep.subr.mxu0 0.0
    %2871 = vmatpush1.xpose.msra.mxu0 0.0
    %2872 = vmatprep.subr.mxu0 0.0
    %2873 = vmatpush1.xpose.msra.mxu0 0.0
    %2874 = vmatprep.subr.mxu0 0.0
    %2875 = vmatpush1.xpose.msra.mxu0 0.0
    %2876 = vmatprep.subr.mxu0 0.0
    %2877 = vmatpush1.xpose.msra.mxu0 0.0
    %2878 = vmatprep.subr.mxu0 0.0
    %2879 = vmatpush1.xpose.msra.mxu0 0.0
    %2880 = vmatprep.subr.mxu0 0.0
    %2881 = vmatpush1.xpose.msra.mxu0 0.0
    %2882 = vmatprep.subr.mxu0 0.0
    %2883 = vmatpush1.xpose.msra.mxu0 0.0
    %2884 = vmatprep.subr.mxu0 0.0
    %2885 = vmatpush1.xpose.msra.mxu0 0.0
    %2886 = vmatprep.subr.mxu0 0.0
    %2887 = vmatpush1.xpose.msra.mxu0 0.0
    %2888 = vmatprep.subr.mxu0 0.0
    %2889 = vmatpush1.xpose.msra.mxu0 0.0
    %2890 = vmatprep.subr.mxu0 0.0
    %2891 = vmatpush1.xpose.msra.mxu0 0.0
    %2892 = vmatprep.subr.mxu0 0.0
    %2893 = vmatpush1.xpose.msra.mxu0 0.0
    %2894 = vmatprep.subr.mxu0 0.0
    %2895 = vmatpush1.xpose.msra.mxu0 0.0
    %2896 = vmatprep.subr.mxu0 0.0
    %2897 = vmatpush1.xpose.msra.mxu0 0.0
    %2898 = vmatprep.subr.mxu0 0.0
    %2899 = vmatpush1.xpose.msra.mxu0 0.0
    %2900 = vmatprep.subr.mxu0 0.0
    %2901 = vmatpush1.xpose.msra.mxu0 0.0
    %2902 = vmatprep.subr.mxu0 0.0
    %2903 = vmatpush1.xpose.msra.mxu0 0.0
    %2904 = vmatprep.subr.mxu0 0.0
    %2905 = vmatpush1.xpose.msra.mxu0 0.0
    %2906 = vmatprep.subr.mxu0 0.0
    %2907 = vmatpush1.xpose.msra.mxu0 0.0
    %2908 = vmatprep.subr.mxu0 0.0
    %2909 = vmatpush1.xpose.msra.mxu0 0.0
    %2910 = vmatprep.subr.mxu0 0.0
    %2911 = vmatpush1.xpose.msra.mxu0 0.0
    %2912 = vmatprep.mubr.f32.mxu0 0.0
    %2913 = vmatmul.mubr.f32.gmra.mrb[0].mxu0 %v2840
    %v2914 = vpop.f32.mrb[0].mxu0
    %v2915 = vadd.f32 0.0, %v2914
    %v2916 = vpop.f32.mrb[0].mxu0
    %2917 = vmatprep.mubr.f32.mxu0 0.0
    %2918 = vmatmul.mubr.f32.gmra.mrb[0].mxu0 %v2842
    %v2919 = vpop.f32.mrb[0].mxu0
    %v2920 = vadd.f32 0.0, %v2919
    %v2921 = vpop.f32.mrb[0].mxu0
    %2922 = vdwg.mxu0
    %v2923 = vsel %vm656, %v2826, -inf
    %2924 = vmax.xlane.f32.xlu0 %v2923
    %v2925 = vpop.xlane.xlu0 %2924
    %v2926 = vsel %vm656, %v2831, -inf
    %2927 = vmax.xlane.f32.xlu0 %v2926
    %v2928 = vpop.xlane.xlu0 %2927
    %v2929 = vsel %vm656, %v2915, -inf
    %2930 = vmax.xlane.f32.xlu0 %v2929
    %v2931 = vpop.xlane.xlu0 %2930
    %v2932 = vsel %vm656, %v2920, -inf
    %2933 = vmax.xlane.f32.xlu0 %v2932
    %v2934 = vpop.xlane.xlu0 %2933
    %v2935 = vsub.f32 %v2826, %v2925
    %v2936 = vsub.f32 %v2831, %v2928
    %v2937 = vsub.f32 %v2915, %v2931
    %v2938 = vsub.f32 %v2920, %v2934
    %v2939 = vmul.f32 %v2935, 1.442695
    %v2940 = vpow.pop %v2939
    %v2941 = vmul.f32 %v2936, 1.442695
    %v2942 = vpow.pop %v2941
    %v2943 = vmul.f32 %v2937, 1.442695
    %v2944 = vpow.pop %v2943
    %v2945 = vmul.f32 %v2938, 1.442695
    %v2946 = vpow.pop %v2945
    %v2947 = vsel %vm656, %v2940, 0.0
    %2948 = vadd.xlane.f32.xlu0 %v2947
    %v2949 = vpop.xlane.xlu0 %2948
    %v2950 = vsel %vm656, %v2942, 0.0
    %2951 = vadd.xlane.f32.xlu0 %v2950
    %v2952 = vpop.xlane.xlu0 %2951
    %v2953 = vsel %vm656, %v2944, 0.0
    %2954 = vadd.xlane.f32.xlu0 %v2953
    %v2955 = vpop.xlane.xlu0 %2954
    %v2956 = vsel %vm656, %v2946, 0.0
    %2957 = vadd.xlane.f32.xlu0 %v2956
    %v2958 = vpop.xlane.xlu0 %2957
    %v2959 = vrcp.pop %v2949
    %v2960 = vrcp.pop %v2952
    %v2961 = vrcp.pop %v2955
    %v2962 = vrcp.pop %v2958
    %v2963 = vmul.f32 %v2940, %v2959
    %v2964 = vmul.f32 %v2942, %v2960
    %v2965 = vmul.f32 %v2944, %v2961
    %v2966 = vmul.f32 %v2946, %v2962
    %2967 = vrot.lane.b32.xlu0 %v2731, 64
    %v2968 = vpop.permute.xlu0 %2967
    %2969 = vrot.lane.b32.xlu0 %v2734, 64
    %v2970 = vpop.permute.xlu0 %2969
    %v2974 = vsel %vm656, %v2963, 0
    %v2977 = vsel %vm656, %v2964, 0
    %2979 = vmatprep.subr.mxu0 0.0
    %2980 = vmatpush1.msra.mxu0 %v2968
    %2981 = vmatprep.subr.mxu0 0.0
    %2982 = vmatpush1.msra.mxu0 %v2970
    %2983 = vmatprep.subr.mxu0 0.0
    %2984 = vmatpush1.msra.mxu0 0.0
    %2985 = vmatprep.subr.mxu0 0.0
    %2986 = vmatpush1.msra.mxu0 0.0
    %2987 = vmatprep.subr.mxu0 0.0
    %2988 = vmatpush1.msra.mxu0 0.0
    %2989 = vmatprep.subr.mxu0 0.0
    %2990 = vmatpush1.msra.mxu0 0.0
    %2991 = vmatprep.subr.mxu0 0.0
    %2992 = vmatpush1.msra.mxu0 0.0
    %2993 = vmatprep.subr.mxu0 0.0
    %2994 = vmatpush1.msra.mxu0 0.0
    %2995 = vmatprep.subr.mxu0 0.0
    %2996 = vmatpush1.msra.mxu0 0.0
    %2997 = vmatprep.subr.mxu0 0.0
    %2998 = vmatpush1.msra.mxu0 0.0
    %2999 = vmatprep.subr.mxu0 0.0
    %3000 = vmatpush1.msra.mxu0 0.0
    %3001 = vmatprep.subr.mxu0 0.0
    %3002 = vmatpush1.msra.mxu0 0.0
    %3003 = vmatprep.subr.mxu0 0.0
    %3004 = vmatpush1.msra.mxu0 0.0
    %3005 = vmatprep.subr.mxu0 0.0
    %3006 = vmatpush1.msra.mxu0 0.0
    %3007 = vmatprep.subr.mxu0 0.0
    %3008 = vmatpush1.msra.mxu0 0.0
    %3009 = vmatprep.subr.mxu0 0.0
    %3010 = vmatpush1.msra.mxu0 0.0
    %3011 = vmatprep.subr.mxu0 0.0
    %3012 = vmatpush1.msra.mxu0 0.0
    %3013 = vmatprep.subr.mxu0 0.0
    %3014 = vmatpush1.msra.mxu0 0.0
    %3015 = vmatprep.subr.mxu0 0.0
    %3016 = vmatpush1.msra.mxu0 0.0
    %3017 = vmatprep.subr.mxu0 0.0
    %3018 = vmatpush1.msra.mxu0 0.0
    %3019 = vmatprep.subr.mxu0 0.0
    %3020 = vmatpush1.msra.mxu0 0.0
    %3021 = vmatprep.subr.mxu0 0.0
    %3022 = vmatpush1.msra.mxu0 0.0
    %3023 = vmatprep.subr.mxu0 0.0
    %3024 = vmatpush1.msra.mxu0 0.0
    %3025 = vmatprep.subr.mxu0 0.0
    %3026 = vmatpush1.msra.mxu0 0.0
    %3027 = vmatprep.subr.mxu0 0.0
    %3028 = vmatpush1.msra.mxu0 0.0
    %3029 = vmatprep.subr.mxu0 0.0
    %3030 = vmatpush1.msra.mxu0 0.0
    %3031 = vmatprep.subr.mxu0 0.0
    %3032 = vmatpush1.msra.mxu0 0.0
    %3033 = vmatprep.subr.mxu0 0.0
    %3034 = vmatpush1.msra.mxu0 0.0
    %3035 = vmatprep.subr.mxu0 0.0
    %3036 = vmatpush1.msra.mxu0 0.0
    %3037 = vmatprep.subr.mxu0 0.0
    %3038 = vmatpush1.msra.mxu0 0.0
    %3039 = vmatprep.subr.mxu0 0.0
    %3040 = vmatpush1.msra.mxu0 0.0
    %3041 = vmatprep.subr.mxu0 0.0
    %3042 = vmatpush1.msra.mxu0 0.0
    %3043 = vmatprep.mubr.f32.mxu0 0.0
    %3044 = vmatmul.mubr.f32.gmra.mrb[0].mxu0 %v2974
    %v3045 = vpop.f32.mrb[0].mxu0
    %v3046 = vadd.f32 0.0, %v3045
    %v3047 = vpop.f32.mrb[0].mxu0
    %3048 = vmatprep.mubr.f32.mxu0 0.0
    %3049 = vmatmul.mubr.f32.gmra.mrb[0].mxu0 %v2977
    %v3050 = vpop.f32.mrb[0].mxu0
    %v3051 = vadd.f32 0.0, %v3050
    %v3052 = vpop.f32.mrb[0].mxu0
    %3053 = vdwg.mxu0
    %3054 = vrot.lane.b32.xlu0 %v2739, 64
    %v3055 = vpop.permute.xlu0 %3054
    %3056 = vrot.lane.b32.xlu0 %v2742, 64
    %v3057 = vpop.permute.xlu0 %3056
    %v3061 = vsel %vm656, %v2965, 0
    %v3064 = vsel %vm656, %v2966, 0
    %3066 = vmatprep.subr.mxu0 0.0
    %3067 = vmatpush1.msra.mxu0 %v3055
    %3068 = vmatprep.subr.mxu0 0.0
    %3069 = vmatpush1.msra.mxu0 %v3057
    %3070 = vmatprep.subr.mxu0 0.0
    %3071 = vmatpush1.msra.mxu0 0.0
    %3072 = vmatprep.subr.mxu0 0.0
    %3073 = vmatpush1.msra.mxu0 0.0
    %3074 = vmatprep.subr.mxu0 0.0
    %3075 = vmatpush1.msra.mxu0 0.0
    %3076 = vmatprep.subr.mxu0 0.0
    %3077 = vmatpush1.msra.mxu0 0.0
    %3078 = vmatprep.subr.mxu0 0.0
    %3079 = vmatpush1.msra.mxu0 0.0
    %3080 = vmatprep.subr.mxu0 0.0
    %3081 = vmatpush1.msra.mxu0 0.0
    %3082 = vmatprep.subr.mxu0 0.0
    %3083 = vmatpush1.msra.mxu0 0.0
    %3084 = vmatprep.subr.mxu0 0.0
    %3085 = vmatpush1.msra.mxu0 0.0
    %3086 = vmatprep.subr.mxu0 0.0
    %3087 = vmatpush1.msra.mxu0 0.0
    %3088 = vmatprep.subr.mxu0 0.0
    %3089 = vmatpush1.msra.mxu0 0.0
    %3090 = vmatprep.subr.mxu0 0.0
    %3091 = vmatpush1.msra.mxu0 0.0
    %3092 = vmatprep.subr.mxu0 0.0
    %3093 = vmatpush1.msra.mxu0 0.0
    %3094 = vmatprep.subr.mxu0 0.0
    %3095 = vmatpush1.msra.mxu0 0.0
    %3096 = vmatprep.subr.mxu0 0.0
    %3097 = vmatpush1.msra.mxu0 0.0
    %3098 = vmatprep.subr.mxu0 0.0
    %3099 = vmatpush1.msra.mxu0 0.0
    %3100 = vmatprep.subr.mxu0 0.0
    %3101 = vmatpush1.msra.mxu0 0.0
    %3102 = vmatprep.subr.mxu0 0.0
    %3103 = vmatpush1.msra.mxu0 0.0
    %3104 = vmatprep.subr.mxu0 0.0
    %3105 = vmatpush1.msra.mxu0 0.0
    %3106 = vmatprep.subr.mxu0 0.0
    %3107 = vmatpush1.msra.mxu0 0.0
    %3108 = vmatprep.subr.mxu0 0.0
    %3109 = vmatpush1.msra.mxu0 0.0
    %3110 = vmatprep.subr.mxu0 0.0
    %3111 = vmatpush1.msra.mxu0 0.0
    %3112 = vmatprep.subr.mxu0 0.0
    %3113 = vmatpush1.msra.mxu0 0.0
    %3114 = vmatprep.subr.mxu0 0.0
    %3115 = vmatpush1.msra.mxu0 0.0
    %3116 = vmatprep.subr.mxu0 0.0
    %3117 = vmatpush1.msra.mxu0 0.0
    %3118 = vmatprep.subr.mxu0 0.0
    %3119 = vmatpush1.msra.mxu0 0.0
    %3120 = vmatprep.subr.mxu0 0.0
    %3121 = vmatpush1.msra.mxu0 0.0
    %3122 = vmatprep.subr.mxu0 0.0
    %3123 = vmatpush1.msra.mxu0 0.0
    %3124 = vmatprep.subr.mxu0 0.0
    %3125 = vmatpush1.msra.mxu0 0.0
    %3126 = vmatprep.subr.mxu0 0.0
    %3127 = vmatpush1.msra.mxu0 0.0
    %3128 = vmatprep.subr.mxu0 0.0
    %3129 = vmatpush1.msra.mxu0 0.0
    %3130 = vmatprep.mubr.f32.mxu0 0.0
    %3131 = vmatmul.mubr.f32.gmra.mrb[0].mxu0 %v3061
    %v3132 = vpop.f32.mrb[0].mxu0
    %v3133 = vadd.f32 0.0, %v3132
    %v3134 = vpop.f32.mrb[0].mxu0
    %3135 = vmatprep.mubr.f32.mxu0 0.0
    %3136 = vmatmul.mubr.f32.gmra.mrb[0].mxu0 %v3064
    %v3137 = vpop.f32.mrb[0].mxu0
    %v3138 = vadd.f32 0.0, %v3137
    %v3139 = vpop.f32.mrb[0].mxu0
    %3140 = vdwg.mxu0
    %3141 = vrot.lane.b32.xlu0 %v2731, 120
    %v3142 = vpop.permute.xlu0 %3141
    %3143 = vrot.lane.b32.xlu0 %v2734, 120
    %v3144 = vpop.permute.xlu0 %3143
    %3145 = vrot.lane.b32.xlu0 %v2731, 88
    %v3146 = vpop.permute.xlu0 %3145
    %3147 = vrot.lane.b32.xlu0 %v2734, 88
    %v3148 = vpop.permute.xlu0 %3147
    %v3149 = vsel %vm483, %v3142, 0
    %v3151 = vsel %vm483, %v3144, 0
    %v3153 = vsel %vm483, %v3146, 0
    %v3155 = vsel %vm483, %v3148, 0
    %3157 = vmatprep.subr.mxu0 0.0
    %3158 = vmatpush1.xpose.msra.mxu0 %v3153
    %3159 = vmatprep.subr.mxu0 0.0
    %3160 = vmatpush1.xpose.msra.mxu0 %v3155
    %3161 = vmatprep.subr.mxu0 0.0
    %3162 = vmatpush1.xpose.msra.mxu0 0.0
    %3163 = vmatprep.subr.mxu0 0.0
    %3164 = vmatpush1.xpose.msra.mxu0 0.0
    %3165 = vmatprep.subr.mxu0 0.0
    %3166 = vmatpush1.xpose.msra.mxu0 0.0
    %3167 = vmatprep.subr.mxu0 0.0
    %3168 = vmatpush1.xpose.msra.mxu0 0.0
    %3169 = vmatprep.subr.mxu0 0.0
    %3170 = vmatpush1.xpose.msra.mxu0 0.0
    %3171 = vmatprep.subr.mxu0 0.0
    %3172 = vmatpush1.xpose.msra.mxu0 0.0
    %3173 = vmatprep.subr.mxu0 0.0
    %3174 = vmatpush1.xpose.msra.mxu0 0.0
    %3175 = vmatprep.subr.mxu0 0.0
    %3176 = vmatpush1.xpose.msra.mxu0 0.0
    %3177 = vmatprep.subr.mxu0 0.0
    %3178 = vmatpush1.xpose.msra.mxu0 0.0
    %3179 = vmatprep.subr.mxu0 0.0
    %3180 = vmatpush1.xpose.msra.mxu0 0.0
    %3181 = vmatprep.subr.mxu0 0.0
    %3182 = vmatpush1.xpose.msra.mxu0 0.0
    %3183 = vmatprep.subr.mxu0 0.0
    %3184 = vmatpush1.xpose.msra.mxu0 0.0
    %3185 = vmatprep.subr.mxu0 0.0
    %3186 = vmatpush1.xpose.msra.mxu0 0.0
    %3187 = vmatprep.subr.mxu0 0.0
    %3188 = vmatpush1.xpose.msra.mxu0 0.0
    %3189 = vmatprep.subr.mxu0 0.0
    %3190 = vmatpush1.xpose.msra.mxu0 0.0
    %3191 = vmatprep.subr.mxu0 0.0
    %3192 = vmatpush1.xpose.msra.mxu0 0.0
    %3193 = vmatprep.subr.mxu0 0.0
    %3194 = vmatpush1.xpose.msra.mxu0 0.0
    %3195 = vmatprep.subr.mxu0 0.0
    %3196 = vmatpush1.xpose.msra.mxu0 0.0
    %3197 = vmatprep.subr.mxu0 0.0
    %3198 = vmatpush1.xpose.msra.mxu0 0.0
    %3199 = vmatprep.subr.mxu0 0.0
    %3200 = vmatpush1.xpose.msra.mxu0 0.0
    %3201 = vmatprep.subr.mxu0 0.0
    %3202 = vmatpush1.xpose.msra.mxu0 0.0
    %3203 = vmatprep.subr.mxu0 0.0
    %3204 = vmatpush1.xpose.msra.mxu0 0.0
    %3205 = vmatprep.subr.mxu0 0.0
    %3206 = vmatpush1.xpose.msra.mxu0 0.0
    %3207 = vmatprep.subr.mxu0 0.0
    %3208 = vmatpush1.xpose.msra.mxu0 0.0
    %3209 = vmatprep.subr.mxu0 0.0
    %3210 = vmatpush1.xpose.msra.mxu0 0.0
    %3211 = vmatprep.subr.mxu0 0.0
    %3212 = vmatpush1.xpose.msra.mxu0 0.0
    %3213 = vmatprep.subr.mxu0 0.0
    %3214 = vmatpush1.xpose.msra.mxu0 0.0
    %3215 = vmatprep.subr.mxu0 0.0
    %3216 = vmatpush1.xpose.msra.mxu0 0.0
    %3217 = vmatprep.subr.mxu0 0.0
    %3218 = vmatpush1.xpose.msra.mxu0 0.0
    %3219 = vmatprep.subr.mxu0 0.0
    %3220 = vmatpush1.xpose.msra.mxu0 0.0
    %3221 = vmatprep.mubr.f32.mxu0 0.0
    %3222 = vmatmul.mubr.f32.gmra.mrb[0].mxu0 %v3149
    %v3223 = vpop.f32.mrb[0].mxu0
    %v3224 = vadd.f32 0.0, %v3223
    %v3225 = vpop.f32.mrb[0].mxu0
    %3226 = vmatprep.mubr.f32.mxu0 0.0
    %3227 = vmatmul.mubr.f32.gmra.mrb[0].mxu0 %v3151
    %v3228 = vpop.f32.mrb[0].mxu0
    %v3229 = vadd.f32 0.0, %v3228
    %v3230 = vpop.f32.mrb[0].mxu0
    %3231 = vdwg.mxu0
    %3232 = vrot.lane.b32.xlu0 %v2739, 120
    %v3233 = vpop.permute.xlu0 %3232
    %3234 = vrot.lane.b32.xlu0 %v2742, 120
    %v3235 = vpop.permute.xlu0 %3234
    %3236 = vrot.lane.b32.xlu0 %v2739, 88
    %v3237 = vpop.permute.xlu0 %3236
    %3238 = vrot.lane.b32.xlu0 %v2742, 88
    %v3239 = vpop.permute.xlu0 %3238
    %v3240 = vsel %vm483, %v3233, 0
    %v3242 = vsel %vm483, %v3235, 0
    %v3244 = vsel %vm483, %v3237, 0
    %v3246 = vsel %vm483, %v3239, 0
    %3248 = vmatprep.subr.mxu0 0.0
    %3249 = vmatpush1.xpose.msra.mxu0 %v3244
    %3250 = vmatprep.subr.mxu0 0.0
    %3251 = vmatpush1.xpose.msra.mxu0 %v3246
    %3252 = vmatprep.subr.mxu0 0.0
    %3253 = vmatpush1.xpose.msra.mxu0 0.0
    %3254 = vmatprep.subr.mxu0 0.0
    %3255 = vmatpush1.xpose.msra.mxu0 0.0
    %3256 = vmatprep.subr.mxu0 0.0
    %3257 = vmatpush1.xpose.msra.mxu0 0.0
    %3258 = vmatprep.subr.mxu0 0.0
    %3259 = vmatpush1.xpose.msra.mxu0 0.0
    %3260 = vmatprep.subr.mxu0 0.0
    %3261 = vmatpush1.xpose.msra.mxu0 0.0
    %3262 = vmatprep.subr.mxu0 0.0
    %3263 = vmatpush1.xpose.msra.mxu0 0.0
    %3264 = vmatprep.subr.mxu0 0.0
    %3265 = vmatpush1.xpose.msra.mxu0 0.0
    %3266 = vmatprep.subr.mxu0 0.0
    %3267 = vmatpush1.xpose.msra.mxu0 0.0
    %3268 = vmatprep.subr.mxu0 0.0
    %3269 = vmatpush1.xpose.msra.mxu0 0.0
    %3270 = vmatprep.subr.mxu0 0.0
    %3271 = vmatpush1.xpose.msra.mxu0 0.0
    %3272 = vmatprep.subr.mxu0 0.0
    %3273 = vmatpush1.xpose.msra.mxu0 0.0
    %3274 = vmatprep.subr.mxu0 0.0
    %3275 = vmatpush1.xpose.msra.mxu0 0.0
    %3276 = vmatprep.subr.mxu0 0.0
    %3277 = vmatpush1.xpose.msra.mxu0 0.0
    %3278 = vmatprep.subr.mxu0 0.0
    %3279 = vmatpush1.xpose.msra.mxu0 0.0
    %3280 = vmatprep.subr.mxu0 0.0
    %3281 = vmatpush1.xpose.msra.mxu0 0.0
    %3282 = vmatprep.subr.mxu0 0.0
    %3283 = vmatpush1.xpose.msra.mxu0 0.0
    %3284 = vmatprep.subr.mxu0 0.0
    %3285 = vmatpush1.xpose.msra.mxu0 0.0
    %3286 = vmatprep.subr.mxu0 0.0
    %3287 = vmatpush1.xpose.msra.mxu0 0.0
    %3288 = vmatprep.subr.mxu0 0.0
    %3289 = vmatpush1.xpose.msra.mxu0 0.0
    %3290 = vmatprep.subr.mxu0 0.0
    %3291 = vmatpush1.xpose.msra.mxu0 0.0
    %3292 = vmatprep.subr.mxu0 0.0
    %3293 = vmatpush1.xpose.msra.mxu0 0.0
    %3294 = vmatprep.subr.mxu0 0.0
    %3295 = vmatpush1.xpose.msra.mxu0 0.0
    %3296 = vmatprep.subr.mxu0 0.0
    %3297 = vmatpush1.xpose.msra.mxu0 0.0
    %3298 = vmatprep.subr.mxu0 0.0
    %3299 = vmatpush1.xpose.msra.mxu0 0.0
    %3300 = vmatprep.subr.mxu0 0.0
    %3301 = vmatpush1.xpose.msra.mxu0 0.0
    %3302 = vmatprep.subr.mxu0 0.0
    %3303 = vmatpush1.xpose.msra.mxu0 0.0
    %3304 = vmatprep.subr.mxu0 0.0
    %3305 = vmatpush1.xpose.msra.mxu0 0.0
    %3306 = vmatprep.subr.mxu0 0.0
    %3307 = vmatpush1.xpose.msra.mxu0 0.0
    %3308 = vmatprep.subr.mxu0 0.0
    %3309 = vmatpush1.xpose.msra.mxu0 0.0
    %3310 = vmatprep.subr.mxu0 0.0
    %3311 = vmatpush1.xpose.msra.mxu0 0.0
    %3312 = vmatprep.mubr.f32.mxu0 0.0
    %3313 = vmatmul.mubr.f32.gmra.mrb[0].mxu0 %v3240
    %v3314 = vpop.f32.mrb[0].mxu0
    %v3315 = vadd.f32 0.0, %v3314
    %v3316 = vpop.f32.mrb[0].mxu0
    %3317 = vmatprep.mubr.f32.mxu0 0.0
    %3318 = vmatmul.mubr.f32.gmra.mrb[0].mxu0 %v3242
    %v3319 = vpop.f32.mrb[0].mxu0
    %v3320 = vadd.f32 0.0, %v3319
    %v3321 = vpop.f32.mrb[0].mxu0
    %3322 = vdwg.mxu0
    %v3323 = vsel %vm656, %v3224, -inf
    %3324 = vmax.xlane.f32.xlu0 %v3323
    %v3325 = vpop.xlane.xlu0 %3324
    %v3326 = vsel %vm656, %v3229, -inf
    %3327 = vmax.xlane.f32.xlu0 %v3326
    %v3328 = vpop.xlane.xlu0 %3327
    %v3329 = vsel %vm656, %v3315, -inf
    %3330 = vmax.xlane.f32.xlu0 %v3329
    %v3331 = vpop.xlane.xlu0 %3330
    %v3332 = vsel %vm656, %v3320, -inf
    %3333 = vmax.xlane.f32.xlu0 %v3332
    %v3334 = vpop.xlane.xlu0 %3333
    %v3335 = vsub.f32 %v3224, %v3325
    %v3336 = vsub.f32 %v3229, %v3328
    %v3337 = vsub.f32 %v3315, %v3331
    %v3338 = vsub.f32 %v3320, %v3334
    %v3339 = vmul.f32 %v3335, 1.442695
    %v3340 = vpow.pop %v3339
    %v3341 = vmul.f32 %v3336, 1.442695
    %v3342 = vpow.pop %v3341
    %v3343 = vmul.f32 %v3337, 1.442695
    %v3344 = vpow.pop %v3343
    %v3345 = vmul.f32 %v3338, 1.442695
    %v3346 = vpow.pop %v3345
    %v3347 = vsel %vm656, %v3340, 0.0
    %3348 = vadd.xlane.f32.xlu0 %v3347
    %v3349 = vpop.xlane.xlu0 %3348
    %v3350 = vsel %vm656, %v3342, 0.0
    %3351 = vadd.xlane.f32.xlu0 %v3350
    %v3352 = vpop.xlane.xlu0 %3351
    %v3353 = vsel %vm656, %v3344, 0.0
    %3354 = vadd.xlane.f32.xlu0 %v3353
    %v3355 = vpop.xlane.xlu0 %3354
    %v3356 = vsel %vm656, %v3346, 0.0
    %3357 = vadd.xlane.f32.xlu0 %v3356
    %v3358 = vpop.xlane.xlu0 %3357
    %v3359 = vrcp.pop %v3349
    %v3360 = vrcp.pop %v3352
    %v3361 = vrcp.pop %v3355
    %v3362 = vrcp.pop %v3358
    %v3363 = vmul.f32 %v3340, %v3359
    %v3364 = vmul.f32 %v3342, %v3360
    %v3365 = vmul.f32 %v3344, %v3361
    %v3366 = vmul.f32 %v3346, %v3362
    %3367 = vrot.lane.b32.xlu0 %v2731, 56
    %v3368 = vpop.permute.xlu0 %3367
    %3369 = vrot.lane.b32.xlu0 %v2734, 56
    %v3370 = vpop.permute.xlu0 %3369
    %v3374 = vsel %vm656, %v3363, 0
    %v3377 = vsel %vm656, %v3364, 0
    %3379 = vmatprep.subr.mxu0 0.0
    %3380 = vmatpush1.msra.mxu0 %v3368
    %3381 = vmatprep.subr.mxu0 0.0
    %3382 = vmatpush1.msra.mxu0 %v3370
    %3383 = vmatprep.subr.mxu0 0.0
    %3384 = vmatpush1.msra.mxu0 0.0
    %3385 = vmatprep.subr.mxu0 0.0
    %3386 = vmatpush1.msra.mxu0 0.0
    %3387 = vmatprep.subr.mxu0 0.0
    %3388 = vmatpush1.msra.mxu0 0.0
    %3389 = vmatprep.subr.mxu0 0.0
    %3390 = vmatpush1.msra.mxu0 0.0
    %3391 = vmatprep.subr.mxu0 0.0
    %3392 = vmatpush1.msra.mxu0 0.0
    %3393 = vmatprep.subr.mxu0 0.0
    %3394 = vmatpush1.msra.mxu0 0.0
    %3395 = vmatprep.subr.mxu0 0.0
    %3396 = vmatpush1.msra.mxu0 0.0
    %3397 = vmatprep.subr.mxu0 0.0
    %3398 = vmatpush1.msra.mxu0 0.0
    %3399 = vmatprep.subr.mxu0 0.0
    %3400 = vmatpush1.msra.mxu0 0.0
    %3401 = vmatprep.subr.mxu0 0.0
    %3402 = vmatpush1.msra.mxu0 0.0
    %3403 = vmatprep.subr.mxu0 0.0
    %3404 = vmatpush1.msra.mxu0 0.0
    %3405 = vmatprep.subr.mxu0 0.0
    %3406 = vmatpush1.msra.mxu0 0.0
    %3407 = vmatprep.subr.mxu0 0.0
    %3408 = vmatpush1.msra.mxu0 0.0
    %3409 = vmatprep.subr.mxu0 0.0
    %3410 = vmatpush1.msra.mxu0 0.0
    %3411 = vmatprep.subr.mxu0 0.0
    %3412 = vmatpush1.msra.mxu0 0.0
    %3413 = vmatprep.subr.mxu0 0.0
    %3414 = vmatpush1.msra.mxu0 0.0
    %3415 = vmatprep.subr.mxu0 0.0
    %3416 = vmatpush1.msra.mxu0 0.0
    %3417 = vmatprep.subr.mxu0 0.0
    %3418 = vmatpush1.msra.mxu0 0.0
    %3419 = vmatprep.subr.mxu0 0.0
    %3420 = vmatpush1.msra.mxu0 0.0
    %3421 = vmatprep.subr.mxu0 0.0
    %3422 = vmatpush1.msra.mxu0 0.0
    %3423 = vmatprep.subr.mxu0 0.0
    %3424 = vmatpush1.msra.mxu0 0.0
    %3425 = vmatprep.subr.mxu0 0.0
    %3426 = vmatpush1.msra.mxu0 0.0
    %3427 = vmatprep.subr.mxu0 0.0
    %3428 = vmatpush1.msra.mxu0 0.0
    %3429 = vmatprep.subr.mxu0 0.0
    %3430 = vmatpush1.msra.mxu0 0.0
    %3431 = vmatprep.subr.mxu0 0.0
    %3432 = vmatpush1.msra.mxu0 0.0
    %3433 = vmatprep.subr.mxu0 0.0
    %3434 = vmatpush1.msra.mxu0 0.0
    %3435 = vmatprep.subr.mxu0 0.0
    %3436 = vmatpush1.msra.mxu0 0.0
    %3437 = vmatprep.subr.mxu0 0.0
    %3438 = vmatpush1.msra.mxu0 0.0
    %3439 = vmatprep.subr.mxu0 0.0
    %3440 = vmatpush1.msra.mxu0 0.0
    %3441 = vmatprep.subr.mxu0 0.0
    %3442 = vmatpush1.msra.mxu0 0.0
    %3443 = vmatprep.mubr.f32.mxu0 0.0
    %3444 = vmatmul.mubr.f32.gmra.mrb[0].mxu0 %v3374
    %v3445 = vpop.f32.mrb[0].mxu0
    %v3446 = vadd.f32 0.0, %v3445
    %v3447 = vpop.f32.mrb[0].mxu0
    %3448 = vmatprep.mubr.f32.mxu0 0.0
    %3449 = vmatmul.mubr.f32.gmra.mrb[0].mxu0 %v3377
    %v3450 = vpop.f32.mrb[0].mxu0
    %v3451 = vadd.f32 0.0, %v3450
    %v3452 = vpop.f32.mrb[0].mxu0
    %3453 = vdwg.mxu0
    %3454 = vrot.lane.b32.xlu0 %v2739, 56
    %v3455 = vpop.permute.xlu0 %3454
    %3456 = vrot.lane.b32.xlu0 %v2742, 56
    %v3457 = vpop.permute.xlu0 %3456
    %v3461 = vsel %vm656, %v3365, 0
    %v3464 = vsel %vm656, %v3366, 0
    %3466 = vmatprep.subr.mxu0 0.0
    %3467 = vmatpush1.msra.mxu0 %v3455
    %3468 = vmatprep.subr.mxu0 0.0
    %3469 = vmatpush1.msra.mxu0 %v3457
    %3470 = vmatprep.subr.mxu0 0.0
    %3471 = vmatpush1.msra.mxu0 0.0
    %3472 = vmatprep.subr.mxu0 0.0
    %3473 = vmatpush1.msra.mxu0 0.0
    %3474 = vmatprep.subr.mxu0 0.0
    %3475 = vmatpush1.msra.mxu0 0.0
    %3476 = vmatprep.subr.mxu0 0.0
    %3477 = vmatpush1.msra.mxu0 0.0
    %3478 = vmatprep.subr.mxu0 0.0
    %3479 = vmatpush1.msra.mxu0 0.0
    %3480 = vmatprep.subr.mxu0 0.0
    %3481 = vmatpush1.msra.mxu0 0.0
    %3482 = vmatprep.subr.mxu0 0.0
    %3483 = vmatpush1.msra.mxu0 0.0
    %3484 = vmatprep.subr.mxu0 0.0
    %3485 = vmatpush1.msra.mxu0 0.0
    %3486 = vmatprep.subr.mxu0 0.0
    %3487 = vmatpush1.msra.mxu0 0.0
    %3488 = vmatprep.subr.mxu0 0.0
    %3489 = vmatpush1.msra.mxu0 0.0
    %3490 = vmatprep.subr.mxu0 0.0
    %3491 = vmatpush1.msra.mxu0 0.0
    %3492 = vmatprep.subr.mxu0 0.0
    %3493 = vmatpush1.msra.mxu0 0.0
    %3494 = vmatprep.subr.mxu0 0.0
    %3495 = vmatpush1.msra.mxu0 0.0
    %3496 = vmatprep.subr.mxu0 0.0
    %3497 = vmatpush1.msra.mxu0 0.0
    %3498 = vmatprep.subr.mxu0 0.0
    %3499 = vmatpush1.msra.mxu0 0.0
    %3500 = vmatprep.subr.mxu0 0.0
    %3501 = vmatpush1.msra.mxu0 0.0
    %3502 = vmatprep.subr.mxu0 0.0
    %3503 = vmatpush1.msra.mxu0 0.0
    %3504 = vmatprep.subr.mxu0 0.0
    %3505 = vmatpush1.msra.mxu0 0.0
    %3506 = vmatprep.subr.mxu0 0.0
    %3507 = vmatpush1.msra.mxu0 0.0
    %3508 = vmatprep.subr.mxu0 0.0
    %3509 = vmatpush1.msra.mxu0 0.0
    %3510 = vmatprep.subr.mxu0 0.0
    %3511 = vmatpush1.msra.mxu0 0.0
    %3512 = vmatprep.subr.mxu0 0.0
    %3513 = vmatpush1.msra.mxu0 0.0
    %3514 = vmatprep.subr.mxu0 0.0
    %3515 = vmatpush1.msra.mxu0 0.0
    %3516 = vmatprep.subr.mxu0 0.0
    %3517 = vmatpush1.msra.mxu0 0.0
    %3518 = vmatprep.subr.mxu0 0.0
    %3519 = vmatpush1.msra.mxu0 0.0
    %3520 = vmatprep.subr.mxu0 0.0
    %3521 = vmatpush1.msra.mxu0 0.0
    %3522 = vmatprep.subr.mxu0 0.0
    %3523 = vmatpush1.msra.mxu0 0.0
    %3524 = vmatprep.subr.mxu0 0.0
    %3525 = vmatpush1.msra.mxu0 0.0
    %3526 = vmatprep.subr.mxu0 0.0
    %3527 = vmatpush1.msra.mxu0 0.0
    %3528 = vmatprep.subr.mxu0 0.0
    %3529 = vmatpush1.msra.mxu0 0.0
    %3530 = vmatprep.mubr.f32.mxu0 0.0
    %3531 = vmatmul.mubr.f32.gmra.mrb[0].mxu0 %v3461
    %v3532 = vpop.f32.mrb[0].mxu0
    %v3533 = vadd.f32 0.0, %v3532
    %v3534 = vpop.f32.mrb[0].mxu0
    %3535 = vmatprep.mubr.f32.mxu0 0.0
    %3536 = vmatmul.mubr.f32.gmra.mrb[0].mxu0 %v3464
    %v3537 = vpop.f32.mrb[0].mxu0
    %v3538 = vadd.f32 0.0, %v3537
    %v3539 = vpop.f32.mrb[0].mxu0
    %3540 = vdwg.mxu0
    %3541 = vrot.lane.b32.xlu0 %v2731, 112
    %v3542 = vpop.permute.xlu0 %3541
    %3543 = vrot.lane.b32.xlu0 %v2734, 112
    %v3544 = vpop.permute.xlu0 %3543
    %3545 = vrot.lane.b32.xlu0 %v2731, 80
    %v3546 = vpop.permute.xlu0 %3545
    %3547 = vrot.lane.b32.xlu0 %v2734, 80
    %v3548 = vpop.permute.xlu0 %3547
    %v3549 = vsel %vm483, %v3542, 0
    %v3551 = vsel %vm483, %v3544, 0
    %v3553 = vsel %vm483, %v3546, 0
    %v3555 = vsel %vm483, %v3548, 0
    %3557 = vmatprep.subr.mxu0 0.0
    %3558 = vmatpush1.xpose.msra.mxu0 %v3553
    %3559 = vmatprep.subr.mxu0 0.0
    %3560 = vmatpush1.xpose.msra.mxu0 %v3555
    %3561 = vmatprep.subr.mxu0 0.0
    %3562 = vmatpush1.xpose.msra.mxu0 0.0
    %3563 = vmatprep.subr.mxu0 0.0
    %3564 = vmatpush1.xpose.msra.mxu0 0.0
    %3565 = vmatprep.subr.mxu0 0.0
    %3566 = vmatpush1.xpose.msra.mxu0 0.0
    %3567 = vmatprep.subr.mxu0 0.0
    %3568 = vmatpush1.xpose.msra.mxu0 0.0
    %3569 = vmatprep.subr.mxu0 0.0
    %3570 = vmatpush1.xpose.msra.mxu0 0.0
    %3571 = vmatprep.subr.mxu0 0.0
    %3572 = vmatpush1.xpose.msra.mxu0 0.0
    %3573 = vmatprep.subr.mxu0 0.0
    %3574 = vmatpush1.xpose.msra.mxu0 0.0
    %3575 = vmatprep.subr.mxu0 0.0
    %3576 = vmatpush1.xpose.msra.mxu0 0.0
    %3577 = vmatprep.subr.mxu0 0.0
    %3578 = vmatpush1.xpose.msra.mxu0 0.0
    %3579 = vmatprep.subr.mxu0 0.0
    %3580 = vmatpush1.xpose.msra.mxu0 0.0
    %3581 = vmatprep.subr.mxu0 0.0
    %3582 = vmatpush1.xpose.msra.mxu0 0.0
    %3583 = vmatprep.subr.mxu0 0.0
    %3584 = vmatpush1.xpose.msra.mxu0 0.0
    %3585 = vmatprep.subr.mxu0 0.0
    %3586 = vmatpush1.xpose.msra.mxu0 0.0
    %3587 = vmatprep.subr.mxu0 0.0
    %3588 = vmatpush1.xpose.msra.mxu0 0.0
    %3589 = vmatprep.subr.mxu0 0.0
    %3590 = vmatpush1.xpose.msra.mxu0 0.0
    %3591 = vmatprep.subr.mxu0 0.0
    %3592 = vmatpush1.xpose.msra.mxu0 0.0
    %3593 = vmatprep.subr.mxu0 0.0
    %3594 = vmatpush1.xpose.msra.mxu0 0.0
    %3595 = vmatprep.subr.mxu0 0.0
    %3596 = vmatpush1.xpose.msra.mxu0 0.0
    %3597 = vmatprep.subr.mxu0 0.0
    %3598 = vmatpush1.xpose.msra.mxu0 0.0
    %3599 = vmatprep.subr.mxu0 0.0
    %3600 = vmatpush1.xpose.msra.mxu0 0.0
    %3601 = vmatprep.subr.mxu0 0.0
    %3602 = vmatpush1.xpose.msra.mxu0 0.0
    %3603 = vmatprep.subr.mxu0 0.0
    %3604 = vmatpush1.xpose.msra.mxu0 0.0
    %3605 = vmatprep.subr.mxu0 0.0
    %3606 = vmatpush1.xpose.msra.mxu0 0.0
    %3607 = vmatprep.subr.mxu0 0.0
    %3608 = vmatpush1.xpose.msra.mxu0 0.0
    %3609 = vmatprep.subr.mxu0 0.0
    %3610 = vmatpush1.xpose.msra.mxu0 0.0
    %3611 = vmatprep.subr.mxu0 0.0
    %3612 = vmatpush1.xpose.msra.mxu0 0.0
    %3613 = vmatprep.subr.mxu0 0.0
    %3614 = vmatpush1.xpose.msra.mxu0 0.0
    %3615 = vmatprep.subr.mxu0 0.0
    %3616 = vmatpush1.xpose.msra.mxu0 0.0
    %3617 = vmatprep.subr.mxu0 0.0
    %3618 = vmatpush1.xpose.msra.mxu0 0.0
    %3619 = vmatprep.subr.mxu0 0.0
    %3620 = vmatpush1.xpose.msra.mxu0 0.0
    %3621 = vmatprep.mubr.f32.mxu0 0.0
    %3622 = vmatmul.mubr.f32.gmra.mrb[0].mxu0 %v3549
    %v3623 = vpop.f32.mrb[0].mxu0
    %v3624 = vadd.f32 0.0, %v3623
    %v3625 = vpop.f32.mrb[0].mxu0
    %3626 = vmatprep.mubr.f32.mxu0 0.0
    %3627 = vmatmul.mubr.f32.gmra.mrb[0].mxu0 %v3551
    %v3628 = vpop.f32.mrb[0].mxu0
    %v3629 = vadd.f32 0.0, %v3628
    %v3630 = vpop.f32.mrb[0].mxu0
    %3631 = vdwg.mxu0
    %3632 = vrot.lane.b32.xlu0 %v2739, 112
    %v3633 = vpop.permute.xlu0 %3632
    %3634 = vrot.lane.b32.xlu0 %v2742, 112
    %v3635 = vpop.permute.xlu0 %3634
    %3636 = vrot.lane.b32.xlu0 %v2739, 80
    %v3637 = vpop.permute.xlu0 %3636
    %3638 = vrot.lane.b32.xlu0 %v2742, 80
    %v3639 = vpop.permute.xlu0 %3638
    %v3640 = vsel %vm483, %v3633, 0
    %v3642 = vsel %vm483, %v3635, 0
    %v3644 = vsel %vm483, %v3637, 0
    %v3646 = vsel %vm483, %v3639, 0
    %3648 = vmatprep.subr.mxu0 0.0
    %3649 = vmatpush1.xpose.msra.mxu0 %v3644
    %3650 = vmatprep.subr.mxu0 0.0
    %3651 = vmatpush1.xpose.msra.mxu0 %v3646
    %3652 = vmatprep.subr.mxu0 0.0
    %3653 = vmatpush1.xpose.msra.mxu0 0.0
    %3654 = vmatprep.subr.mxu0 0.0
    %3655 = vmatpush1.xpose.msra.mxu0 0.0
    %3656 = vmatprep.subr.mxu0 0.0
    %3657 = vmatpush1.xpose.msra.mxu0 0.0
    %3658 = vmatprep.subr.mxu0 0.0
    %3659 = vmatpush1.xpose.msra.mxu0 0.0
    %3660 = vmatprep.subr.mxu0 0.0
    %3661 = vmatpush1.xpose.msra.mxu0 0.0
    %3662 = vmatprep.subr.mxu0 0.0
    %3663 = vmatpush1.xpose.msra.mxu0 0.0
    %3664 = vmatprep.subr.mxu0 0.0
    %3665 = vmatpush1.xpose.msra.mxu0 0.0
    %3666 = vmatprep.subr.mxu0 0.0
    %3667 = vmatpush1.xpose.msra.mxu0 0.0
    %3668 = vmatprep.subr.mxu0 0.0
    %3669 = vmatpush1.xpose.msra.mxu0 0.0
    %3670 = vmatprep.subr.mxu0 0.0
    %3671 = vmatpush1.xpose.msra.mxu0 0.0
    %3672 = vmatprep.subr.mxu0 0.0
    %3673 = vmatpush1.xpose.msra.mxu0 0.0
    %3674 = vmatprep.subr.mxu0 0.0
    %3675 = vmatpush1.xpose.msra.mxu0 0.0
    %3676 = vmatprep.subr.mxu0 0.0
    %3677 = vmatpush1.xpose.msra.mxu0 0.0
    %3678 = vmatprep.subr.mxu0 0.0
    %3679 = vmatpush1.xpose.msra.mxu0 0.0
    %3680 = vmatprep.subr.mxu0 0.0
    %3681 = vmatpush1.xpose.msra.mxu0 0.0
    %3682 = vmatprep.subr.mxu0 0.0
    %3683 = vmatpush1.xpose.msra.mxu0 0.0
    %3684 = vmatprep.subr.mxu0 0.0
    %3685 = vmatpush1.xpose.msra.mxu0 0.0
    %3686 = vmatprep.subr.mxu0 0.0
    %3687 = vmatpush1.xpose.msra.mxu0 0.0
    %3688 = vmatprep.subr.mxu0 0.0
    %3689 = vmatpush1.xpose.msra.mxu0 0.0
    %3690 = vmatprep.subr.mxu0 0.0
    %3691 = vmatpush1.xpose.msra.mxu0 0.0
    %3692 = vmatprep.subr.mxu0 0.0
    %3693 = vmatpush1.xpose.msra.mxu0 0.0
    %3694 = vmatprep.subr.mxu0 0.0
    %3695 = vmatpush1.xpose.msra.mxu0 0.0
    %3696 = vmatprep.subr.mxu0 0.0
    %3697 = vmatpush1.xpose.msra.mxu0 0.0
    %3698 = vmatprep.subr.mxu0 0.0
    %3699 = vmatpush1.xpose.msra.mxu0 0.0
    %3700 = vmatprep.subr.mxu0 0.0
    %3701 = vmatpush1.xpose.msra.mxu0 0.0
    %3702 = vmatprep.subr.mxu0 0.0
    %3703 = vmatpush1.xpose.msra.mxu0 0.0
    %3704 = vmatprep.subr.mxu0 0.0
    %3705 = vmatpush1.xpose.msra.mxu0 0.0
    %3706 = vmatprep.subr.mxu0 0.0
    %3707 = vmatpush1.xpose.msra.mxu0 0.0
    %3708 = vmatprep.subr.mxu0 0.0
    %3709 = vmatpush1.xpose.msra.mxu0 0.0
    %3710 = vmatprep.subr.mxu0 0.0
    %3711 = vmatpush1.xpose.msra.mxu0 0.0
    %3712 = vmatprep.mubr.f32.mxu0 0.0
    %3713 = vmatmul.mubr.f32.gmra.mrb[0].mxu0 %v3640
    %v3714 = vpop.f32.mrb[0].mxu0
    %v3715 = vadd.f32 0.0, %v3714
    %v3716 = vpop.f32.mrb[0].mxu0
    %3717 = vmatprep.mubr.f32.mxu0 0.0
    %3718 = vmatmul.mubr.f32.gmra.mrb[0].mxu0 %v3642
    %v3719 = vpop.f32.mrb[0].mxu0
    %v3720 = vadd.f32 0.0, %v3719
    %v3721 = vpop.f32.mrb[0].mxu0
    %3722 = vdwg.mxu0
    %v3723 = vsel %vm656, %v3624, -inf
    %3724 = vmax.xlane.f32.xlu0 %v3723
    %v3725 = vpop.xlane.xlu0 %3724
    %v3726 = vsel %vm656, %v3629, -inf
    %3727 = vmax.xlane.f32.xlu0 %v3726
    %v3728 = vpop.xlane.xlu0 %3727
    %v3729 = vsel %vm656, %v3715, -inf
    %3730 = vmax.xlane.f32.xlu0 %v3729
    %v3731 = vpop.xlane.xlu0 %3730
    %v3732 = vsel %vm656, %v3720, -inf
    %3733 = vmax.xlane.f32.xlu0 %v3732
    %v3734 = vpop.xlane.xlu0 %3733
    %v3735 = vsub.f32 %v3624, %v3725
    %v3736 = vsub.f32 %v3629, %v3728
    %v3737 = vsub.f32 %v3715, %v3731
    %v3738 = vsub.f32 %v3720, %v3734
    %v3739 = vmul.f32 %v3735, 1.442695
    %v3740 = vpow.pop %v3739
    %v3741 = vmul.f32 %v3736, 1.442695
    %v3742 = vpow.pop %v3741
    %v3743 = vmul.f32 %v3737, 1.442695
    %v3744 = vpow.pop %v3743
    %v3745 = vmul.f32 %v3738, 1.442695
    %v3746 = vpow.pop %v3745
    %v3747 = vsel %vm656, %v3740, 0.0
    %3748 = vadd.xlane.f32.xlu0 %v3747
    %v3749 = vpop.xlane.xlu0 %3748
    %v3750 = vsel %vm656, %v3742, 0.0
    %3751 = vadd.xlane.f32.xlu0 %v3750
    %v3752 = vpop.xlane.xlu0 %3751
    %v3753 = vsel %vm656, %v3744, 0.0
    %3754 = vadd.xlane.f32.xlu0 %v3753
    %v3755 = vpop.xlane.xlu0 %3754
    %v3756 = vsel %vm656, %v3746, 0.0
    %3757 = vadd.xlane.f32.xlu0 %v3756
    %v3758 = vpop.xlane.xlu0 %3757
    %v3759 = vrcp.pop %v3749
    %v3760 = vrcp.pop %v3752
    %v3761 = vrcp.pop %v3755
    %v3762 = vrcp.pop %v3758
    %v3763 = vmul.f32 %v3740, %v3759
    %v3764 = vmul.f32 %v3742, %v3760
    %v3765 = vmul.f32 %v3744, %v3761
    %v3766 = vmul.f32 %v3746, %v3762
    %3767 = vrot.lane.b32.xlu0 %v2731, 48
    %v3768 = vpop.permute.xlu0 %3767
    %3769 = vrot.lane.b32.xlu0 %v2734, 48
    %v3770 = vpop.permute.xlu0 %3769
    %v3774 = vsel %vm656, %v3763, 0
    %v3777 = vsel %vm656, %v3764, 0
    %3779 = vmatprep.subr.mxu0 0.0
    %3780 = vmatpush1.msra.mxu0 %v3768
    %3781 = vmatprep.subr.mxu0 0.0
    %3782 = vmatpush1.msra.mxu0 %v3770
    %3783 = vmatprep.subr.mxu0 0.0
    %3784 = vmatpush1.msra.mxu0 0.0
    %3785 = vmatprep.subr.mxu0 0.0
    %3786 = vmatpush1.msra.mxu0 0.0
    %3787 = vmatprep.subr.mxu0 0.0
    %3788 = vmatpush1.msra.mxu0 0.0
    %3789 = vmatprep.subr.mxu0 0.0
    %3790 = vmatpush1.msra.mxu0 0.0
    %3791 = vmatprep.subr.mxu0 0.0
    %3792 = vmatpush1.msra.mxu0 0.0
    %3793 = vmatprep.subr.mxu0 0.0
    %3794 = vmatpush1.msra.mxu0 0.0
    %3795 = vmatprep.subr.mxu0 0.0
    %3796 = vmatpush1.msra.mxu0 0.0
    %3797 = vmatprep.subr.mxu0 0.0
    %3798 = vmatpush1.msra.mxu0 0.0
    %3799 = vmatprep.subr.mxu0 0.0
    %3800 = vmatpush1.msra.mxu0 0.0
    %3801 = vmatprep.subr.mxu0 0.0
    %3802 = vmatpush1.msra.mxu0 0.0
    %3803 = vmatprep.subr.mxu0 0.0
    %3804 = vmatpush1.msra.mxu0 0.0
    %3805 = vmatprep.subr.mxu0 0.0
    %3806 = vmatpush1.msra.mxu0 0.0
    %3807 = vmatprep.subr.mxu0 0.0
    %3808 = vmatpush1.msra.mxu0 0.0
    %3809 = vmatprep.subr.mxu0 0.0
    %3810 = vmatpush1.msra.mxu0 0.0
    %3811 = vmatprep.subr.mxu0 0.0
    %3812 = vmatpush1.msra.mxu0 0.0
    %3813 = vmatprep.subr.mxu0 0.0
    %3814 = vmatpush1.msra.mxu0 0.0
    %3815 = vmatprep.subr.mxu0 0.0
    %3816 = vmatpush1.msra.mxu0 0.0
    %3817 = vmatprep.subr.mxu0 0.0
    %3818 = vmatpush1.msra.mxu0 0.0
    %3819 = vmatprep.subr.mxu0 0.0
    %3820 = vmatpush1.msra.mxu0 0.0
    %3821 = vmatprep.subr.mxu0 0.0
    %3822 = vmatpush1.msra.mxu0 0.0
    %3823 = vmatprep.subr.mxu0 0.0
    %3824 = vmatpush1.msra.mxu0 0.0
    %3825 = vmatprep.subr.mxu0 0.0
    %3826 = vmatpush1.msra.mxu0 0.0
    %3827 = vmatprep.subr.mxu0 0.0
    %3828 = vmatpush1.msra.mxu0 0.0
    %3829 = vmatprep.subr.mxu0 0.0
    %3830 = vmatpush1.msra.mxu0 0.0
    %3831 = vmatprep.subr.mxu0 0.0
    %3832 = vmatpush1.msra.mxu0 0.0
    %3833 = vmatprep.subr.mxu0 0.0
    %3834 = vmatpush1.msra.mxu0 0.0
    %3835 = vmatprep.subr.mxu0 0.0
    %3836 = vmatpush1.msra.mxu0 0.0
    %3837 = vmatprep.subr.mxu0 0.0
    %3838 = vmatpush1.msra.mxu0 0.0
    %3839 = vmatprep.subr.mxu0 0.0
    %3840 = vmatpush1.msra.mxu0 0.0
    %3841 = vmatprep.subr.mxu0 0.0
    %3842 = vmatpush1.msra.mxu0 0.0
    %3843 = vmatprep.mubr.f32.mxu0 0.0
    %3844 = vmatmul.mubr.f32.gmra.mrb[0].mxu0 %v3774
    %v3845 = vpop.f32.mrb[0].mxu0
    %v3846 = vadd.f32 0.0, %v3845
    %v3847 = vpop.f32.mrb[0].mxu0
    %3848 = vmatprep.mubr.f32.mxu0 0.0
    %3849 = vmatmul.mubr.f32.gmra.mrb[0].mxu0 %v3777
    %v3850 = vpop.f32.mrb[0].mxu0
    %v3851 = vadd.f32 0.0, %v3850
    %v3852 = vpop.f32.mrb[0].mxu0
    %3853 = vdwg.mxu0
    %3854 = vrot.lane.b32.xlu0 %v2739, 48
    %v3855 = vpop.permute.xlu0 %3854
    %3856 = vrot.lane.b32.xlu0 %v2742, 48
    %v3857 = vpop.permute.xlu0 %3856
    %v3861 = vsel %vm656, %v3765, 0
    %v3864 = vsel %vm656, %v3766, 0
    %3866 = vmatprep.subr.mxu0 0.0
    %3867 = vmatpush1.msra.mxu0 %v3855
    %3868 = vmatprep.subr.mxu0 0.0
    %3869 = vmatpush1.msra.mxu0 %v3857
    %3870 = vmatprep.subr.mxu0 0.0
    %3871 = vmatpush1.msra.mxu0 0.0
    %3872 = vmatprep.subr.mxu0 0.0
    %3873 = vmatpush1.msra.mxu0 0.0
    %3874 = vmatprep.subr.mxu0 0.0
    %3875 = vmatpush1.msra.mxu0 0.0
    %3876 = vmatprep.subr.mxu0 0.0
    %3877 = vmatpush1.msra.mxu0 0.0
    %3878 = vmatprep.subr.mxu0 0.0
    %3879 = vmatpush1.msra.mxu0 0.0
    %3880 = vmatprep.subr.mxu0 0.0
    %3881 = vmatpush1.msra.mxu0 0.0
    %3882 = vmatprep.subr.mxu0 0.0
    %3883 = vmatpush1.msra.mxu0 0.0
    %3884 = vmatprep.subr.mxu0 0.0
    %3885 = vmatpush1.msra.mxu0 0.0
    %3886 = vmatprep.subr.mxu0 0.0
    %3887 = vmatpush1.msra.mxu0 0.0
    %3888 = vmatprep.subr.mxu0 0.0
    %3889 = vmatpush1.msra.mxu0 0.0
    %3890 = vmatprep.subr.mxu0 0.0
    %3891 = vmatpush1.msra.mxu0 0.0
    %3892 = vmatprep.subr.mxu0 0.0
    %3893 = vmatpush1.msra.mxu0 0.0
    %3894 = vmatprep.subr.mxu0 0.0
    %3895 = vmatpush1.msra.mxu0 0.0
    %3896 = vmatprep.subr.mxu0 0.0
    %3897 = vmatpush1.msra.mxu0 0.0
    %3898 = vmatprep.subr.mxu0 0.0
    %3899 = vmatpush1.msra.mxu0 0.0
    %3900 = vmatprep.subr.mxu0 0.0
    %3901 = vmatpush1.msra.mxu0 0.0
    %3902 = vmatprep.subr.mxu0 0.0
    %3903 = vmatpush1.msra.mxu0 0.0
    %3904 = vmatprep.subr.mxu0 0.0
    %3905 = vmatpush1.msra.mxu0 0.0
    %3906 = vmatprep.subr.mxu0 0.0
    %3907 = vmatpush1.msra.mxu0 0.0
    %3908 = vmatprep.subr.mxu0 0.0
    %3909 = vmatpush1.msra.mxu0 0.0
    %3910 = vmatprep.subr.mxu0 0.0
    %3911 = vmatpush1.msra.mxu0 0.0
    %3912 = vmatprep.subr.mxu0 0.0
    %3913 = vmatpush1.msra.mxu0 0.0
    %3914 = vmatprep.subr.mxu0 0.0
    %3915 = vmatpush1.msra.mxu0 0.0
    %3916 = vmatprep.subr.mxu0 0.0
    %3917 = vmatpush1.msra.mxu0 0.0
    %3918 = vmatprep.subr.mxu0 0.0
    %3919 = vmatpush1.msra.mxu0 0.0
    %3920 = vmatprep.subr.mxu0 0.0
    %3921 = vmatpush1.msra.mxu0 0.0
    %3922 = vmatprep.subr.mxu0 0.0
    %3923 = vmatpush1.msra.mxu0 0.0
    %3924 = vmatprep.subr.mxu0 0.0
    %3925 = vmatpush1.msra.mxu0 0.0
    %3926 = vmatprep.subr.mxu0 0.0
    %3927 = vmatpush1.msra.mxu0 0.0
    %3928 = vmatprep.subr.mxu0 0.0
    %3929 = vmatpush1.msra.mxu0 0.0
    %3930 = vmatprep.mubr.f32.mxu0 0.0
    %3931 = vmatmul.mubr.f32.gmra.mrb[0].mxu0 %v3861
    %v3932 = vpop.f32.mrb[0].mxu0
    %v3933 = vadd.f32 0.0, %v3932
    %v3934 = vpop.f32.mrb[0].mxu0
    %3935 = vmatprep.mubr.f32.mxu0 0.0
    %3936 = vmatmul.mubr.f32.gmra.mrb[0].mxu0 %v3864
    %v3937 = vpop.f32.mrb[0].mxu0
    %v3938 = vadd.f32 0.0, %v3937
    %v3939 = vpop.f32.mrb[0].mxu0
    %3940 = vdwg.mxu0
    %3941 = vrot.lane.b32.xlu0 %v2731, 104
    %v3942 = vpop.permute.xlu0 %3941
    %3943 = vrot.lane.b32.xlu0 %v2734, 104
    %v3944 = vpop.permute.xlu0 %3943
    %3945 = vrot.lane.b32.xlu0 %v2731, 72
    %v3946 = vpop.permute.xlu0 %3945
    %3947 = vrot.lane.b32.xlu0 %v2734, 72
    %v3948 = vpop.permute.xlu0 %3947
    %v3949 = vsel %vm483, %v3942, 0
    %v3951 = vsel %vm483, %v3944, 0
    %v3953 = vsel %vm483, %v3946, 0
    %v3955 = vsel %vm483, %v3948, 0
    %3957 = vmatprep.subr.mxu0 0.0
    %3958 = vmatpush1.xpose.msra.mxu0 %v3953
    %3959 = vmatprep.subr.mxu0 0.0
    %3960 = vmatpush1.xpose.msra.mxu0 %v3955
    %3961 = vmatprep.subr.mxu0 0.0
    %3962 = vmatpush1.xpose.msra.mxu0 0.0
    %3963 = vmatprep.subr.mxu0 0.0
    %3964 = vmatpush1.xpose.msra.mxu0 0.0
    %3965 = vmatprep.subr.mxu0 0.0
    %3966 = vmatpush1.xpose.msra.mxu0 0.0
    %3967 = vmatprep.subr.mxu0 0.0
    %3968 = vmatpush1.xpose.msra.mxu0 0.0
    %3969 = vmatprep.subr.mxu0 0.0
    %3970 = vmatpush1.xpose.msra.mxu0 0.0
    %3971 = vmatprep.subr.mxu0 0.0
    %3972 = vmatpush1.xpose.msra.mxu0 0.0
    %3973 = vmatprep.subr.mxu0 0.0
    %3974 = vmatpush1.xpose.msra.mxu0 0.0
    %3975 = vmatprep.subr.mxu0 0.0
    %3976 = vmatpush1.xpose.msra.mxu0 0.0
    %3977 = vmatprep.subr.mxu0 0.0
    %3978 = vmatpush1.xpose.msra.mxu0 0.0
    %3979 = vmatprep.subr.mxu0 0.0
    %3980 = vmatpush1.xpose.msra.mxu0 0.0
    %3981 = vmatprep.subr.mxu0 0.0
    %3982 = vmatpush1.xpose.msra.mxu0 0.0
    %3983 = vmatprep.subr.mxu0 0.0
    %3984 = vmatpush1.xpose.msra.mxu0 0.0
    %3985 = vmatprep.subr.mxu0 0.0
    %3986 = vmatpush1.xpose.msra.mxu0 0.0
    %3987 = vmatprep.subr.mxu0 0.0
    %3988 = vmatpush1.xpose.msra.mxu0 0.0
    %3989 = vmatprep.subr.mxu0 0.0
    %3990 = vmatpush1.xpose.msra.mxu0 0.0
    %3991 = vmatprep.subr.mxu0 0.0
    %3992 = vmatpush1.xpose.msra.mxu0 0.0
    %3993 = vmatprep.subr.mxu0 0.0
    %3994 = vmatpush1.xpose.msra.mxu0 0.0
    %3995 = vmatprep.subr.mxu0 0.0
    %3996 = vmatpush1.xpose.msra.mxu0 0.0
    %3997 = vmatprep.subr.mxu0 0.0
    %3998 = vmatpush1.xpose.msra.mxu0 0.0
    %3999 = vmatprep.subr.mxu0 0.0
    %4000 = vmatpush1.xpose.msra.mxu0 0.0
    %4001 = vmatprep.subr.mxu0 0.0
    %4002 = vmatpush1.xpose.msra.mxu0 0.0
    %4003 = vmatprep.subr.mxu0 0.0
    %4004 = vmatpush1.xpose.msra.mxu0 0.0
    %4005 = vmatprep.subr.mxu0 0.0
    %4006 = vmatpush1.xpose.msra.mxu0 0.0
    %4007 = vmatprep.subr.mxu0 0.0
    %4008 = vmatpush1.xpose.msra.mxu0 0.0
    %4009 = vmatprep.subr.mxu0 0.0
    %4010 = vmatpush1.xpose.msra.mxu0 0.0
    %4011 = vmatprep.subr.mxu0 0.0
    %4012 = vmatpush1.xpose.msra.mxu0 0.0
    %4013 = vmatprep.subr.mxu0 0.0
    %4014 = vmatpush1.xpose.msra.mxu0 0.0
    %4015 = vmatprep.subr.mxu0 0.0
    %4016 = vmatpush1.xpose.msra.mxu0 0.0
    %4017 = vmatprep.subr.mxu0 0.0
    %4018 = vmatpush1.xpose.msra.mxu0 0.0
    %4019 = vmatprep.subr.mxu0 0.0
    %4020 = vmatpush1.xpose.msra.mxu0 0.0
    %4021 = vmatprep.mubr.f32.mxu0 0.0
    %4022 = vmatmul.mubr.f32.gmra.mrb[0].mxu0 %v3949
    %v4023 = vpop.f32.mrb[0].mxu0
    %v4024 = vadd.f32 0.0, %v4023
    %v4025 = vpop.f32.mrb[0].mxu0
    %4026 = vmatprep.mubr.f32.mxu0 0.0
    %4027 = vmatmul.mubr.f32.gmra.mrb[0].mxu0 %v3951
    %v4028 = vpop.f32.mrb[0].mxu0
    %v4029 = vadd.f32 0.0, %v4028
    %v4030 = vpop.f32.mrb[0].mxu0
    %4031 = vdwg.mxu0
    %4032 = vrot.lane.b32.xlu0 %v2739, 104
    %v4033 = vpop.permute.xlu0 %4032
    %4034 = vrot.lane.b32.xlu0 %v2742, 104
    %v4035 = vpop.permute.xlu0 %4034
    %4036 = vrot.lane.b32.xlu0 %v2739, 72
    %v4037 = vpop.permute.xlu0 %4036
    %4038 = vrot.lane.b32.xlu0 %v2742, 72
    %v4039 = vpop.permute.xlu0 %4038
    %v4040 = vsel %vm483, %v4033, 0
    %v4042 = vsel %vm483, %v4035, 0
    %v4044 = vsel %vm483, %v4037, 0
    %v4046 = vsel %vm483, %v4039, 0
    %4048 = vmatprep.subr.mxu0 0.0
    %4049 = vmatpush1.xpose.msra.mxu0 %v4044
    %4050 = vmatprep.subr.mxu0 0.0
    %4051 = vmatpush1.xpose.msra.mxu0 %v4046
    %4052 = vmatprep.subr.mxu0 0.0
    %4053 = vmatpush1.xpose.msra.mxu0 0.0
    %4054 = vmatprep.subr.mxu0 0.0
    %4055 = vmatpush1.xpose.msra.mxu0 0.0
    %4056 = vmatprep.subr.mxu0 0.0
    %4057 = vmatpush1.xpose.msra.mxu0 0.0
    %4058 = vmatprep.subr.mxu0 0.0
    %4059 = vmatpush1.xpose.msra.mxu0 0.0
    %4060 = vmatprep.subr.mxu0 0.0
    %4061 = vmatpush1.xpose.msra.mxu0 0.0
    %4062 = vmatprep.subr.mxu0 0.0
    %4063 = vmatpush1.xpose.msra.mxu0 0.0
    %4064 = vmatprep.subr.mxu0 0.0
    %4065 = vmatpush1.xpose.msra.mxu0 0.0
    %4066 = vmatprep.subr.mxu0 0.0
    %4067 = vmatpush1.xpose.msra.mxu0 0.0
    %4068 = vmatprep.subr.mxu0 0.0
    %4069 = vmatpush1.xpose.msra.mxu0 0.0
    %4070 = vmatprep.subr.mxu0 0.0
    %4071 = vmatpush1.xpose.msra.mxu0 0.0
    %4072 = vmatprep.subr.mxu0 0.0
    %4073 = vmatpush1.xpose.msra.mxu0 0.0
    %4074 = vmatprep.subr.mxu0 0.0
    %4075 = vmatpush1.xpose.msra.mxu0 0.0
    %4076 = vmatprep.subr.mxu0 0.0
    %4077 = vmatpush1.xpose.msra.mxu0 0.0
    %4078 = vmatprep.subr.mxu0 0.0
    %4079 = vmatpush1.xpose.msra.mxu0 0.0
    %4080 = vmatprep.subr.mxu0 0.0
    %4081 = vmatpush1.xpose.msra.mxu0 0.0
    %4082 = vmatprep.subr.mxu0 0.0
    %4083 = vmatpush1.xpose.msra.mxu0 0.0
    %4084 = vmatprep.subr.mxu0 0.0
    %4085 = vmatpush1.xpose.msra.mxu0 0.0
    %4086 = vmatprep.subr.mxu0 0.0
    %4087 = vmatpush1.xpose.msra.mxu0 0.0
    %4088 = vmatprep.subr.mxu0 0.0
    %4089 = vmatpush1.xpose.msra.mxu0 0.0
    %4090 = vmatprep.subr.mxu0 0.0
    %4091 = vmatpush1.xpose.msra.mxu0 0.0
    %4092 = vmatprep.subr.mxu0 0.0
    %4093 = vmatpush1.xpose.msra.mxu0 0.0
    %4094 = vmatprep.subr.mxu0 0.0
    %4095 = vmatpush1.xpose.msra.mxu0 0.0
    %4096 = vmatprep.subr.mxu0 0.0
    %4097 = vmatpush1.xpose.msra.mxu0 0.0
    %4098 = vmatprep.subr.mxu0 0.0
    %4099 = vmatpush1.xpose.msra.mxu0 0.0
    %4100 = vmatprep.subr.mxu0 0.0
    %4101 = vmatpush1.xpose.msra.mxu0 0.0
    %4102 = vmatprep.subr.mxu0 0.0
    %4103 = vmatpush1.xpose.msra.mxu0 0.0
    %4104 = vmatprep.subr.mxu0 0.0
    %4105 = vmatpush1.xpose.msra.mxu0 0.0
    %4106 = vmatprep.subr.mxu0 0.0
    %4107 = vmatpush1.xpose.msra.mxu0 0.0
    %4108 = vmatprep.subr.mxu0 0.0
    %4109 = vmatpush1.xpose.msra.mxu0 0.0
    %4110 = vmatprep.subr.mxu0 0.0
    %4111 = vmatpush1.xpose.msra.mxu0 0.0
    %4112 = vmatprep.mubr.f32.mxu0 0.0
    %4113 = vmatmul.mubr.f32.gmra.mrb[0].mxu0 %v4040
    %v4114 = vpop.f32.mrb[0].mxu0
    %v4115 = vadd.f32 0.0, %v4114
    %v4116 = vpop.f32.mrb[0].mxu0
    %4117 = vmatprep.mubr.f32.mxu0 0.0
    %4118 = vmatmul.mubr.f32.gmra.mrb[0].mxu0 %v4042
    %v4119 = vpop.f32.mrb[0].mxu0
    %v4120 = vadd.f32 0.0, %v4119
    %v4121 = vpop.f32.mrb[0].mxu0
    %4122 = vdwg.mxu0
    %v4123 = vsel %vm656, %v4024, -inf
    %4124 = vmax.xlane.f32.xlu0 %v4123
    %v4125 = vpop.xlane.xlu0 %4124
    %v4126 = vsel %vm656, %v4029, -inf
    %4127 = vmax.xlane.f32.xlu0 %v4126
    %v4128 = vpop.xlane.xlu0 %4127
    %v4129 = vsel %vm656, %v4115, -inf
    %4130 = vmax.xlane.f32.xlu0 %v4129
    %v4131 = vpop.xlane.xlu0 %4130
    %v4132 = vsel %vm656, %v4120, -inf
    %4133 = vmax.xlane.f32.xlu0 %v4132
    %v4134 = vpop.xlane.xlu0 %4133
    %v4135 = vsub.f32 %v4024, %v4125
    %v4136 = vsub.f32 %v4029, %v4128
    %v4137 = vsub.f32 %v4115, %v4131
    %v4138 = vsub.f32 %v4120, %v4134
    %v4139 = vmul.f32 %v4135, 1.442695
    %v4140 = vpow.pop %v4139
    %v4141 = vmul.f32 %v4136, 1.442695
    %v4142 = vpow.pop %v4141
    %v4143 = vmul.f32 %v4137, 1.442695
    %v4144 = vpow.pop %v4143
    %v4145 = vmul.f32 %v4138, 1.442695
    %v4146 = vpow.pop %v4145
    %v4147 = vsel %vm656, %v4140, 0.0
    %4148 = vadd.xlane.f32.xlu0 %v4147
    %v4149 = vpop.xlane.xlu0 %4148
    %v4150 = vsel %vm656, %v4142, 0.0
    %4151 = vadd.xlane.f32.xlu0 %v4150
    %v4152 = vpop.xlane.xlu0 %4151
    %v4153 = vsel %vm656, %v4144, 0.0
    %4154 = vadd.xlane.f32.xlu0 %v4153
    %v4155 = vpop.xlane.xlu0 %4154
    %v4156 = vsel %vm656, %v4146, 0.0
    %4157 = vadd.xlane.f32.xlu0 %v4156
    %v4158 = vpop.xlane.xlu0 %4157
    %v4159 = vrcp.pop %v4149
    %v4160 = vrcp.pop %v4152
    %v4161 = vrcp.pop %v4155
    %v4162 = vrcp.pop %v4158
    %v4163 = vmul.f32 %v4140, %v4159
    %v4164 = vmul.f32 %v4142, %v4160
    %v4165 = vmul.f32 %v4144, %v4161
    %v4166 = vmul.f32 %v4146, %v4162
    %4167 = vrot.lane.b32.xlu0 %v2731, 40
    %v4168 = vpop.permute.xlu0 %4167
    %4169 = vrot.lane.b32.xlu0 %v2734, 40
    %v4170 = vpop.permute.xlu0 %4169
    %v4174 = vsel %vm656, %v4163, 0
    %v4177 = vsel %vm656, %v4164, 0
    %4179 = vmatprep.subr.mxu0 0.0
    %4180 = vmatpush1.msra.mxu0 %v4168
    %4181 = vmatprep.subr.mxu0 0.0
    %4182 = vmatpush1.msra.mxu0 %v4170
    %4183 = vmatprep.subr.mxu0 0.0
    %4184 = vmatpush1.msra.mxu0 0.0
    %4185 = vmatprep.subr.mxu0 0.0
    %4186 = vmatpush1.msra.mxu0 0.0
    %4187 = vmatprep.subr.mxu0 0.0
    %4188 = vmatpush1.msra.mxu0 0.0
    %4189 = vmatprep.subr.mxu0 0.0
    %4190 = vmatpush1.msra.mxu0 0.0
    %4191 = vmatprep.subr.mxu0 0.0
    %4192 = vmatpush1.msra.mxu0 0.0
    %4193 = vmatprep.subr.mxu0 0.0
    %4194 = vmatpush1.msra.mxu0 0.0
    %4195 = vmatprep.subr.mxu0 0.0
    %4196 = vmatpush1.msra.mxu0 0.0
    %4197 = vmatprep.subr.mxu0 0.0
    %4198 = vmatpush1.msra.mxu0 0.0
    %4199 = vmatprep.subr.mxu0 0.0
    %4200 = vmatpush1.msra.mxu0 0.0
    %4201 = vmatprep.subr.mxu0 0.0
    %4202 = vmatpush1.msra.mxu0 0.0
    %4203 = vmatprep.subr.mxu0 0.0
    %4204 = vmatpush1.msra.mxu0 0.0
    %4205 = vmatprep.subr.mxu0 0.0
    %4206 = vmatpush1.msra.mxu0 0.0
    %4207 = vmatprep.subr.mxu0 0.0
    %4208 = vmatpush1.msra.mxu0 0.0
    %4209 = vmatprep.subr.mxu0 0.0
    %4210 = vmatpush1.msra.mxu0 0.0
    %4211 = vmatprep.subr.mxu0 0.0
    %4212 = vmatpush1.msra.mxu0 0.0
    %4213 = vmatprep.subr.mxu0 0.0
    %4214 = vmatpush1.msra.mxu0 0.0
    %4215 = vmatprep.subr.mxu0 0.0
    %4216 = vmatpush1.msra.mxu0 0.0
    %4217 = vmatprep.subr.mxu0 0.0
    %4218 = vmatpush1.msra.mxu0 0.0
    %4219 = vmatprep.subr.mxu0 0.0
    %4220 = vmatpush1.msra.mxu0 0.0
    %4221 = vmatprep.subr.mxu0 0.0
    %4222 = vmatpush1.msra.mxu0 0.0
    %4223 = vmatprep.subr.mxu0 0.0
    %4224 = vmatpush1.msra.mxu0 0.0
    %4225 = vmatprep.subr.mxu0 0.0
    %4226 = vmatpush1.msra.mxu0 0.0
    %4227 = vmatprep.subr.mxu0 0.0
    %4228 = vmatpush1.msra.mxu0 0.0
    %4229 = vmatprep.subr.mxu0 0.0
    %4230 = vmatpush1.msra.mxu0 0.0
    %4231 = vmatprep.subr.mxu0 0.0
    %4232 = vmatpush1.msra.mxu0 0.0
    %4233 = vmatprep.subr.mxu0 0.0
    %4234 = vmatpush1.msra.mxu0 0.0
    %4235 = vmatprep.subr.mxu0 0.0
    %4236 = vmatpush1.msra.mxu0 0.0
    %4237 = vmatprep.subr.mxu0 0.0
    %4238 = vmatpush1.msra.mxu0 0.0
    %4239 = vmatprep.subr.mxu0 0.0
    %4240 = vmatpush1.msra.mxu0 0.0
    %4241 = vmatprep.subr.mxu0 0.0
    %4242 = vmatpush1.msra.mxu0 0.0
    %4243 = vmatprep.mubr.f32.mxu0 0.0
    %4244 = vmatmul.mubr.f32.gmra.mrb[0].mxu0 %v4174
    %v4245 = vpop.f32.mrb[0].mxu0
    %v4246 = vadd.f32 0.0, %v4245
    %v4247 = vpop.f32.mrb[0].mxu0
    %4248 = vmatprep.mubr.f32.mxu0 0.0
    %4249 = vmatmul.mubr.f32.gmra.mrb[0].mxu0 %v4177
    %v4250 = vpop.f32.mrb[0].mxu0
    %v4251 = vadd.f32 0.0, %v4250
    %v4252 = vpop.f32.mrb[0].mxu0
    %4253 = vdwg.mxu0
    %4254 = vrot.lane.b32.xlu0 %v2739, 40
    %v4255 = vpop.permute.xlu0 %4254
    %4256 = vrot.lane.b32.xlu0 %v2742, 40
    %v4257 = vpop.permute.xlu0 %4256
    %v4261 = vsel %vm656, %v4165, 0
    %v4264 = vsel %vm656, %v4166, 0
    %4266 = vmatprep.subr.mxu0 0.0
    %4267 = vmatpush1.msra.mxu0 %v4255
    %4268 = vmatprep.subr.mxu0 0.0
    %4269 = vmatpush1.msra.mxu0 %v4257
    %4270 = vmatprep.subr.mxu0 0.0
    %4271 = vmatpush1.msra.mxu0 0.0
    %4272 = vmatprep.subr.mxu0 0.0
    %4273 = vmatpush1.msra.mxu0 0.0
    %4274 = vmatprep.subr.mxu0 0.0
    %4275 = vmatpush1.msra.mxu0 0.0
    %4276 = vmatprep.subr.mxu0 0.0
    %4277 = vmatpush1.msra.mxu0 0.0
    %4278 = vmatprep.subr.mxu0 0.0
    %4279 = vmatpush1.msra.mxu0 0.0
    %4280 = vmatprep.subr.mxu0 0.0
    %4281 = vmatpush1.msra.mxu0 0.0
    %4282 = vmatprep.subr.mxu0 0.0
    %4283 = vmatpush1.msra.mxu0 0.0
    %4284 = vmatprep.subr.mxu0 0.0
    %4285 = vmatpush1.msra.mxu0 0.0
    %4286 = vmatprep.subr.mxu0 0.0
    %4287 = vmatpush1.msra.mxu0 0.0
    %4288 = vmatprep.subr.mxu0 0.0
    %4289 = vmatpush1.msra.mxu0 0.0
    %4290 = vmatprep.subr.mxu0 0.0
    %4291 = vmatpush1.msra.mxu0 0.0
    %4292 = vmatprep.subr.mxu0 0.0
    %4293 = vmatpush1.msra.mxu0 0.0
    %4294 = vmatprep.subr.mxu0 0.0
    %4295 = vmatpush1.msra.mxu0 0.0
    %4296 = vmatprep.subr.mxu0 0.0
    %4297 = vmatpush1.msra.mxu0 0.0
    %4298 = vmatprep.subr.mxu0 0.0
    %4299 = vmatpush1.msra.mxu0 0.0
    %4300 = vmatprep.subr.mxu0 0.0
    %4301 = vmatpush1.msra.mxu0 0.0
    %4302 = vmatprep.subr.mxu0 0.0
    %4303 = vmatpush1.msra.mxu0 0.0
    %4304 = vmatprep.subr.mxu0 0.0
    %4305 = vmatpush1.msra.mxu0 0.0
    %4306 = vmatprep.subr.mxu0 0.0
    %4307 = vmatpush1.msra.mxu0 0.0
    %4308 = vmatprep.subr.mxu0 0.0
    %4309 = vmatpush1.msra.mxu0 0.0
    %4310 = vmatprep.subr.mxu0 0.0
    %4311 = vmatpush1.msra.mxu0 0.0
    %4312 = vmatprep.subr.mxu0 0.0
    %4313 = vmatpush1.msra.mxu0 0.0
    %4314 = vmatprep.subr.mxu0 0.0
    %4315 = vmatpush1.msra.mxu0 0.0
    %4316 = vmatprep.subr.mxu0 0.0
    %4317 = vmatpush1.msra.mxu0 0.0
    %4318 = vmatprep.subr.mxu0 0.0
    %4319 = vmatpush1.msra.mxu0 0.0
    %4320 = vmatprep.subr.mxu0 0.0
    %4321 = vmatpush1.msra.mxu0 0.0
    %4322 = vmatprep.subr.mxu0 0.0
    %4323 = vmatpush1.msra.mxu0 0.0
    %4324 = vmatprep.subr.mxu0 0.0
    %4325 = vmatpush1.msra.mxu0 0.0
    %4326 = vmatprep.subr.mxu0 0.0
    %4327 = vmatpush1.msra.mxu0 0.0
    %4328 = vmatprep.subr.mxu0 0.0
    %4329 = vmatpush1.msra.mxu0 0.0
    %4330 = vmatprep.mubr.f32.mxu0 0.0
    %4331 = vmatmul.mubr.f32.gmra.mrb[0].mxu0 %v4261
    %v4332 = vpop.f32.mrb[0].mxu0
    %v4333 = vadd.f32 0.0, %v4332
    %v4334 = vpop.f32.mrb[0].mxu0
    %4335 = vmatprep.mubr.f32.mxu0 0.0
    %4336 = vmatmul.mubr.f32.gmra.mrb[0].mxu0 %v4264
    %v4337 = vpop.f32.mrb[0].mxu0
    %v4338 = vadd.f32 0.0, %v4337
    %v4339 = vpop.f32.mrb[0].mxu0
    %4340 = vdwg.mxu0
    %4345 = vrot.lane.b32.xlu0 %v3446, 8
    %v4346 = vpop.permute.xlu0 %4345
    %4347 = vrot.lane.b32.xlu0 %v3451, 8
    %v4348 = vpop.permute.xlu0 %4347
    %4349 = vrot.lane.b32.xlu0 %v3533, 8
    %v4350 = vpop.permute.xlu0 %4349
    %4351 = vrot.lane.b32.xlu0 %v3538, 8
    %v4352 = vpop.permute.xlu0 %4351
    %4361 = vrot.lane.b32.xlu0 %v3846, 16
    %v4362 = vpop.permute.xlu0 %4361
    %4363 = vrot.lane.b32.xlu0 %v3851, 16
    %v4364 = vpop.permute.xlu0 %4363
    %4365 = vrot.lane.b32.xlu0 %v3933, 16
    %v4366 = vpop.permute.xlu0 %4365
    %4367 = vrot.lane.b32.xlu0 %v3938, 16
    %v4368 = vpop.permute.xlu0 %4367
    %4377 = vrot.lane.b32.xlu0 %v4246, 24
    %v4378 = vpop.permute.xlu0 %4377
    %4379 = vrot.lane.b32.xlu0 %v4251, 24
    %v4380 = vpop.permute.xlu0 %4379
    %4381 = vrot.lane.b32.xlu0 %v4333, 24
    %v4382 = vpop.permute.xlu0 %4381
    %4383 = vrot.lane.b32.xlu0 %v4338, 24
    %v4384 = vpop.permute.xlu0 %4383
    %v4389 = vsel %vm483, %v3046, %v4346
    %v4390 = vsel %vm483, %v3051, %v4348
    %v4391 = vsel %vm483, %v3133, %v4350
    %v4392 = vsel %vm483, %v3138, %v4352
    %v4393 = vsel %vm656, %v4389, %v4362
    %v4394 = vsel %vm656, %v4390, %v4364
    %v4395 = vsel %vm656, %v4391, %v4366
    %v4396 = vsel %vm656, %v4392, %v4368
    %v4397 = vsel %vm2131, %v4393, %v4378
    %v4398 = vsel %vm2131, %v4394, %v4380
    %v4399 = vsel %vm2131, %v4395, %v4382
    %v4400 = vsel %vm2131, %v4396, %v4384
    %v4401 = vpack.c.bf16 %v4398, %v4397
    %v4402 = vpack.c.bf16 %v4400, %v4399
    %v4403 = vlaneseq
    %v4404 = vshrl.u32 %v4403, 7
    %v4405 = vsub.s32 4, %v4404
    %v4406 = vrot.slane %v27, %v4405
    %4407 = vrot.lane.b32.xlu0 %v2686, 32
    %v4408 = vpop.permute.xlu0 %4407
    %4409 = vrot.lane.b32.xlu0 %v2687, 32
    %v4410 = vpop.permute.xlu0 %4409
    %v4414 = vsel %vm292, %v4401, 0
    %v4417 = vsel %vm292, %v4402, 0
    %4419 = vmatprep.subr.bf16.mxu0 0
    %4420 = vmatpush1.bf16.msra.mxu0 %v4408
    %4421 = vmatprep.subr.bf16.mxu0 0
    %4422 = vmatpush1.bf16.msra.mxu0 %v4410
    %4423 = vmatprep.subr.bf16.mxu0 0
    %4424 = vmatpush1.bf16.msra.mxu0 0
    %4425 = vmatprep.subr.bf16.mxu0 0
    %4426 = vmatpush1.bf16.msra.mxu0 0
    %4427 = vmatprep.subr.bf16.mxu0 0
    %4428 = vmatpush1.bf16.msra.mxu0 0
    %4429 = vmatprep.subr.bf16.mxu0 0
    %4430 = vmatpush1.bf16.msra.mxu0 0
    %4431 = vmatprep.subr.bf16.mxu0 0
    %4432 = vmatpush1.bf16.msra.mxu0 0
    %4433 = vmatprep.subr.bf16.mxu0 0
    %4434 = vmatpush1.bf16.msra.mxu0 0
    %4435 = vmatprep.subr.bf16.mxu0 0
    %4436 = vmatpush1.bf16.msra.mxu0 0
    %4437 = vmatprep.subr.bf16.mxu0 0
    %4438 = vmatpush1.bf16.msra.mxu0 0
    %4439 = vmatprep.subr.bf16.mxu0 0
    %4440 = vmatpush1.bf16.msra.mxu0 0
    %4441 = vmatprep.subr.bf16.mxu0 0
    %4442 = vmatpush1.bf16.msra.mxu0 0
    %4443 = vmatprep.subr.bf16.mxu0 0
    %4444 = vmatpush1.bf16.msra.mxu0 0
    %4445 = vmatprep.subr.bf16.mxu0 0
    %4446 = vmatpush1.bf16.msra.mxu0 0
    %4447 = vmatprep.subr.bf16.mxu0 0
    %4448 = vmatpush1.bf16.msra.mxu0 0
    %4449 = vmatprep.subr.bf16.mxu0 0
    %4450 = vmatpush1.bf16.msra.mxu0 0
    %4451 = vmatprep.mubr.bf16.mxu0 0
    %4452 = vmatmul.mubr.bf16.gmra.mrb[0].mxu0 %v4414
    %v4453 = vpop.f32.mrb[0].mxu0
    %v4454 = vadd.f32 %v4406, %v4453
    %v4455 = vpop.f32.mrb[0].mxu0
    %v4456 = vpop.f32.mrb[0].mxu0
    %v4457 = vadd.f32 %v4406, %v4456
    %v4458 = vpop.f32.mrb[0].mxu0
    %4459 = vmatprep.mubr.bf16.mxu0 0
    %4460 = vmatmul.mubr.bf16.gmra.mrb[0].mxu0 %v4417
    %v4461 = vpop.f32.mrb[0].mxu0
    %v4462 = vadd.f32 %v4406, %v4461
    %v4463 = vpop.f32.mrb[0].mxu0
    %v4464 = vpop.f32.mrb[0].mxu0
    %v4465 = vadd.f32 %v4406, %v4464
    %v4466 = vpop.f32.mrb[0].mxu0
    %4467 = vdwg.mxu0
    %4472 = vrot.lane.b32.xlu0 %v4454, 64
    %v4473 = vpop.permute.xlu0 %4472
    %4474 = vrot.lane.b32.xlu0 %v4457, 64
    %v4475 = vpop.permute.xlu0 %4474
    %4476 = vrot.lane.b32.xlu0 %v4462, 64
    %v4477 = vpop.permute.xlu0 %4476
    %4478 = vrot.lane.b32.xlu0 %v4465, 64
    %v4479 = vpop.permute.xlu0 %4478
    %v4484 = vadd.f32 %v2632, %v4473
    %v4485 = vadd.f32 %v2633, %v4475
    %v4486 = vadd.f32 %v2634, %v4477
    %v4487 = vadd.f32 %v2635, %v4479
    %4492 = vrot.lane.b32.xlu0 %v4484, 64
    %v4493 = vpop.permute.xlu0 %4492
    %4494 = vrot.lane.b32.xlu0 %v4485, 64
    %v4495 = vpop.permute.xlu0 %4494
    %4496 = vrot.lane.b32.xlu0 %v4486, 64
    %v4497 = vpop.permute.xlu0 %4496
    %4498 = vrot.lane.b32.xlu0 %v4487, 64
    %v4499 = vpop.permute.xlu0 %4498
    %v4504 = vsel %vm292, %v4493, 0.0
    %4505 = vadd.xlane.f32.xlu0 %v4504
    %v4506 = vpop.xlane.xlu0 %4505
    %v4507 = vsel %vm292, %v4495, 0.0
    %4508 = vadd.xlane.f32.xlu0 %v4507
    %v4509 = vpop.xlane.xlu0 %4508
    %v4510 = vsel %vm292, %v4497, 0.0
    %4511 = vadd.xlane.f32.xlu0 %v4510
    %v4512 = vpop.xlane.xlu0 %4511
    %v4513 = vsel %vm292, %v4499, 0.0
    %4514 = vadd.xlane.f32.xlu0 %v4513
    %v4515 = vpop.xlane.xlu0 %4514
    %v4516 = vmul.f32 %v4506, %v305
    %v4517 = vmul.f32 %v4509, %v305
    %v4518 = vmul.f32 %v4512, %v305
    %v4519 = vmul.f32 %v4515, %v305
    %v4520 = vsub.f32 %v4484, %v4516
    %v4521 = vsub.f32 %v4485, %v4517
    %v4522 = vsub.f32 %v4486, %v4518
    %v4523 = vsub.f32 %v4487, %v4519
    %v4524 = vmul.f32 %v4520, %v4520
    %v4525 = vmul.f32 %v4521, %v4521
    %v4526 = vmul.f32 %v4522, %v4522
    %v4527 = vmul.f32 %v4523, %v4523
    %4532 = vrot.lane.b32.xlu0 %v4524, 64
    %v4533 = vpop.permute.xlu0 %4532
    %4534 = vrot.lane.b32.xlu0 %v4525, 64
    %v4535 = vpop.permute.xlu0 %4534
    %4536 = vrot.lane.b32.xlu0 %v4526, 64
    %v4537 = vpop.permute.xlu0 %4536
    %4538 = vrot.lane.b32.xlu0 %v4527, 64
    %v4539 = vpop.permute.xlu0 %4538
    %v4544 = vsel %vm292, %v4533, 0.0
    %4545 = vadd.xlane.f32.xlu0 %v4544
    %v4546 = vpop.xlane.xlu0 %4545
    %v4547 = vsel %vm292, %v4535, 0.0
    %4548 = vadd.xlane.f32.xlu0 %v4547
    %v4549 = vpop.xlane.xlu0 %4548
    %v4550 = vsel %vm292, %v4537, 0.0
    %4551 = vadd.xlane.f32.xlu0 %v4550
    %v4552 = vpop.xlane.xlu0 %4551
    %v4553 = vsel %vm292, %v4539, 0.0
    %4554 = vadd.xlane.f32.xlu0 %v4553
    %v4555 = vpop.xlane.xlu0 %4554
    %v4556 = vmul.f32 %v4546, %v305
    %v4557 = vmul.f32 %v4549, %v305
    %v4558 = vmul.f32 %v4552, %v305
    %v4559 = vmul.f32 %v4555, %v305
    %v4560 = vadd.f32 %v4556, 1e-05
    %v4561 = vadd.f32 %v4557, 1e-05
    %v4562 = vadd.f32 %v4558, 1e-05
    %v4563 = vadd.f32 %v4559, 1e-05
    %v4564 = vrsqrt.pop %v4560
    %v4565 = vrsqrt.pop %v4561
    %v4566 = vrsqrt.pop %v4562
    %v4567 = vrsqrt.pop %v4563
    %v4568 = vmul.f32 %v4520, %v4564
    %v4569 = vmul.f32 %v4521, %v4565
    %v4570 = vmul.f32 %v4522, %v4566
    %v4571 = vmul.f32 %v4523, %v4567
    %v4572 = vlaneseq
    %v4573 = vshrl.u32 %v4572, 7
    %v4574 = vsub.s32 5, %v4573
    %v4575 = vrot.slane %v27, %v4574
    %4577 = vrot.lane.b32.xlu0 %v4575, 64
    %v4578 = vpop.permute.xlu0 %4577
    %v4580 = vmul.f32 %v4568, %v4578
    %v4581 = vmul.f32 %v4569, %v4578
    %v4582 = vmul.f32 %v4570, %v4578
    %v4583 = vmul.f32 %v4571, %v4578
    %v4584 = vlaneseq
    %v4585 = vshrl.u32 %v4584, 7
    %v4586 = vsub.s32 6, %v4585
    %v4587 = vrot.slane %v27, %v4586
    %4589 = vrot.lane.b32.xlu0 %v4587, 64
    %v4590 = vpop.permute.xlu0 %4589
    %v4592 = vadd.f32 %v4580, %v4590
    %v4593 = vadd.f32 %v4581, %v4590
    %v4594 = vadd.f32 %v4582, %v4590
    %v4595 = vadd.f32 %v4583, %v4590
    %v4596 = vpack.c.bf16 %v4593, %v4592
    %v4597 = vpack.c.bf16 %v4595, %v4594
    %v4598 = vlaneseq
    %v4599 = vshrl.u32 %v4598, 7
    %v4600 = vsub.s32 7, %v4599
    %v4601 = vrot.slane %v27, %v4600
    %4604 = vrot.lane.b32.xlu0 %v4596, 64
    %v4605 = vpop.permute.xlu0 %4604
    %4606 = vrot.lane.b32.xlu0 %v4597, 64
    %v4607 = vpop.permute.xlu0 %4606
    %v4608 = vunpack.c.h.b16 %v2653
    %v4609 = vunpack.c.h.b16 %v2654
    %v4610 = vunpack.c.h.b16 %v2655
    %v4611 = vunpack.c.h.b16 %v2656
    %v4612 = vpack.c.b16 %v4609, %v4608
    %v4613 = vpack.c.b16 %v4611, %v4610
    %v4617 = vsel %vm292, %v4605, 0
    %v4620 = vsel %vm292, %v4607, 0
    %4622 = vmatprep.subr.bf16.mxu0 0
    %4623 = vmatpush1.bf16.msra.mxu0 %v4612
    %4624 = vmatprep.subr.bf16.mxu0 0
    %4625 = vmatpush1.bf16.msra.mxu0 %v4613
    %4626 = vmatprep.subr.bf16.mxu0 0
    %4627 = vmatpush1.bf16.msra.mxu0 0
    %4628 = vmatprep.subr.bf16.mxu0 0
    %4629 = vmatpush1.bf16.msra.mxu0 0
    %4630 = vmatprep.subr.bf16.mxu0 0
    %4631 = vmatpush1.bf16.msra.mxu0 0
    %4632 = vmatprep.subr.bf16.mxu0 0
    %4633 = vmatpush1.bf16.msra.mxu0 0
    %4634 = vmatprep.subr.bf16.mxu0 0
    %4635 = vmatpush1.bf16.msra.mxu0 0
    %4636 = vmatprep.subr.bf16.mxu0 0
    %4637 = vmatpush1.bf16.msra.mxu0 0
    %4638 = vmatprep.subr.bf16.mxu0 0
    %4639 = vmatpush1.bf16.msra.mxu0 0
    %4640 = vmatprep.subr.bf16.mxu0 0
    %4641 = vmatpush1.bf16.msra.mxu0 0
    %4642 = vmatprep.subr.bf16.mxu0 0
    %4643 = vmatpush1.bf16.msra.mxu0 0
    %4644 = vmatprep.subr.bf16.mxu0 0
    %4645 = vmatpush1.bf16.msra.mxu0 0
    %4646 = vmatprep.subr.bf16.mxu0 0
    %4647 = vmatpush1.bf16.msra.mxu0 0
    %4648 = vmatprep.subr.bf16.mxu0 0
    %4649 = vmatpush1.bf16.msra.mxu0 0
    %4650 = vmatprep.subr.bf16.mxu0 0
    %4651 = vmatpush1.bf16.msra.mxu0 0
    %4652 = vmatprep.subr.bf16.mxu0 0
    %4653 = vmatpush1.bf16.msra.mxu0 0
    %4654 = vmatprep.mubr.bf16.mxu0 0
    %4655 = vmatmul.mubr.bf16.gmra.mrb[0].mxu0 %v4617
    %v4656 = vpop.f32.mrb[0].mxu0
    %v4657 = vadd.f32 %v4601, %v4656
    %v4658 = vpop.f32.mrb[0].mxu0
    %v4659 = vpop.f32.mrb[0].mxu0
    %v4660 = vadd.f32 %v4601, %v4659
    %v4661 = vpop.f32.mrb[0].mxu0
    %4662 = vmatprep.mubr.bf16.mxu0 0
    %4663 = vmatmul.mubr.bf16.gmra.mrb[0].mxu0 %v4620
    %v4664 = vpop.f32.mrb[0].mxu0
    %v4665 = vadd.f32 %v4601, %v4664
    %v4666 = vpop.f32.mrb[0].mxu0
    %v4667 = vpop.f32.mrb[0].mxu0
    %v4668 = vadd.f32 %v4601, %v4667
    %v4669 = vpop.f32.mrb[0].mxu0
    %4670 = vdwg.mxu0
    %v4671 = vmax.f32 %v4657, 0.0
    %v4672 = vmax.f32 %v4660, 0.0
    %v4673 = vmax.f32 %v4665, 0.0
    %v4674 = vmax.f32 %v4668, 0.0
    %v4675 = vpack.c.bf16 %v4672, %v4671
    %v4676 = vpack.c.bf16 %v4674, %v4673
    %v4677 = vlaneseq
    %v4678 = vshrl.u32 %v4677, 7
    %v4679 = vsub.s32 0, %v4678
    %v4680 = vrot.slane %v28, %v4679
    %v4689 = vunpack.c.l.b16 %v2658
    %v4690 = vunpack.c.l.b16 %v2659
    %v4691 = vunpack.c.l.b16 %v2660
    %v4692 = vunpack.c.l.b16 %v2661
    %v4693 = vunpack.c.l.b16 %v2662
    %v4694 = vunpack.c.l.b16 %v2663
    %v4695 = vunpack.c.l.b16 %v2664
    %v4696 = vunpack.c.l.b16 %v2665
    %v4697 = vpack.c.b16 %v4690, %v4689
    %v4698 = vpack.c.b16 %v4692, %v4691
    %v4699 = vpack.c.b16 %v4694, %v4693
    %v4700 = vpack.c.b16 %v4696, %v4695
    %v4706 = vsel %vm2440, %v4675, 0
    %v4709 = vsel %vm2440, %v4676, 0
    %4711 = vmatprep.subr.bf16.mxu0 0
    %4712 = vmatpush1.bf16.msra.mxu0 %v4697
    %4713 = vmatprep.subr.bf16.mxu0 0
    %4714 = vmatpush1.bf16.msra.mxu0 %v4698
    %4715 = vmatprep.subr.bf16.mxu0 0
    %4716 = vmatpush1.bf16.msra.mxu0 %v4699
    %4717 = vmatprep.subr.bf16.mxu0 0
    %4718 = vmatpush1.bf16.msra.mxu0 %v4700
    %4719 = vmatprep.subr.bf16.mxu0 0
    %4720 = vmatpush1.bf16.msra.mxu0 0
    %4721 = vmatprep.subr.bf16.mxu0 0
    %4722 = vmatpush1.bf16.msra.mxu0 0
    %4723 = vmatprep.subr.bf16.mxu0 0
    %4724 = vmatpush1.bf16.msra.mxu0 0
    %4725 = vmatprep.subr.bf16.mxu0 0
    %4726 = vmatpush1.bf16.msra.mxu0 0
    %4727 = vmatprep.subr.bf16.mxu0 0
    %4728 = vmatpush1.bf16.msra.mxu0 0
    %4729 = vmatprep.subr.bf16.mxu0 0
    %4730 = vmatpush1.bf16.msra.mxu0 0
    %4731 = vmatprep.subr.bf16.mxu0 0
    %4732 = vmatpush1.bf16.msra.mxu0 0
    %4733 = vmatprep.subr.bf16.mxu0 0
    %4734 = vmatpush1.bf16.msra.mxu0 0
    %4735 = vmatprep.subr.bf16.mxu0 0
    %4736 = vmatpush1.bf16.msra.mxu0 0
    %4737 = vmatprep.subr.bf16.mxu0 0
    %4738 = vmatpush1.bf16.msra.mxu0 0
    %4739 = vmatprep.subr.bf16.mxu0 0
    %4740 = vmatpush1.bf16.msra.mxu0 0
    %4741 = vmatprep.subr.bf16.mxu0 0
    %4742 = vmatpush1.bf16.msra.mxu0 0
    %4743 = vmatprep.mubr.bf16.mxu0 0
    %4744 = vmatmul.mubr.bf16.gmra.mrb[0].mxu0 %v4706
    %v4745 = vpop.f32.mrb[0].mxu0
    %v4746 = vadd.f32 %v4680, %v4745
    %v4747 = vpop.f32.mrb[0].mxu0
    %v4748 = vpop.f32.mrb[0].mxu0
    %v4749 = vadd.f32 %v4680, %v4748
    %v4750 = vpop.f32.mrb[0].mxu0
    %4751 = vmatprep.mubr.bf16.mxu0 0
    %4752 = vmatmul.mubr.bf16.gmra.mrb[0].mxu0 %v4709
    %v4753 = vpop.f32.mrb[0].mxu0
    %v4754 = vadd.f32 %v4680, %v4753
    %v4755 = vpop.f32.mrb[0].mxu0
    %v4756 = vpop.f32.mrb[0].mxu0
    %v4757 = vadd.f32 %v4680, %v4756
    %v4758 = vpop.f32.mrb[0].mxu0
    %4759 = vdwg.mxu0
    %4761 = vrot.lane.b32.xlu0 %v4749, 32
    %v4762 = vpop.permute.xlu0 %4761
    %4765 = vrot.lane.b32.xlu0 %v4754, 64
    %v4766 = vpop.permute.xlu0 %4765
    %4769 = vrot.lane.b32.xlu0 %v4757, 96
    %v4770 = vpop.permute.xlu0 %4769
    %v4772 = vsel %vm292, %v4746, %v4762
    %v4773 = vsel %vm2440, %v4772, %v4766
    %v4774 = vsel %vm2510, %v4773, %v4770
    %s4775 = scalar_lea.vmem [#allocation2], 24
    %4776 = vst [vmem:[%s4775] sm:$0xff] %v4774
    %4778 = vrot.lane.b32.xlu0 %v4746, 64
    %v4779 = vpop.permute.xlu0 %4778
    %4780 = vrot.lane.b32.xlu0 %v4749, 64
    %v4781 = vpop.permute.xlu0 %4780
    %4782 = vrot.lane.b32.xlu0 %v4757, 64
    %v4783 = vpop.permute.xlu0 %4782
    %v4787 = vadd.f32 %v4592, %v4779
    %v4788 = vadd.f32 %v4593, %v4781
    %v4789 = vadd.f32 %v4594, %v4766
    %v4790 = vadd.f32 %v4595, %v4783
    %4795 = vrot.lane.b32.xlu0 %v4787, 64
    %v4796 = vpop.permute.xlu0 %4795
    %4797 = vrot.lane.b32.xlu0 %v4788, 64
    %v4798 = vpop.permute.xlu0 %4797
    %4799 = vrot.lane.b32.xlu0 %v4789, 64
    %v4800 = vpop.permute.xlu0 %4799
    %4801 = vrot.lane.b32.xlu0 %v4790, 64
    %v4802 = vpop.permute.xlu0 %4801
    %v4807 = vsel %vm292, %v4796, 0.0
    %4808 = vadd.xlane.f32.xlu0 %v4807
    %v4809 = vpop.xlane.xlu0 %4808
    %v4810 = vsel %vm292, %v4798, 0.0
    %4811 = vadd.xlane.f32.xlu0 %v4810
    %v4812 = vpop.xlane.xlu0 %4811
    %v4813 = vsel %vm292, %v4800, 0.0
    %4814 = vadd.xlane.f32.xlu0 %v4813
    %v4815 = vpop.xlane.xlu0 %4814
    %v4816 = vsel %vm292, %v4802, 0.0
    %4817 = vadd.xlane.f32.xlu0 %v4816
    %v4818 = vpop.xlane.xlu0 %4817
    %v4819 = vmul.f32 %v4809, %v305
    %v4820 = vmul.f32 %v4812, %v305
    %v4821 = vmul.f32 %v4815, %v305
    %v4822 = vmul.f32 %v4818, %v305
    %v4823 = vsub.f32 %v4787, %v4819
    %v4824 = vsub.f32 %v4788, %v4820
    %v4825 = vsub.f32 %v4789, %v4821
    %v4826 = vsub.f32 %v4790, %v4822
    %v4827 = vmul.f32 %v4823, %v4823
    %v4828 = vmul.f32 %v4824, %v4824
    %v4829 = vmul.f32 %v4825, %v4825
    %v4830 = vmul.f32 %v4826, %v4826
    %4835 = vrot.lane.b32.xlu0 %v4827, 64
    %v4836 = vpop.permute.xlu0 %4835
    %4837 = vrot.lane.b32.xlu0 %v4828, 64
    %v4838 = vpop.permute.xlu0 %4837
    %4839 = vrot.lane.b32.xlu0 %v4829, 64
    %v4840 = vpop.permute.xlu0 %4839
    %4841 = vrot.lane.b32.xlu0 %v4830, 64
    %v4842 = vpop.permute.xlu0 %4841
    %v4847 = vsel %vm292, %v4836, 0.0
    %4848 = vadd.xlane.f32.xlu0 %v4847
    %v4849 = vpop.xlane.xlu0 %4848
    %v4850 = vsel %vm292, %v4838, 0.0
    %4851 = vadd.xlane.f32.xlu0 %v4850
    %v4852 = vpop.xlane.xlu0 %4851
    %v4853 = vsel %vm292, %v4840, 0.0
    %4854 = vadd.xlane.f32.xlu0 %v4853
    %v4855 = vpop.xlane.xlu0 %4854
    %v4856 = vsel %vm292, %v4842, 0.0
    %4857 = vadd.xlane.f32.xlu0 %v4856
    %v4858 = vpop.xlane.xlu0 %4857
    %v4859 = vmul.f32 %v4849, %v305
    %v4860 = vmul.f32 %v4852, %v305
    %v4861 = vmul.f32 %v4855, %v305
    %v4862 = vmul.f32 %v4858, %v305
    %v4863 = vadd.f32 %v4859, 1e-05
    %v4864 = vadd.f32 %v4860, 1e-05
    %v4865 = vadd.f32 %v4861, 1e-05
    %v4866 = vadd.f32 %v4862, 1e-05
    %v4867 = vrsqrt.pop %v4863
    %v4868 = vrsqrt.pop %v4864
    %v4869 = vrsqrt.pop %v4865
    %v4870 = vrsqrt.pop %v4866
    %v4871 = vmul.f32 %v4823, %v4867
    %v4872 = vmul.f32 %v4824, %v4868
    %v4873 = vmul.f32 %v4825, %v4869
    %v4874 = vmul.f32 %v4826, %v4870
    %v4875 = vlaneseq
    %v4876 = vshrl.u32 %v4875, 7
    %v4877 = vsub.s32 1, %v4876
    %v4878 = vrot.slane %v28, %v4877
    %4880 = vrot.lane.b32.xlu0 %v4878, 64
    %v4881 = vpop.permute.xlu0 %4880
    %v4883 = vmul.f32 %v4871, %v4881
    %v4884 = vmul.f32 %v4872, %v4881
    %v4885 = vmul.f32 %v4873, %v4881
    %v4886 = vmul.f32 %v4874, %v4881
    %v4887 = vlaneseq
    %v4888 = vshrl.u32 %v4887, 7
    %v4889 = vsub.s32 2, %v4888
    %v4890 = vrot.slane %v28, %v4889
    %4892 = vrot.lane.b32.xlu0 %v4890, 64
    %v4893 = vpop.permute.xlu0 %4892
    %v4895 = vadd.f32 %v4883, %v4893
    %v4896 = vadd.f32 %v4884, %v4893
    %v4897 = vadd.f32 %v4885, %v4893
    %v4898 = vadd.f32 %v4886, %v4893
    %4900 = vrot.lane.b32.xlu0 %v4895, 64
    %v4901 = vpop.permute.xlu0 %4900
    %4904 = vrot.lane.b32.xlu0 %v4896, 96
    %v4905 = vpop.permute.xlu0 %4904
    %4908 = vrot.lane.b32.xlu0 %v4898, 32
    %v4909 = vpop.permute.xlu0 %4908
    %v4911 = vsel %vm292, %v4901, %v4905
    %v4912 = vsel %vm2440, %v4911, %v4897
    %v4913 = vsel %vm2510, %v4912, %v4909
    %s4914 = scalar_lea.vmem [#allocation2], 8
    %4915 = vst [vmem:[%s4914] sm:$0xff] %v4913
    // Predicated region
    $region22: #{tpu_custom_call.1} parent=1 // pred_check
      _
    $region23: #{tpu_custom_call.1} parent=1 // pred_check_branch
      %4917 = sbr.rel (0) target = $region25
    $region24: #{tpu_custom_call.1} parent=1 // pred_region
      %s4919 = ssub.s32 512, 512
      %4920 = vsyncadd [#allocation3], %s4919
      %s4921 = sshll.u32 [#allocation2], 4
      %s4922 = int_to_ptr.vmem [resolvable:$true] %s4921
      %4927 = dma.vmem_to_hbm [thread:$0]  %s4922, 512, %s5, [#allocation3], 128, 128, 8
    $region25: #{tpu_custom_call.1} parent=1 // pred_fallthru
      _
    // Predicated region
    $region26: #{tpu_custom_call.1} parent=1 // pred_check
      _
    $region27: #{tpu_custom_call.1} parent=1 // pred_check_branch
      %4929 = sbr.rel (0) target = $region29
    $region28: #{tpu_custom_call.1} parent=1 // pred_region
      %4930 = dma.done [#allocation3], 512
    $region29: #{tpu_custom_call.1} parent=1 // pred_fallthru
      _
    %4931 = vsyncpa [#allocation3], 1

</llo_original>
